<compile_context>
chip_gen: v5e
topology: v5e:2x2
jax: 0.10.0
libtpu: 0.0.40
codegen_flags: <defaults>
</compile_context>

<pallas_src>
import numpy as np
import jax
import jax.numpy as jnp
from jax.experimental import pallas as pl
from jax.experimental.pallas import tpu as pltpu


# ----------------------------------------------------------------------------
# helpers
# ----------------------------------------------------------------------------
def _gelu_tanh(y):
    # TODO(synk): nn.GELU() defaults to the exact erf-based GELU; the tanh
    # approximation is used because erf is not guaranteed to lower in Mosaic.
    c = 0.7978845608028654  # sqrt(2/pi)
    return 0.5 * y * (1.0 + jnp.tanh(c * (y + 0.044715 * (y * y * y))))


def _const_spec(a):
    """Grid-invariant (weight/bias) BlockSpec: full array every step."""
    rank = a.ndim
    # TODO(synk): these never change across the grid; pipeline_mode=pl.Buffered(1)
    # would drop the second buffer (minor VMEM saving).
    return pl.BlockSpec(a.shape, lambda b, d: (0,) * rank)


# ----------------------------------------------------------------------------
# fused kernel factory: iGDN -> conv0(phase taps) -> conv1+GELU -> conv2 (+sc)
# ----------------------------------------------------------------------------
def _make_kernel(meta, *, Wp, Vp, Vp_alloc):
    nd, cin, cout = meta["nd"], meta["cin"], meta["cout"]
    n_ph = meta["n_ph"]
    phase_taps = meta["phase_taps"]     # ph -> [(tap_idx, delta_idx), ...]
    delta_of = meta["delta_of"]         # delta_idx -> (idd, idh, idw)
    di0 = meta["di0"]                   # delta (0,0,0): shortcut input
    used_deltas = sorted({di for taps in phase_taps for _, di in taps} | {di0})

    def kernel(*refs):
        x_refs = refs[:nd]
        (g_ref, beta_ref, w0_ref, b0_ref, wsc_ref,
         w1_ref, b1_ref, w2_ref, b2sc_ref, o_ref, ys_buf) = refs[nd:]

        # ---- inverse GDN: once per input plane (not once per shifted copy) ----
        gamma = g_ref[...]                                   # (cin, cin) bf16
        beta = beta_ref[...]                                 # (cin, 1)  f32
        for dd in range(nd):
            xv = x_refs[dd][...]                             # (cin, Vp) bf16
            norm = jnp.dot(gamma, xv * xv,
                           preferred_element_type=jnp.float32) + beta
            ys = xv.astype(jnp.float32) * jnp.sqrt(norm)     # gamma>=0, beta>0
            ys_buf[dd, :, 0:Vp] = ys.astype(jnp.bfloat16)
            if Vp_alloc > Vp:                                # deterministic tail
                ys_buf[dd, :, Vp:Vp_alloc] = jnp.zeros(
                    (cin, Vp_alloc - Vp), jnp.bfloat16)
        # TODO(synk): the d+1 plane is re-normalized by the next grid step
        # (nd x redundancy along D only); a cross-step carry buffer would remove
        # it but complicates megacore partitioning.

        # lane-shifted (dh, dw) windows of each normalized plane.  The flat
        # row-stride-Wp offset trick keeps any halo garbage confined to columns
        # the wrapper slices away afterwards.
        ys_sh = {}
        for di in used_deltas:
            idd, idh, idw = delta_of[di]
            off = idh * Wp + idw
            ys_sh[di] = ys_buf[idd, :, off:off + Vp]         # (cin, Vp) bf16

        b0 = b0_ref[...]                                     # (cout, 1) f32
        b1 = b1_ref[...]                                     # (chid, 1) f32
        b2sc = b2sc_ref[...]                                 # (cout, 1) f32
        w1 = w1_ref[...]                                     # (chid, cout) bf16
        w2 = w2_ref[...]                                     # (cout, chid) bf16

        for ph in range(n_ph):
            # conv0: only the taps that exist for this output phase (no zeros).
            taps = phase_taps[ph]
            if taps:
                acc = None
                for t, di in taps:
                    term = jnp.dot(w0_ref[t], ys_sh[di],
                                   preferred_element_type=jnp.float32)
                    acc = term if acc is None else acc + term
                h0 = acc + b0
            else:                                            # k < s corner case
                h0 = jnp.broadcast_to(b0, (cout, Vp))
            # conv1 (1x1x1) + GELU (bf16 elementwise) + conv2 (1x1x1)
            h1 = jnp.dot(w1, h0.astype(jnp.bfloat16),
                         preferred_element_type=jnp.float32) + b1
            h1 = _gelu_tanh(h1.astype(jnp.bfloat16))
            out = jnp.dot(w2, h1, preferred_element_type=jnp.float32) + b2sc
            if ph == 0:
                # shortcut ConvTranspose3d(k=1, stride=s) only hits phase (0,0,0)
                out = out + jnp.dot(wsc_ref[...], ys_sh[di0],
                                    preferred_element_type=jnp.float32)
            o_ref[ph * cout:(ph + 1) * cout, :] = out.astype(o_ref.dtype)

    return kernel


# ----------------------------------------------------------------------------
# parameters (deterministic, synthetic, PyTorch layouts)
# ----------------------------------------------------------------------------
def init_raw_params(key, c_in, c_out, k):
    c_hidden = 4 * c_out
    ks = jax.random.split(key, 10)
    # GDN constraints: beta > 0, gamma >= 0
    gdn_beta = 1.0 + 0.05 * jnp.abs(jax.random.normal(ks[0], (c_in,), jnp.float32))
    gdn_gamma = 0.1 * jnp.eye(c_in, dtype=jnp.float32) + 0.01 * jnp.abs(
        jax.random.normal(ks[1], (c_in, c_in), jnp.float32))
    # ConvTranspose3d weights in PyTorch layout (C_in, C_out, k, k, k)
    w_sc_t = 0.2 * jax.random.normal(ks[2], (c_in, c_out, 1, 1, 1), jnp.float32)
    b_sc = 0.05 * jax.random.normal(ks[3], (c_out,), jnp.float32)
    w0_t = 0.2 * jax.random.normal(ks[4], (c_in, c_out, k, k, k), jnp.float32)
    b0 = 0.05 * jax.random.normal(ks[5], (c_out,), jnp.float32)
    w1_t = 0.2 * jax.random.normal(ks[6], (c_out, c_hidden, 1, 1, 1), jnp.float32)
    b1 = 0.05 * jax.random.normal(ks[7], (c_hidden,), jnp.float32)
    w2_t = 0.2 * jax.random.normal(ks[8], (c_hidden, c_out, 1, 1, 1), jnp.float32)
    b2 = 0.05 * jax.random.normal(ks[9], (c_out,), jnp.float32)
    return dict(gdn_beta=gdn_beta, gdn_gamma=gdn_gamma, w_sc_t=w_sc_t, b_sc=b_sc,
                w0_t=w0_t, b0=b0, w1_t=w1_t, b1=b1, w2_t=w2_t, b2=b2)


def prepare_pallas_params(raw, k, s):
    """Phase/tap-decomposed dense weights (bf16) + static tap structure."""
    assert k % 2 == 1, "Conv3dTransposeSame equivalence assumes odd kernel_size"
    w0_t = np.asarray(raw["w0_t"], np.float32)            # (cin, cout, k, k, k)
    cin, cout = int(w0_t.shape[0]), int(w0_t.shape[1])
    chid = int(raw["b1"].shape[0])
    p = (k - 1) // 2

    # Per-dim map (output phase r, input delta d) -> kernel tap kk, from the
    # ConvTranspose relation o = i*s - p + kk with o = s*q + r, i = q + d.
    tap, deltas = {}, set()
    for r in range(s):
        for kk in range(k):
            if (r + p - kk) % s == 0:
                d = (r + p - kk) // s
                tap[(r, d)] = kk
                deltas.add(d)
    dmin, dmax = min(deltas), max(deltas)
    nd = dmax - dmin + 1
    n_ph = s ** 3

    delta_of = {}
    for idd in range(nd):
        for idh in range(nd):
            for idw in range(nd):
                delta_of[(idd * nd + idh) * nd + idw] = (idd, idh, idw)

    # Enumerate only the 3-D taps that actually contribute (k^3 of them).
    taps_w = []                                            # list of (cout, cin)
    phase_taps = [[] for _ in range(n_ph)]
    for rd in range(s):
        for rh in range(s):
            for rw in range(s):
                ph = (rd * s + rh) * s + rw
                for idd in range(nd):
                    for idh in range(nd):
                        for idw in range(nd):
                            keys = ((rd, dmin + idd), (rh, dmin + idh),
                                    (rw, dmin + idw))
                            if all(key in tap for key in keys):
                                kd, kh, kw = (tap[key] for key in keys)
                                di = (idd * nd + idh) * nd + idw
                                phase_taps[ph].append((len(taps_w), di))
                                taps_w.append(w0_t[:, :, kd, kh, kw].T)
    w0_pack = np.stack(taps_w, axis=0)                     # (n_taps, cout, cin)

    off0 = -dmin
    di0 = (off0 * nd + off0) * nd + off0                   # delta (0,0,0)

    gamma = np.asarray(raw["gdn_gamma"], np.float32)
    beta = np.asarray(raw["gdn_beta"], np.float32).reshape(-1, 1)
    wsc = np.asarray(raw["w_sc_t"], np.float32).reshape(cin, cout).T
    w1 = np.asarray(raw["w1_t"], np.float32).reshape(cout, chid).T
    w2 = np.asarray(raw["w2_t"], np.float32).reshape(chid, cout).T
    b0 = np.asarray(raw["b0"], np.float32).reshape(-1, 1)
    b1 = np.asarray(raw["b1"], np.float32).reshape(-1, 1)
    b2sc = (np.asarray(raw["b2"], np.float32)
            + np.asarray(raw["b_sc"], np.float32)).reshape(-1, 1)

    bf = lambda a: jnp.asarray(a, jnp.bfloat16)
    f32 = lambda a: jnp.asarray(a, jnp.float32)
    return dict(
        gamma=bf(gamma), beta=f32(beta),
        w0=bf(w0_pack), b0=f32(b0), wsc=bf(wsc),
        w1=bf(w1), b1=f32(b1), w2=bf(w2), b2sc=f32(b2sc),
        meta=dict(s=s, k=k, nd=nd, dmin=dmin, cin=cin, cout=cout, chid=chid,
                  n_ph=n_ph, phase_taps=phase_taps, delta_of=delta_of, di0=di0),
    )


# ----------------------------------------------------------------------------
# forward (Pallas) + pure-JAX reference
# ----------------------------------------------------------------------------
def forward_pallas(x, prep, kernel_size, stride):
    meta = prep["meta"]
    s, nd, dmin = meta["s"], meta["nd"], meta["dmin"]
    cin, cout, n_ph = meta["cin"], meta["cout"], meta["n_ph"]
    n, cin_x, D, H, W = x.shape
    assert cin_x == cin and stride == s

    A = nd - 1
    L, R = -dmin, A + dmin                # left / right spatial pad (R = dmax)
    Dp, Hp, Wp = D + A, H + A, W + A
    Vp = Hp * Wp
    Vp_alloc = Vp + A * Wp + A            # room for the largest in-plane shift

    # --- layout glue (XLA, ~1x input size): pad, channels next to the flattened
    # plane, cast to bf16.  No nd^3 shifted stack is ever written to HBM.
    xp = jnp.pad(x, ((0, 0), (0, 0), (L, R), (L, R), (L, R)))
    xp = jnp.transpose(xp, (0, 2, 1, 3, 4)).reshape(n, Dp, cin, Vp)
    xp = xp.astype(jnp.bfloat16)

    kernel = _make_kernel(meta, Wp=Wp, Vp=Vp, Vp_alloc=Vp_alloc)

    # nd in_specs on the same padded array give the D-axis halo for free.
    x_specs = [
        pl.BlockSpec((None, None, cin, Vp),
                     (lambda b, d, dd=dd: (b, d + dd, 0, 0)))
        for dd in range(nd)
    ]
    w_names = ("gamma", "beta", "w0", "b0", "wsc", "w1", "b1", "w2", "b2sc")
    w_arrays = [prep[name] for name in w_names]
    w_specs = [_const_spec(a) for a in w_arrays]

    out_rows = n_ph * cout
    out_t = pl.pallas_call(
        kernel,
        out_shape=jax.ShapeDtypeStruct((n, D, out_rows, Vp), jnp.bfloat16),
        grid=(n, D),
        in_specs=x_specs + w_specs,
        out_specs=pl.BlockSpec((None, None, out_rows, Vp),
                               lambda b, d: (b, d, 0, 0)),
        scratch_shapes=[pltpu.VMEM((nd, cin, Vp_alloc), jnp.bfloat16)],
        compiler_params=pltpu.CompilerParams(
            dimension_semantics=("parallel", "parallel")),
        # NOTE: per-step VMEM footprint is tiny (<1 MiB here); re-derive the
        # tile/limit if channel counts grow (v7x has 64 MiB physical VMEM).
    )(*([xp] * nd), *w_arrays)

    # phase/channel rows -> NCDHW with output index d*s + rd (etc.); drop the
    # halo columns that only exist to keep the in-kernel shift windows simple.
    o = out_t.reshape(n, D, s, s, s, cout, Hp, Wp)[..., :H, :W]
    o = jnp.transpose(o, (0, 5, 1, 2, 6, 3, 7, 4))
    return o.reshape(n, cout, D * s, H * s, W * s).astype(jnp.float32)


def forward_reference(x, raw, kernel_size, stride):
    """Pure-JAX f32 reference: zero-insertion upsample + im2col (independent of
    the phase decomposition used by the Pallas path)."""
    k, s = kernel_size, stride
    n, cin, D, H, W = x.shape
    cout = raw["b_sc"].shape[0]
    Do, Ho, Wo = D * s, H * s, W * s
    p = (k - 1) // 2

    # inverse GDN
    xl = jnp.transpose(x, (0, 2, 3, 4, 1)).reshape(-1, cin)
    norm = (xl * xl) @ raw["gdn_gamma"].T + raw["gdn_beta"][None, :]
    y = xl * jnp.sqrt(norm)
    y5 = y.reshape(n, D, H, W, cin)

    # shortcut ConvTranspose3d(k=1, stride=s, output_padding=s-1)
    sc_core = y @ raw["w_sc_t"].reshape(cin, cout) + raw["b_sc"][None, :]
    shortcut = jnp.broadcast_to(raw["b_sc"], (n, Do, Ho, Wo, cout))
    shortcut = shortcut.at[:, ::s, ::s, ::s, :].set(sc_core.reshape(n, D, H, W, cout))

    # conv0 ConvTranspose3d(k, stride=s, pad=(k-1)//2, output_padding=s-1)
    w0_flip = raw["w0_t"][:, :, ::-1, ::-1, ::-1]
    w0_mat = jnp.transpose(w0_flip, (2, 3, 4, 0, 1)).reshape(k * k * k * cin, cout)
    z = jnp.zeros((n, (D - 1) * s + 1, (H - 1) * s + 1, (W - 1) * s + 1, cin), x.dtype)
    z = z.at[:, ::s, ::s, ::s, :].set(y5)
    lpad, rpad = k - 1 - p, p + s - 1
    zp = jnp.pad(z, ((0, 0), (lpad, rpad), (lpad, rpad), (lpad, rpad), (0, 0)))
    patches = jnp.stack([zp[:, a:a + Do, b:b + Ho, c:c + Wo, :]
                         for a in range(k) for b in range(k) for c in range(k)], axis=4)
    patches = patches.reshape(-1, k * k * k * cin)

    h = patches @ w0_mat + raw["b0"][None, :]
    h = _gelu_tanh(h @ raw["w1_t"].reshape(cout, -1) + raw["b1"][None, :])
    out = h @ raw["w2_t"].reshape(-1, cout) + raw["b2"][None, :] + shortcut.reshape(-1, cout)
    return jnp.transpose(out.reshape(n, Do, Ho, Wo, cout), (0, 4, 1, 2, 3))


# ----------------------------------------------------------------------------
if __name__ == "__main__":
    key = jax.random.PRNGKey(0)
    N, C_IN, C_OUT = 2, 4, 4
    D = H = W = 8
    KSIZE, STRIDE = 3, 2

    kx, kp = jax.random.split(key)
    x = jax.random.normal(kx, (N, C_IN, D, H, W), jnp.float32)
    raw = init_raw_params(kp, C_IN, C_OUT, KSIZE)
    prep = prepare_pallas_params(raw, KSIZE, STRIDE)

    run = jax.jit(lambda xx: forward_pallas(xx, prep, KSIZE, STRIDE))
    out = jax.block_until_ready(run(x))

    ref = jax.block_until_ready(forward_reference(x, raw, KSIZE, STRIDE))

    assert out.shape == (N, C_OUT, D * STRIDE, H * STRIDE, W * STRIDE), out.shape
    # bf16 weight/activation streaming (f32 accumulation) vs f32 reference.
    np.testing.assert_allclose(np.asarray(out), np.asarray(ref),
                               rtol=2e-2, atol=2e-2)

    print("KERNEL_OK")
</pallas_src>

<mosaic_0001>
module attributes {stable_mosaic.version = 11 : i64} {
  func.func @kernel(%arg0: i32, %arg1: i32, %arg2: memref<1x1x4x81xbf16, #tpu.memory_space<vmem>>, %arg3: memref<1x1x4x81xbf16, #tpu.memory_space<vmem>>, %arg4: memref<4x4xbf16, #tpu.memory_space<vmem>>, %arg5: memref<4x1xf32, #tpu.memory_space<vmem>>, %arg6: memref<27x4x4xbf16, #tpu.memory_space<vmem>>, %arg7: memref<4x1xf32, #tpu.memory_space<vmem>>, %arg8: memref<4x4xbf16, #tpu.memory_space<vmem>>, %arg9: memref<16x4xbf16, #tpu.memory_space<vmem>>, %arg10: memref<16x1xf32, #tpu.memory_space<vmem>>, %arg11: memref<4x16xbf16, #tpu.memory_space<vmem>>, %arg12: memref<4x1xf32, #tpu.memory_space<vmem>>, %arg13: memref<1x1x32x81xbf16, #tpu.memory_space<vmem>>, %arg14: memref<2x4x91xbf16, #tpu.memory_space<vmem>>) attributes {dimension_semantics = [#tpu.dimension_semantics<parallel>, #tpu.dimension_semantics<parallel>], iteration_bounds = array<i64: 2, 8>, scalar_prefetch = 0 : i64, scratch_operands = 1 : i64, tpu.core_type = #tpu.core_type<tc>, window_params = [{transform_indices = @transform_0, window_bounds = array<i64: 1, 1, 4, 81>}, {transform_indices = @transform_1, window_bounds = array<i64: 1, 1, 4, 81>}, {pipeline_mode = #tpu.pipeline_mode<synchronous>, transform_indices = @transform_2, window_bounds = array<i64: 4, 4>}, {pipeline_mode = #tpu.pipeline_mode<synchronous>, transform_indices = @transform_3, window_bounds = array<i64: 4, 1>}, {pipeline_mode = #tpu.pipeline_mode<synchronous>, transform_indices = @transform_4, window_bounds = array<i64: 27, 4, 4>}, {pipeline_mode = #tpu.pipeline_mode<synchronous>, transform_indices = @transform_5, window_bounds = array<i64: 4, 1>}, {pipeline_mode = #tpu.pipeline_mode<synchronous>, transform_indices = @transform_6, window_bounds = array<i64: 4, 4>}, {pipeline_mode = #tpu.pipeline_mode<synchronous>, transform_indices = @transform_7, window_bounds = array<i64: 16, 4>}, {pipeline_mode = #tpu.pipeline_mode<synchronous>, transform_indices = @transform_8, window_bounds = array<i64: 16, 1>}, {pipeline_mode = #tpu.pipeline_mode<synchronous>, transform_indices = @transform_9, window_bounds = array<i64: 4, 16>}, {pipeline_mode = #tpu.pipeline_mode<synchronous>, transform_indices = @transform_10, window_bounds = array<i64: 4, 1>}, {transform_indices = @transform_11, window_bounds = array<i64: 1, 1, 32, 81>}]} {
    %c0 = arith.constant 0 : index
    %c0_0 = arith.constant 0 : index
    %0 = vector.load %arg4[%c0, %c0_0] : memref<4x4xbf16, #tpu.memory_space<vmem>>, vector<4x4xbf16>
    %c0_1 = arith.constant 0 : index
    %c0_2 = arith.constant 0 : index
    %1 = vector.load %arg5[%c0_1, %c0_2] : memref<4x1xf32, #tpu.memory_space<vmem>>, vector<4x1xf32>
    %c0_3 = arith.constant 0 : index
    %c0_4 = arith.constant 0 : index
    %c0_5 = arith.constant 0 : index
    %c0_6 = arith.constant 0 : index
    %2 = vector.load %arg2[%c0_3, %c0_4, %c0_5, %c0_6] : memref<1x1x4x81xbf16, #tpu.memory_space<vmem>>, vector<1x1x4x81xbf16>
    %3 = vector.shape_cast %2 : vector<1x1x4x81xbf16> to vector<4x81xbf16>
    %4 = arith.mulf %3, %3 : vector<4x81xbf16>
    %cst = arith.constant dense<0.000000e+00> : vector<4x81xf32>
    %5 = tpu.matmul %0, %4, %cst {dimension_numbers = #tpu.dot_dimension_numbers<[1], [0], [0], [1], [0, 0, 1, 1], [], []>} : vector<4x4xbf16>, vector<4x81xbf16>, vector<4x81xf32> -> vector<4x81xf32>
    %6 = vector.broadcast %1 : vector<4x1xf32> to vector<4x81xf32>
    %7 = arith.addf %5, %6 : vector<4x81xf32>
    %8 = arith.extf %3 : vector<4x81xbf16> to vector<4x81xf32>
    %9 = math.sqrt %7 : vector<4x81xf32>
    %10 = arith.mulf %8, %9 : vector<4x81xf32>
    %11 = arith.truncf %10 : vector<4x81xf32> to vector<4x81xbf16>
    %c0_7 = arith.constant 0 : index
    %c0_8 = arith.constant 0 : index
    %c0_9 = arith.constant 0 : index
    %12 = vector.load %arg14[%c0_7, %c0_8, %c0_9] : memref<2x4x91xbf16, #tpu.memory_space<vmem>>, vector<1x4x81xbf16>
    %13 = vector.shape_cast %12 : vector<1x4x81xbf16> to vector<4x81xbf16>
    %14 = vector.shape_cast %11 : vector<4x81xbf16> to vector<1x4x81xbf16>
    tpu.vector_store %arg14[%c0_7, %c0_8, %c0_9], %14 {strides = array<i32>} : memref<2x4x91xbf16, #tpu.memory_space<vmem>>, vector<1x4x81xbf16>,
    %cst_10 = arith.constant 0.000000e+00 : bf16
    %15 = vector.broadcast %cst_10 : bf16 to vector<4x10xbf16>
    %c0_11 = arith.constant 0 : index
    %c0_12 = arith.constant 0 : index
    %c81 = arith.constant 81 : index
    %16 = vector.load %arg14[%c0_11, %c0_12, %c81] : memref<2x4x91xbf16, #tpu.memory_space<vmem>>, vector<1x4x10xbf16>
    %17 = vector.shape_cast %16 : vector<1x4x10xbf16> to vector<4x10xbf16>
    %18 = vector.shape_cast %15 : vector<4x10xbf16> to vector<1x4x10xbf16>
    tpu.vector_store %arg14[%c0_11, %c0_12, %c81], %18 {strides = array<i32>} : memref<2x4x91xbf16, #tpu.memory_space<vmem>>, vector<1x4x10xbf16>,
    %c0_13 = arith.constant 0 : index
    %c0_14 = arith.constant 0 : index
    %c0_15 = arith.constant 0 : index
    %c0_16 = arith.constant 0 : index
    %19 = vector.load %arg3[%c0_13, %c0_14, %c0_15, %c0_16] : memref<1x1x4x81xbf16, #tpu.memory_space<vmem>>, vector<1x1x4x81xbf16>
    %20 = vector.shape_cast %19 : vector<1x1x4x81xbf16> to vector<4x81xbf16>
    %21 = arith.mulf %20, %20 : vector<4x81xbf16>
    %cst_17 = arith.constant dense<0.000000e+00> : vector<4x81xf32>
    %22 = tpu.matmul %0, %21, %cst_17 {dimension_numbers = #tpu.dot_dimension_numbers<[1], [0], [0], [1], [0, 0, 1, 1], [], []>} : vector<4x4xbf16>, vector<4x81xbf16>, vector<4x81xf32> -> vector<4x81xf32>
    %23 = vector.broadcast %1 : vector<4x1xf32> to vector<4x81xf32>
    %24 = arith.addf %22, %23 : vector<4x81xf32>
    %25 = arith.extf %20 : vector<4x81xbf16> to vector<4x81xf32>
    %26 = math.sqrt %24 : vector<4x81xf32>
    %27 = arith.mulf %25, %26 : vector<4x81xf32>
    %28 = arith.truncf %27 : vector<4x81xf32> to vector<4x81xbf16>
    %c1 = arith.constant 1 : index
    %c0_18 = arith.constant 0 : index
    %c0_19 = arith.constant 0 : index
    %29 = vector.load %arg14[%c1, %c0_18, %c0_19] : memref<2x4x91xbf16, #tpu.memory_space<vmem>>, vector<1x4x81xbf16>
    %30 = vector.shape_cast %29 : vector<1x4x81xbf16> to vector<4x81xbf16>
    %31 = vector.shape_cast %28 : vector<4x81xbf16> to vector<1x4x81xbf16>
    tpu.vector_store %arg14[%c1, %c0_18, %c0_19], %31 {strides = array<i32>} : memref<2x4x91xbf16, #tpu.memory_space<vmem>>, vector<1x4x81xbf16>,
    %cst_20 = arith.constant 0.000000e+00 : bf16
    %32 = vector.broadcast %cst_20 : bf16 to vector<4x10xbf16>
    %c1_21 = arith.constant 1 : index
    %c0_22 = arith.constant 0 : index
    %c81_23 = arith.constant 81 : index
    %33 = vector.load %arg14[%c1_21, %c0_22, %c81_23] : memref<2x4x91xbf16, #tpu.memory_space<vmem>>, vector<1x4x10xbf16>
    %34 = vector.shape_cast %33 : vector<1x4x10xbf16> to vector<4x10xbf16>
    %35 = vector.shape_cast %32 : vector<4x10xbf16> to vector<1x4x10xbf16>
    tpu.vector_store %arg14[%c1_21, %c0_22, %c81_23], %35 {strides = array<i32>} : memref<2x4x91xbf16, #tpu.memory_space<vmem>>, vector<1x4x10xbf16>,
    %c0_24 = arith.constant 0 : index
    %c0_25 = arith.constant 0 : index
    %c0_26 = arith.constant 0 : index
    %36 = vector.load %arg14[%c0_24, %c0_25, %c0_26] : memref<2x4x91xbf16, #tpu.memory_space<vmem>>, vector<1x4x81xbf16>
    %37 = vector.shape_cast %36 : vector<1x4x81xbf16> to vector<4x81xbf16>
    %c0_27 = arith.constant 0 : index
    %c0_28 = arith.constant 0 : index
    %c1_29 = arith.constant 1 : index
    %38 = vector.load %arg14[%c0_27, %c0_28, %c1_29] : memref<2x4x91xbf16, #tpu.memory_space<vmem>>, vector<1x4x81xbf16>
    %39 = vector.shape_cast %38 : vector<1x4x81xbf16> to vector<4x81xbf16>
    %c0_30 = arith.constant 0 : index
    %c0_31 = arith.constant 0 : index
    %c9 = arith.constant 9 : index
    %40 = vector.load %arg14[%c0_30, %c0_31, %c9] : memref<2x4x91xbf16, #tpu.memory_space<vmem>>, vector<1x4x81xbf16>
    %41 = vector.shape_cast %40 : vector<1x4x81xbf16> to vector<4x81xbf16>
    %c0_32 = arith.constant 0 : index
    %c0_33 = arith.constant 0 : index
    %c10 = arith.constant 10 : index
    %42 = vector.load %arg14[%c0_32, %c0_33, %c10] : memref<2x4x91xbf16, #tpu.memory_space<vmem>>, vector<1x4x81xbf16>
    %43 = vector.shape_cast %42 : vector<1x4x81xbf16> to vector<4x81xbf16>
    %c1_34 = arith.constant 1 : index
    %c0_35 = arith.constant 0 : index
    %c0_36 = arith.constant 0 : index
    %44 = vector.load %arg14[%c1_34, %c0_35, %c0_36] : memref<2x4x91xbf16, #tpu.memory_space<vmem>>, vector<1x4x81xbf16>
    %45 = vector.shape_cast %44 : vector<1x4x81xbf16> to vector<4x81xbf16>
    %c1_37 = arith.constant 1 : index
    %c0_38 = arith.constant 0 : index
    %c1_39 = arith.constant 1 : index
    %46 = vector.load %arg14[%c1_37, %c0_38, %c1_39] : memref<2x4x91xbf16, #tpu.memory_space<vmem>>, vector<1x4x81xbf16>
    %47 = vector.shape_cast %46 : vector<1x4x81xbf16> to vector<4x81xbf16>
    %c1_40 = arith.constant 1 : index
    %c0_41 = arith.constant 0 : index
    %c9_42 = arith.constant 9 : index
    %48 = vector.load %arg14[%c1_40, %c0_41, %c9_42] : memref<2x4x91xbf16, #tpu.memory_space<vmem>>, vector<1x4x81xbf16>
    %49 = vector.shape_cast %48 : vector<1x4x81xbf16> to vector<4x81xbf16>
    %c1_43 = arith.constant 1 : index
    %c0_44 = arith.constant 0 : index
    %c10_45 = arith.constant 10 : index
    %50 = vector.load %arg14[%c1_43, %c0_44, %c10_45] : memref<2x4x91xbf16, #tpu.memory_space<vmem>>, vector<1x4x81xbf16>
    %51 = vector.shape_cast %50 : vector<1x4x81xbf16> to vector<4x81xbf16>
    %c0_46 = arith.constant 0 : index
    %c0_47 = arith.constant 0 : index
    %52 = vector.load %arg7[%c0_46, %c0_47] : memref<4x1xf32, #tpu.memory_space<vmem>>, vector<4x1xf32>
    %c0_48 = arith.constant 0 : index
    %c0_49 = arith.constant 0 : index
    %53 = vector.load %arg10[%c0_48, %c0_49] : memref<16x1xf32, #tpu.memory_space<vmem>>, vector<16x1xf32>
    %c0_50 = arith.constant 0 : index
    %c0_51 = arith.constant 0 : index
    %54 = vector.load %arg12[%c0_50, %c0_51] : memref<4x1xf32, #tpu.memory_space<vmem>>, vector<4x1xf32>
    %c0_52 = arith.constant 0 : index
    %c0_53 = arith.constant 0 : index
    %55 = vector.load %arg9[%c0_52, %c0_53] : memref<16x4xbf16, #tpu.memory_space<vmem>>, vector<16x4xbf16>
    %c0_54 = arith.constant 0 : index
    %c0_55 = arith.constant 0 : index
    %56 = vector.load %arg11[%c0_54, %c0_55] : memref<4x16xbf16, #tpu.memory_space<vmem>>, vector<4x16xbf16>
    %c0_56 = arith.constant 0 : index
    %c0_57 = arith.constant 0 : index
    %c0_58 = arith.constant 0 : index
    %57 = vector.load %arg6[%c0_56, %c0_57, %c0_58] : memref<27x4x4xbf16, #tpu.memory_space<vmem>>, vector<1x4x4xbf16>
    %58 = vector.shape_cast %57 : vector<1x4x4xbf16> to vector<4x4xbf16>
    %cst_59 = arith.constant dense<0.000000e+00> : vector<4x81xf32>
    %59 = tpu.matmul %58, %37, %cst_59 {dimension_numbers = #tpu.dot_dimension_numbers<[1], [0], [0], [1], [0, 0, 1, 1], [], []>} : vector<4x4xbf16>, vector<4x81xbf16>, vector<4x81xf32> -> vector<4x81xf32>
    %60 = vector.broadcast %52 : vector<4x1xf32> to vector<4x81xf32>
    %61 = arith.addf %59, %60 : vector<4x81xf32>
    %62 = arith.truncf %61 : vector<4x81xf32> to vector<4x81xbf16>
    %cst_60 = arith.constant dense<0.000000e+00> : vector<16x81xf32>
    %63 = tpu.matmul %55, %62, %cst_60 {dimension_numbers = #tpu.dot_dimension_numbers<[1], [0], [0], [1], [0, 0, 1, 1], [], []>} : vector<16x4xbf16>, vector<4x81xbf16>, vector<16x81xf32> -> vector<16x81xf32>
    %64 = vector.broadcast %53 : vector<16x1xf32> to vector<16x81xf32>
    %65 = arith.addf %63, %64 : vector<16x81xf32>
    %66 = arith.truncf %65 : vector<16x81xf32> to vector<16x81xbf16>
    %cst_61 = arith.constant 5.000000e-01 : bf16
    %67 = vector.broadcast %cst_61 : bf16 to vector<16x81xbf16>
    %68 = arith.mulf %67, %66 : vector<16x81xbf16>
    %69 = arith.mulf %66, %66 : vector<16x81xbf16>
    %70 = arith.mulf %69, %66 : vector<16x81xbf16>
    %cst_62 = arith.constant 4.467770e-02 : bf16
    %71 = vector.broadcast %cst_62 : bf16 to vector<16x81xbf16>
    %72 = arith.mulf %71, %70 : vector<16x81xbf16>
    %73 = arith.addf %66, %72 : vector<16x81xbf16>
    %cst_63 = arith.constant 7.968750e-01 : bf16
    %74 = vector.broadcast %cst_63 : bf16 to vector<16x81xbf16>
    %75 = arith.mulf %74, %73 : vector<16x81xbf16>
    %76 = math.tanh %75 : vector<16x81xbf16>
    %cst_64 = arith.constant 1.000000e+00 : bf16
    %77 = vector.broadcast %cst_64 : bf16 to vector<16x81xbf16>
    %78 = arith.addf %77, %76 : vector<16x81xbf16>
    %79 = arith.mulf %68, %78 : vector<16x81xbf16>
    %cst_65 = arith.constant dense<0.000000e+00> : vector<4x81xf32>
    %80 = tpu.matmul %56, %79, %cst_65 {dimension_numbers = #tpu.dot_dimension_numbers<[1], [0], [0], [1], [0, 0, 1, 1], [], []>} : vector<4x16xbf16>, vector<16x81xbf16>, vector<4x81xf32> -> vector<4x81xf32>
    %81 = vector.broadcast %54 : vector<4x1xf32> to vector<4x81xf32>
    %82 = arith.addf %80, %81 : vector<4x81xf32>
    %c0_66 = arith.constant 0 : index
    %c0_67 = arith.constant 0 : index
    %83 = vector.load %arg8[%c0_66, %c0_67] : memref<4x4xbf16, #tpu.memory_space<vmem>>, vector<4x4xbf16>
    %cst_68 = arith.constant dense<0.000000e+00> : vector<4x81xf32>
    %84 = tpu.matmul %83, %37, %cst_68 {dimension_numbers = #tpu.dot_dimension_numbers<[1], [0], [0], [1], [0, 0, 1, 1], [], []>} : vector<4x4xbf16>, vector<4x81xbf16>, vector<4x81xf32> -> vector<4x81xf32>
    %85 = arith.addf %82, %84 : vector<4x81xf32>
    %86 = arith.truncf %85 : vector<4x81xf32> to vector<4x81xbf16>
    %c0_69 = arith.constant 0 : index
    %c0_70 = arith.constant 0 : index
    %c0_71 = arith.constant 0 : index
    %c0_72 = arith.constant 0 : index
    %87 = vector.load %arg13[%c0_69, %c0_70, %c0_71, %c0_72] : memref<1x1x32x81xbf16, #tpu.memory_space<vmem>>, vector<1x1x4x81xbf16>
    %88 = vector.shape_cast %87 : vector<1x1x4x81xbf16> to vector<4x81xbf16>
    %89 = vector.shape_cast %86 : vector<4x81xbf16> to vector<1x1x4x81xbf16>
    tpu.vector_store %arg13[%c0_69, %c0_70, %c0_71, %c0_72], %89 {strides = array<i32>} : memref<1x1x32x81xbf16, #tpu.memory_space<vmem>>, vector<1x1x4x81xbf16>,
    %c1_73 = arith.constant 1 : index
    %c0_74 = arith.constant 0 : index
    %c0_75 = arith.constant 0 : index
    %90 = vector.load %arg6[%c1_73, %c0_74, %c0_75] : memref<27x4x4xbf16, #tpu.memory_space<vmem>>, vector<1x4x4xbf16>
    %91 = vector.shape_cast %90 : vector<1x4x4xbf16> to vector<4x4xbf16>
    %cst_76 = arith.constant dense<0.000000e+00> : vector<4x81xf32>
    %92 = tpu.matmul %91, %37, %cst_76 {dimension_numbers = #tpu.dot_dimension_numbers<[1], [0], [0], [1], [0, 0, 1, 1], [], []>} : vector<4x4xbf16>, vector<4x81xbf16>, vector<4x81xf32> -> vector<4x81xf32>
    %c2 = arith.constant 2 : index
    %c0_77 = arith.constant 0 : index
    %c0_78 = arith.constant 0 : index
    %93 = vector.load %arg6[%c2, %c0_77, %c0_78] : memref<27x4x4xbf16, #tpu.memory_space<vmem>>, vector<1x4x4xbf16>
    %94 = vector.shape_cast %93 : vector<1x4x4xbf16> to vector<4x4xbf16>
    %cst_79 = arith.constant dense<0.000000e+00> : vector<4x81xf32>
    %95 = tpu.matmul %94, %39, %cst_79 {dimension_numbers = #tpu.dot_dimension_numbers<[1], [0], [0], [1], [0, 0, 1, 1], [], []>} : vector<4x4xbf16>, vector<4x81xbf16>, vector<4x81xf32> -> vector<4x81xf32>
    %96 = arith.addf %92, %95 : vector<4x81xf32>
    %97 = vector.broadcast %52 : vector<4x1xf32> to vector<4x81xf32>
    %98 = arith.addf %96, %97 : vector<4x81xf32>
    %99 = arith.truncf %98 : vector<4x81xf32> to vector<4x81xbf16>
    %cst_80 = arith.constant dense<0.000000e+00> : vector<16x81xf32>
    %100 = tpu.matmul %55, %99, %cst_80 {dimension_numbers = #tpu.dot_dimension_numbers<[1], [0], [0], [1], [0, 0, 1, 1], [], []>} : vector<16x4xbf16>, vector<4x81xbf16>, vector<16x81xf32> -> vector<16x81xf32>
    %101 = vector.broadcast %53 : vector<16x1xf32> to vector<16x81xf32>
    %102 = arith.addf %100, %101 : vector<16x81xf32>
    %103 = arith.truncf %102 : vector<16x81xf32> to vector<16x81xbf16>
    %cst_81 = arith.constant 5.000000e-01 : bf16
    %104 = vector.broadcast %cst_81 : bf16 to vector<16x81xbf16>
    %105 = arith.mulf %104, %103 : vector<16x81xbf16>
    %106 = arith.mulf %103, %103 : vector<16x81xbf16>
    %107 = arith.mulf %106, %103 : vector<16x81xbf16>
    %cst_82 = arith.constant 4.467770e-02 : bf16
    %108 = vector.broadcast %cst_82 : bf16 to vector<16x81xbf16>
    %109 = arith.mulf %108, %107 : vector<16x81xbf16>
    %110 = arith.addf %103, %109 : vector<16x81xbf16>
    %cst_83 = arith.constant 7.968750e-01 : bf16
    %111 = vector.broadcast %cst_83 : bf16 to vector<16x81xbf16>
    %112 = arith.mulf %111, %110 : vector<16x81xbf16>
    %113 = math.tanh %112 : vector<16x81xbf16>
    %cst_84 = arith.constant 1.000000e+00 : bf16
    %114 = vector.broadcast %cst_84 : bf16 to vector<16x81xbf16>
    %115 = arith.addf %114, %113 : vector<16x81xbf16>
    %116 = arith.mulf %105, %115 : vector<16x81xbf16>
    %cst_85 = arith.constant dense<0.000000e+00> : vector<4x81xf32>
    %117 = tpu.matmul %56, %116, %cst_85 {dimension_numbers = #tpu.dot_dimension_numbers<[1], [0], [0], [1], [0, 0, 1, 1], [], []>} : vector<4x16xbf16>, vector<16x81xbf16>, vector<4x81xf32> -> vector<4x81xf32>
    %118 = vector.broadcast %54 : vector<4x1xf32> to vector<4x81xf32>
    %119 = arith.addf %117, %118 : vector<4x81xf32>
    %120 = arith.truncf %119 : vector<4x81xf32> to vector<4x81xbf16>
    %c0_86 = arith.constant 0 : index
    %c0_87 = arith.constant 0 : index
    %c4 = arith.constant 4 : index
    %c0_88 = arith.constant 0 : index
    %121 = vector.load %arg13[%c0_86, %c0_87, %c4, %c0_88] : memref<1x1x32x81xbf16, #tpu.memory_space<vmem>>, vector<1x1x4x81xbf16>
    %122 = vector.shape_cast %121 : vector<1x1x4x81xbf16> to vector<4x81xbf16>
    %123 = vector.shape_cast %120 : vector<4x81xbf16> to vector<1x1x4x81xbf16>
    tpu.vector_store %arg13[%c0_86, %c0_87, %c4, %c0_88], %123 {strides = array<i32>} : memref<1x1x32x81xbf16, #tpu.memory_space<vmem>>, vector<1x1x4x81xbf16>,
    %c3 = arith.constant 3 : index
    %c0_89 = arith.constant 0 : index
    %c0_90 = arith.constant 0 : index
    %124 = vector.load %arg6[%c3, %c0_89, %c0_90] : memref<27x4x4xbf16, #tpu.memory_space<vmem>>, vector<1x4x4xbf16>
    %125 = vector.shape_cast %124 : vector<1x4x4xbf16> to vector<4x4xbf16>
    %cst_91 = arith.constant dense<0.000000e+00> : vector<4x81xf32>
    %126 = tpu.matmul %125, %37, %cst_91 {dimension_numbers = #tpu.dot_dimension_numbers<[1], [0], [0], [1], [0, 0, 1, 1], [], []>} : vector<4x4xbf16>, vector<4x81xbf16>, vector<4x81xf32> -> vector<4x81xf32>
    %c4_92 = arith.constant 4 : index
    %c0_93 = arith.constant 0 : index
    %c0_94 = arith.constant 0 : index
    %127 = vector.load %arg6[%c4_92, %c0_93, %c0_94] : memref<27x4x4xbf16, #tpu.memory_space<vmem>>, vector<1x4x4xbf16>
    %128 = vector.shape_cast %127 : vector<1x4x4xbf16> to vector<4x4xbf16>
    %cst_95 = arith.constant dense<0.000000e+00> : vector<4x81xf32>
    %129 = tpu.matmul %128, %41, %cst_95 {dimension_numbers = #tpu.dot_dimension_numbers<[1], [0], [0], [1], [0, 0, 1, 1], [], []>} : vector<4x4xbf16>, vector<4x81xbf16>, vector<4x81xf32> -> vector<4x81xf32>
    %130 = arith.addf %126, %129 : vector<4x81xf32>
    %131 = vector.broadcast %52 : vector<4x1xf32> to vector<4x81xf32>
    %132 = arith.addf %130, %131 : vector<4x81xf32>
    %133 = arith.truncf %132 : vector<4x81xf32> to vector<4x81xbf16>
    %cst_96 = arith.constant dense<0.000000e+00> : vector<16x81xf32>
    %134 = tpu.matmul %55, %133, %cst_96 {dimension_numbers = #tpu.dot_dimension_numbers<[1], [0], [0], [1], [0, 0, 1, 1], [], []>} : vector<16x4xbf16>, vector<4x81xbf16>, vector<16x81xf32> -> vector<16x81xf32>
    %135 = vector.broadcast %53 : vector<16x1xf32> to vector<16x81xf32>
    %136 = arith.addf %134, %135 : vector<16x81xf32>
    %137 = arith.truncf %136 : vector<16x81xf32> to vector<16x81xbf16>
    %cst_97 = arith.constant 5.000000e-01 : bf16
    %138 = vector.broadcast %cst_97 : bf16 to vector<16x81xbf16>
    %139 = arith.mulf %138, %137 : vector<16x81xbf16>
    %140 = arith.mulf %137, %137 : vector<16x81xbf16>
    %141 = arith.mulf %140, %137 : vector<16x81xbf16>
    %cst_98 = arith.constant 4.467770e-02 : bf16
    %142 = vector.broadcast %cst_98 : bf16 to vector<16x81xbf16>
    %143 = arith.mulf %142, %141 : vector<16x81xbf16>
    %144 = arith.addf %137, %143 : vector<16x81xbf16>
    %cst_99 = arith.constant 7.968750e-01 : bf16
    %145 = vector.broadcast %cst_99 : bf16 to vector<16x81xbf16>
    %146 = arith.mulf %145, %144 : vector<16x81xbf16>
    %147 = math.tanh %146 : vector<16x81xbf16>
    %cst_100 = arith.constant 1.000000e+00 : bf16
    %148 = vector.broadcast %cst_100 : bf16 to vector<16x81xbf16>
    %149 = arith.addf %148, %147 : vector<16x81xbf16>
    %150 = arith.mulf %139, %149 : vector<16x81xbf16>
    %cst_101 = arith.constant dense<0.000000e+00> : vector<4x81xf32>
    %151 = tpu.matmul %56, %150, %cst_101 {dimension_numbers = #tpu.dot_dimension_numbers<[1], [0], [0], [1], [0, 0, 1, 1], [], []>} : vector<4x16xbf16>, vector<16x81xbf16>, vector<4x81xf32> -> vector<4x81xf32>
    %152 = vector.broadcast %54 : vector<4x1xf32> to vector<4x81xf32>
    %153 = arith.addf %151, %152 : vector<4x81xf32>
    %154 = arith.truncf %153 : vector<4x81xf32> to vector<4x81xbf16>
    %c0_102 = arith.constant 0 : index
    %c0_103 = arith.constant 0 : index
    %c8 = arith.constant 8 : index
    %c0_104 = arith.constant 0 : index
    %155 = vector.load %arg13[%c0_102, %c0_103, %c8, %c0_104] : memref<1x1x32x81xbf16, #tpu.memory_space<vmem>>, vector<1x1x4x81xbf16>
    %156 = vector.shape_cast %155 : vector<1x1x4x81xbf16> to vector<4x81xbf16>
    %157 = vector.shape_cast %154 : vector<4x81xbf16> to vector<1x1x4x81xbf16>
    tpu.vector_store %arg13[%c0_102, %c0_103, %c8, %c0_104], %157 {strides = array<i32>} : memref<1x1x32x81xbf16, #tpu.memory_space<vmem>>, vector<1x1x4x81xbf16>,
    %c5 = arith.constant 5 : index
    %c0_105 = arith.constant 0 : index
    %c0_106 = arith.constant 0 : index
    %158 = vector.load %arg6[%c5, %c0_105, %c0_106] : memref<27x4x4xbf16, #tpu.memory_space<vmem>>, vector<1x4x4xbf16>
    %159 = vector.shape_cast %158 : vector<1x4x4xbf16> to vector<4x4xbf16>
    %cst_107 = arith.constant dense<0.000000e+00> : vector<4x81xf32>
    %160 = tpu.matmul %159, %37, %cst_107 {dimension_numbers = #tpu.dot_dimension_numbers<[1], [0], [0], [1], [0, 0, 1, 1], [], []>} : vector<4x4xbf16>, vector<4x81xbf16>, vector<4x81xf32> -> vector<4x81xf32>
    %c6 = arith.constant 6 : index
    %c0_108 = arith.constant 0 : index
    %c0_109 = arith.constant 0 : index
    %161 = vector.load %arg6[%c6, %c0_108, %c0_109] : memref<27x4x4xbf16, #tpu.memory_space<vmem>>, vector<1x4x4xbf16>
    %162 = vector.shape_cast %161 : vector<1x4x4xbf16> to vector<4x4xbf16>
    %cst_110 = arith.constant dense<0.000000e+00> : vector<4x81xf32>
    %163 = tpu.matmul %162, %39, %cst_110 {dimension_numbers = #tpu.dot_dimension_numbers<[1], [0], [0], [1], [0, 0, 1, 1], [], []>} : vector<4x4xbf16>, vector<4x81xbf16>, vector<4x81xf32> -> vector<4x81xf32>
    %164 = arith.addf %160, %163 : vector<4x81xf32>
    %c7 = arith.constant 7 : index
    %c0_111 = arith.constant 0 : index
    %c0_112 = arith.constant 0 : index
    %165 = vector.load %arg6[%c7, %c0_111, %c0_112] : memref<27x4x4xbf16, #tpu.memory_space<vmem>>, vector<1x4x4xbf16>
    %166 = vector.shape_cast %165 : vector<1x4x4xbf16> to vector<4x4xbf16>
    %cst_113 = arith.constant dense<0.000000e+00> : vector<4x81xf32>
    %167 = tpu.matmul %166, %41, %cst_113 {dimension_numbers = #tpu.dot_dimension_numbers<[1], [0], [0], [1], [0, 0, 1, 1], [], []>} : vector<4x4xbf16>, vector<4x81xbf16>, vector<4x81xf32> -> vector<4x81xf32>
    %168 = arith.addf %164, %167 : vector<4x81xf32>
    %c8_114 = arith.constant 8 : index
    %c0_115 = arith.constant 0 : index
    %c0_116 = arith.constant 0 : index
    %169 = vector.load %arg6[%c8_114, %c0_115, %c0_116] : memref<27x4x4xbf16, #tpu.memory_space<vmem>>, vector<1x4x4xbf16>
    %170 = vector.shape_cast %169 : vector<1x4x4xbf16> to vector<4x4xbf16>
    %cst_117 = arith.constant dense<0.000000e+00> : vector<4x81xf32>
    %171 = tpu.matmul %170, %43, %cst_117 {dimension_numbers = #tpu.dot_dimension_numbers<[1], [0], [0], [1], [0, 0, 1, 1], [], []>} : vector<4x4xbf16>, vector<4x81xbf16>, vector<4x81xf32> -> vector<4x81xf32>
    %172 = arith.addf %168, %171 : vector<4x81xf32>
    %173 = vector.broadcast %52 : vector<4x1xf32> to vector<4x81xf32>
    %174 = arith.addf %172, %173 : vector<4x81xf32>
    %175 = arith.truncf %174 : vector<4x81xf32> to vector<4x81xbf16>
    %cst_118 = arith.constant dense<0.000000e+00> : vector<16x81xf32>
    %176 = tpu.matmul %55, %175, %cst_118 {dimension_numbers = #tpu.dot_dimension_numbers<[1], [0], [0], [1], [0, 0, 1, 1], [], []>} : vector<16x4xbf16>, vector<4x81xbf16>, vector<16x81xf32> -> vector<16x81xf32>
    %177 = vector.broadcast %53 : vector<16x1xf32> to vector<16x81xf32>
    %178 = arith.addf %176, %177 : vector<16x81xf32>
    %179 = arith.truncf %178 : vector<16x81xf32> to vector<16x81xbf16>
    %cst_119 = arith.constant 5.000000e-01 : bf16
    %180 = vector.broadcast %cst_119 : bf16 to vector<16x81xbf16>
    %181 = arith.mulf %180, %179 : vector<16x81xbf16>
    %182 = arith.mulf %179, %179 : vector<16x81xbf16>
    %183 = arith.mulf %182, %179 : vector<16x81xbf16>
    %cst_120 = arith.constant 4.467770e-02 : bf16
    %184 = vector.broadcast %cst_120 : bf16 to vector<16x81xbf16>
    %185 = arith.mulf %184, %183 : vector<16x81xbf16>
    %186 = arith.addf %179, %185 : vector<16x81xbf16>
    %cst_121 = arith.constant 7.968750e-01 : bf16
    %187 = vector.broadcast %cst_121 : bf16 to vector<16x81xbf16>
    %188 = arith.mulf %187, %186 : vector<16x81xbf16>
    %189 = math.tanh %188 : vector<16x81xbf16>
    %cst_122 = arith.constant 1.000000e+00 : bf16
    %190 = vector.broadcast %cst_122 : bf16 to vector<16x81xbf16>
    %191 = arith.addf %190, %189 : vector<16x81xbf16>
    %192 = arith.mulf %181, %191 : vector<16x81xbf16>
    %cst_123 = arith.constant dense<0.000000e+00> : vector<4x81xf32>
    %193 = tpu.matmul %56, %192, %cst_123 {dimension_numbers = #tpu.dot_dimension_numbers<[1], [0], [0], [1], [0, 0, 1, 1], [], []>} : vector<4x16xbf16>, vector<16x81xbf16>, vector<4x81xf32> -> vector<4x81xf32>
    %194 = vector.broadcast %54 : vector<4x1xf32> to vector<4x81xf32>
    %195 = arith.addf %193, %194 : vector<4x81xf32>
    %196 = arith.truncf %195 : vector<4x81xf32> to vector<4x81xbf16>
    %c0_124 = arith.constant 0 : index
    %c0_125 = arith.constant 0 : index
    %c12 = arith.constant 12 : index
    %c0_126 = arith.constant 0 : index
    %197 = vector.load %arg13[%c0_124, %c0_125, %c12, %c0_126] : memref<1x1x32x81xbf16, #tpu.memory_space<vmem>>, vector<1x1x4x81xbf16>
    %198 = vector.shape_cast %197 : vector<1x1x4x81xbf16> to vector<4x81xbf16>
    %199 = vector.shape_cast %196 : vector<4x81xbf16> to vector<1x1x4x81xbf16>
    tpu.vector_store %arg13[%c0_124, %c0_125, %c12, %c0_126], %199 {strides = array<i32>} : memref<1x1x32x81xbf16, #tpu.memory_space<vmem>>, vector<1x1x4x81xbf16>,
    %c9_127 = arith.constant 9 : index
    %c0_128 = arith.constant 0 : index
    %c0_129 = arith.constant 0 : index
    %200 = vector.load %arg6[%c9_127, %c0_128, %c0_129] : memref<27x4x4xbf16, #tpu.memory_space<vmem>>, vector<1x4x4xbf16>
    %201 = vector.shape_cast %200 : vector<1x4x4xbf16> to vector<4x4xbf16>
    %cst_130 = arith.constant dense<0.000000e+00> : vector<4x81xf32>
    %202 = tpu.matmul %201, %37, %cst_130 {dimension_numbers = #tpu.dot_dimension_numbers<[1], [0], [0], [1], [0, 0, 1, 1], [], []>} : vector<4x4xbf16>, vector<4x81xbf16>, vector<4x81xf32> -> vector<4x81xf32>
    %c10_131 = arith.constant 10 : index
    %c0_132 = arith.constant 0 : index
    %c0_133 = arith.constant 0 : index
    %203 = vector.load %arg6[%c10_131, %c0_132, %c0_133] : memref<27x4x4xbf16, #tpu.memory_space<vmem>>, vector<1x4x4xbf16>
    %204 = vector.shape_cast %203 : vector<1x4x4xbf16> to vector<4x4xbf16>
    %cst_134 = arith.constant dense<0.000000e+00> : vector<4x81xf32>
    %205 = tpu.matmul %204, %45, %cst_134 {dimension_numbers = #tpu.dot_dimension_numbers<[1], [0], [0], [1], [0, 0, 1, 1], [], []>} : vector<4x4xbf16>, vector<4x81xbf16>, vector<4x81xf32> -> vector<4x81xf32>
    %206 = arith.addf %202, %205 : vector<4x81xf32>
    %207 = vector.broadcast %52 : vector<4x1xf32> to vector<4x81xf32>
    %208 = arith.addf %206, %207 : vector<4x81xf32>
    %209 = arith.truncf %208 : vector<4x81xf32> to vector<4x81xbf16>
    %cst_135 = arith.constant dense<0.000000e+00> : vector<16x81xf32>
    %210 = tpu.matmul %55, %209, %cst_135 {dimension_numbers = #tpu.dot_dimension_numbers<[1], [0], [0], [1], [0, 0, 1, 1], [], []>} : vector<16x4xbf16>, vector<4x81xbf16>, vector<16x81xf32> -> vector<16x81xf32>
    %211 = vector.broadcast %53 : vector<16x1xf32> to vector<16x81xf32>
    %212 = arith.addf %210, %211 : vector<16x81xf32>
    %213 = arith.truncf %212 : vector<16x81xf32> to vector<16x81xbf16>
    %cst_136 = arith.constant 5.000000e-01 : bf16
    %214 = vector.broadcast %cst_136 : bf16 to vector<16x81xbf16>
    %215 = arith.mulf %214, %213 : vector<16x81xbf16>
    %216 = arith.mulf %213, %213 : vector<16x81xbf16>
    %217 = arith.mulf %216, %213 : vector<16x81xbf16>
    %cst_137 = arith.constant 4.467770e-02 : bf16
    %218 = vector.broadcast %cst_137 : bf16 to vector<16x81xbf16>
    %219 = arith.mulf %218, %217 : vector<16x81xbf16>
    %220 = arith.addf %213, %219 : vector<16x81xbf16>
    %cst_138 = arith.constant 7.968750e-01 : bf16
    %221 = vector.broadcast %cst_138 : bf16 to vector<16x81xbf16>
    %222 = arith.mulf %221, %220 : vector<16x81xbf16>
    %223 = math.tanh %222 : vector<16x81xbf16>
    %cst_139 = arith.constant 1.000000e+00 : bf16
    %224 = vector.broadcast %cst_139 : bf16 to vector<16x81xbf16>
    %225 = arith.addf %224, %223 : vector<16x81xbf16>
    %226 = arith.mulf %215, %225 : vector<16x81xbf16>
    %cst_140 = arith.constant dense<0.000000e+00> : vector<4x81xf32>
    %227 = tpu.matmul %56, %226, %cst_140 {dimension_numbers = #tpu.dot_dimension_numbers<[1], [0], [0], [1], [0, 0, 1, 1], [], []>} : vector<4x16xbf16>, vector<16x81xbf16>, vector<4x81xf32> -> vector<4x81xf32>
    %228 = vector.broadcast %54 : vector<4x1xf32> to vector<4x81xf32>
    %229 = arith.addf %227, %228 : vector<4x81xf32>
    %230 = arith.truncf %229 : vector<4x81xf32> to vector<4x81xbf16>
    %c0_141 = arith.constant 0 : index
    %c0_142 = arith.constant 0 : index
    %c16 = arith.constant 16 : index
    %c0_143 = arith.constant 0 : index
    %231 = vector.load %arg13[%c0_141, %c0_142, %c16, %c0_143] : memref<1x1x32x81xbf16, #tpu.memory_space<vmem>>, vector<1x1x4x81xbf16>
    %232 = vector.shape_cast %231 : vector<1x1x4x81xbf16> to vector<4x81xbf16>
    %233 = vector.shape_cast %230 : vector<4x81xbf16> to vector<1x1x4x81xbf16>
    tpu.vector_store %arg13[%c0_141, %c0_142, %c16, %c0_143], %233 {strides = array<i32>} : memref<1x1x32x81xbf16, #tpu.memory_space<vmem>>, vector<1x1x4x81xbf16>,
    %c11 = arith.constant 11 : index
    %c0_144 = arith.constant 0 : index
    %c0_145 = arith.constant 0 : index
    %234 = vector.load %arg6[%c11, %c0_144, %c0_145] : memref<27x4x4xbf16, #tpu.memory_space<vmem>>, vector<1x4x4xbf16>
    %235 = vector.shape_cast %234 : vector<1x4x4xbf16> to vector<4x4xbf16>
    %cst_146 = arith.constant dense<0.000000e+00> : vector<4x81xf32>
    %236 = tpu.matmul %235, %37, %cst_146 {dimension_numbers = #tpu.dot_dimension_numbers<[1], [0], [0], [1], [0, 0, 1, 1], [], []>} : vector<4x4xbf16>, vector<4x81xbf16>, vector<4x81xf32> -> vector<4x81xf32>
    %c12_147 = arith.constant 12 : index
    %c0_148 = arith.constant 0 : index
    %c0_149 = arith.constant 0 : index
    %237 = vector.load %arg6[%c12_147, %c0_148, %c0_149] : memref<27x4x4xbf16, #tpu.memory_space<vmem>>, vector<1x4x4xbf16>
    %238 = vector.shape_cast %237 : vector<1x4x4xbf16> to vector<4x4xbf16>
    %cst_150 = arith.constant dense<0.000000e+00> : vector<4x81xf32>
    %239 = tpu.matmul %238, %39, %cst_150 {dimension_numbers = #tpu.dot_dimension_numbers<[1], [0], [0], [1], [0, 0, 1, 1], [], []>} : vector<4x4xbf16>, vector<4x81xbf16>, vector<4x81xf32> -> vector<4x81xf32>
    %240 = arith.addf %236, %239 : vector<4x81xf32>
    %c13 = arith.constant 13 : index
    %c0_151 = arith.constant 0 : index
    %c0_152 = arith.constant 0 : index
    %241 = vector.load %arg6[%c13, %c0_151, %c0_152] : memref<27x4x4xbf16, #tpu.memory_space<vmem>>, vector<1x4x4xbf16>
    %242 = vector.shape_cast %241 : vector<1x4x4xbf16> to vector<4x4xbf16>
    %cst_153 = arith.constant dense<0.000000e+00> : vector<4x81xf32>
    %243 = tpu.matmul %242, %45, %cst_153 {dimension_numbers = #tpu.dot_dimension_numbers<[1], [0], [0], [1], [0, 0, 1, 1], [], []>} : vector<4x4xbf16>, vector<4x81xbf16>, vector<4x81xf32> -> vector<4x81xf32>
    %244 = arith.addf %240, %243 : vector<4x81xf32>
    %c14 = arith.constant 14 : index
    %c0_154 = arith.constant 0 : index
    %c0_155 = arith.constant 0 : index
    %245 = vector.load %arg6[%c14, %c0_154, %c0_155] : memref<27x4x4xbf16, #tpu.memory_space<vmem>>, vector<1x4x4xbf16>
    %246 = vector.shape_cast %245 : vector<1x4x4xbf16> to vector<4x4xbf16>
    %cst_156 = arith.constant dense<0.000000e+00> : vector<4x81xf32>
    %247 = tpu.matmul %246, %47, %cst_156 {dimension_numbers = #tpu.dot_dimension_numbers<[1], [0], [0], [1], [0, 0, 1, 1], [], []>} : vector<4x4xbf16>, vector<4x81xbf16>, vector<4x81xf32> -> vector<4x81xf32>
    %248 = arith.addf %244, %247 : vector<4x81xf32>
    %249 = vector.broadcast %52 : vector<4x1xf32> to vector<4x81xf32>
    %250 = arith.addf %248, %249 : vector<4x81xf32>
    %251 = arith.truncf %250 : vector<4x81xf32> to vector<4x81xbf16>
    %cst_157 = arith.constant dense<0.000000e+00> : vector<16x81xf32>
    %252 = tpu.matmul %55, %251, %cst_157 {dimension_numbers = #tpu.dot_dimension_numbers<[1], [0], [0], [1], [0, 0, 1, 1], [], []>} : vector<16x4xbf16>, vector<4x81xbf16>, vector<16x81xf32> -> vector<16x81xf32>
    %253 = vector.broadcast %53 : vector<16x1xf32> to vector<16x81xf32>
    %254 = arith.addf %252, %253 : vector<16x81xf32>
    %255 = arith.truncf %254 : vector<16x81xf32> to vector<16x81xbf16>
    %cst_158 = arith.constant 5.000000e-01 : bf16
    %256 = vector.broadcast %cst_158 : bf16 to vector<16x81xbf16>
    %257 = arith.mulf %256, %255 : vector<16x81xbf16>
    %258 = arith.mulf %255, %255 : vector<16x81xbf16>
    %259 = arith.mulf %258, %255 : vector<16x81xbf16>
    %cst_159 = arith.constant 4.467770e-02 : bf16
    %260 = vector.broadcast %cst_159 : bf16 to vector<16x81xbf16>
    %261 = arith.mulf %260, %259 : vector<16x81xbf16>
    %262 = arith.addf %255, %261 : vector<16x81xbf16>
    %cst_160 = arith.constant 7.968750e-01 : bf16
    %263 = vector.broadcast %cst_160 : bf16 to vector<16x81xbf16>
    %264 = arith.mulf %263, %262 : vector<16x81xbf16>
    %265 = math.tanh %264 : vector<16x81xbf16>
    %cst_161 = arith.constant 1.000000e+00 : bf16
    %266 = vector.broadcast %cst_161 : bf16 to vector<16x81xbf16>
    %267 = arith.addf %266, %265 : vector<16x81xbf16>
    %268 = arith.mulf %257, %267 : vector<16x81xbf16>
    %cst_162 = arith.constant dense<0.000000e+00> : vector<4x81xf32>
    %269 = tpu.matmul %56, %268, %cst_162 {dimension_numbers = #tpu.dot_dimension_numbers<[1], [0], [0], [1], [0, 0, 1, 1], [], []>} : vector<4x16xbf16>, vector<16x81xbf16>, vector<4x81xf32> -> vector<4x81xf32>
    %270 = vector.broadcast %54 : vector<4x1xf32> to vector<4x81xf32>
    %271 = arith.addf %269, %270 : vector<4x81xf32>
    %272 = arith.truncf %271 : vector<4x81xf32> to vector<4x81xbf16>
    %c0_163 = arith.constant 0 : index
    %c0_164 = arith.constant 0 : index
    %c20 = arith.constant 20 : index
    %c0_165 = arith.constant 0 : index
    %273 = vector.load %arg13[%c0_163, %c0_164, %c20, %c0_165] : memref<1x1x32x81xbf16, #tpu.memory_space<vmem>>, vector<1x1x4x81xbf16>
    %274 = vector.shape_cast %273 : vector<1x1x4x81xbf16> to vector<4x81xbf16>
    %275 = vector.shape_cast %272 : vector<4x81xbf16> to vector<1x1x4x81xbf16>
    tpu.vector_store %arg13[%c0_163, %c0_164, %c20, %c0_165], %275 {strides = array<i32>} : memref<1x1x32x81xbf16, #tpu.memory_space<vmem>>, vector<1x1x4x81xbf16>,
    %c15 = arith.constant 15 : index
    %c0_166 = arith.constant 0 : index
    %c0_167 = arith.constant 0 : index
    %276 = vector.load %arg6[%c15, %c0_166, %c0_167] : memref<27x4x4xbf16, #tpu.memory_space<vmem>>, vector<1x4x4xbf16>
    %277 = vector.shape_cast %276 : vector<1x4x4xbf16> to vector<4x4xbf16>
    %cst_168 = arith.constant dense<0.000000e+00> : vector<4x81xf32>
    %278 = tpu.matmul %277, %37, %cst_168 {dimension_numbers = #tpu.dot_dimension_numbers<[1], [0], [0], [1], [0, 0, 1, 1], [], []>} : vector<4x4xbf16>, vector<4x81xbf16>, vector<4x81xf32> -> vector<4x81xf32>
    %c16_169 = arith.constant 16 : index
    %c0_170 = arith.constant 0 : index
    %c0_171 = arith.constant 0 : index
    %279 = vector.load %arg6[%c16_169, %c0_170, %c0_171] : memref<27x4x4xbf16, #tpu.memory_space<vmem>>, vector<1x4x4xbf16>
    %280 = vector.shape_cast %279 : vector<1x4x4xbf16> to vector<4x4xbf16>
    %cst_172 = arith.constant dense<0.000000e+00> : vector<4x81xf32>
    %281 = tpu.matmul %280, %41, %cst_172 {dimension_numbers = #tpu.dot_dimension_numbers<[1], [0], [0], [1], [0, 0, 1, 1], [], []>} : vector<4x4xbf16>, vector<4x81xbf16>, vector<4x81xf32> -> vector<4x81xf32>
    %282 = arith.addf %278, %281 : vector<4x81xf32>
    %c17 = arith.constant 17 : index
    %c0_173 = arith.constant 0 : index
    %c0_174 = arith.constant 0 : index
    %283 = vector.load %arg6[%c17, %c0_173, %c0_174] : memref<27x4x4xbf16, #tpu.memory_space<vmem>>, vector<1x4x4xbf16>
    %284 = vector.shape_cast %283 : vector<1x4x4xbf16> to vector<4x4xbf16>
    %cst_175 = arith.constant dense<0.000000e+00> : vector<4x81xf32>
    %285 = tpu.matmul %284, %45, %cst_175 {dimension_numbers = #tpu.dot_dimension_numbers<[1], [0], [0], [1], [0, 0, 1, 1], [], []>} : vector<4x4xbf16>, vector<4x81xbf16>, vector<4x81xf32> -> vector<4x81xf32>
    %286 = arith.addf %282, %285 : vector<4x81xf32>
    %c18 = arith.constant 18 : index
    %c0_176 = arith.constant 0 : index
    %c0_177 = arith.constant 0 : index
    %287 = vector.load %arg6[%c18, %c0_176, %c0_177] : memref<27x4x4xbf16, #tpu.memory_space<vmem>>, vector<1x4x4xbf16>
    %288 = vector.shape_cast %287 : vector<1x4x4xbf16> to vector<4x4xbf16>
    %cst_178 = arith.constant dense<0.000000e+00> : vector<4x81xf32>
    %289 = tpu.matmul %288, %49, %cst_178 {dimension_numbers = #tpu.dot_dimension_numbers<[1], [0], [0], [1], [0, 0, 1, 1], [], []>} : vector<4x4xbf16>, vector<4x81xbf16>, vector<4x81xf32> -> vector<4x81xf32>
    %290 = arith.addf %286, %289 : vector<4x81xf32>
    %291 = vector.broadcast %52 : vector<4x1xf32> to vector<4x81xf32>
    %292 = arith.addf %290, %291 : vector<4x81xf32>
    %293 = arith.truncf %292 : vector<4x81xf32> to vector<4x81xbf16>
    %cst_179 = arith.constant dense<0.000000e+00> : vector<16x81xf32>
    %294 = tpu.matmul %55, %293, %cst_179 {dimension_numbers = #tpu.dot_dimension_numbers<[1], [0], [0], [1], [0, 0, 1, 1], [], []>} : vector<16x4xbf16>, vector<4x81xbf16>, vector<16x81xf32> -> vector<16x81xf32>
    %295 = vector.broadcast %53 : vector<16x1xf32> to vector<16x81xf32>
    %296 = arith.addf %294, %295 : vector<16x81xf32>
    %297 = arith.truncf %296 : vector<16x81xf32> to vector<16x81xbf16>
    %cst_180 = arith.constant 5.000000e-01 : bf16
    %298 = vector.broadcast %cst_180 : bf16 to vector<16x81xbf16>
    %299 = arith.mulf %298, %297 : vector<16x81xbf16>
    %300 = arith.mulf %297, %297 : vector<16x81xbf16>
    %301 = arith.mulf %300, %297 : vector<16x81xbf16>
    %cst_181 = arith.constant 4.467770e-02 : bf16
    %302 = vector.broadcast %cst_181 : bf16 to vector<16x81xbf16>
    %303 = arith.mulf %302, %301 : vector<16x81xbf16>
    %304 = arith.addf %297, %303 : vector<16x81xbf16>
    %cst_182 = arith.constant 7.968750e-01 : bf16
    %305 = vector.broadcast %cst_182 : bf16 to vector<16x81xbf16>
    %306 = arith.mulf %305, %304 : vector<16x81xbf16>
    %307 = math.tanh %306 : vector<16x81xbf16>
    %cst_183 = arith.constant 1.000000e+00 : bf16
    %308 = vector.broadcast %cst_183 : bf16 to vector<16x81xbf16>
    %309 = arith.addf %308, %307 : vector<16x81xbf16>
    %310 = arith.mulf %299, %309 : vector<16x81xbf16>
    %cst_184 = arith.constant dense<0.000000e+00> : vector<4x81xf32>
    %311 = tpu.matmul %56, %310, %cst_184 {dimension_numbers = #tpu.dot_dimension_numbers<[1], [0], [0], [1], [0, 0, 1, 1], [], []>} : vector<4x16xbf16>, vector<16x81xbf16>, vector<4x81xf32> -> vector<4x81xf32>
    %312 = vector.broadcast %54 : vector<4x1xf32> to vector<4x81xf32>
    %313 = arith.addf %311, %312 : vector<4x81xf32>
    %314 = arith.truncf %313 : vector<4x81xf32> to vector<4x81xbf16>
    %c0_185 = arith.constant 0 : index
    %c0_186 = arith.constant 0 : index
    %c24 = arith.constant 24 : index
    %c0_187 = arith.constant 0 : index
    %315 = vector.load %arg13[%c0_185, %c0_186, %c24, %c0_187] : memref<1x1x32x81xbf16, #tpu.memory_space<vmem>>, vector<1x1x4x81xbf16>
    %316 = vector.shape_cast %315 : vector<1x1x4x81xbf16> to vector<4x81xbf16>
    %317 = vector.shape_cast %314 : vector<4x81xbf16> to vector<1x1x4x81xbf16>
    tpu.vector_store %arg13[%c0_185, %c0_186, %c24, %c0_187], %317 {strides = array<i32>} : memref<1x1x32x81xbf16, #tpu.memory_space<vmem>>, vector<1x1x4x81xbf16>,
    %c19 = arith.constant 19 : index
    %c0_188 = arith.constant 0 : index
    %c0_189 = arith.constant 0 : index
    %318 = vector.load %arg6[%c19, %c0_188, %c0_189] : memref<27x4x4xbf16, #tpu.memory_space<vmem>>, vector<1x4x4xbf16>
    %319 = vector.shape_cast %318 : vector<1x4x4xbf16> to vector<4x4xbf16>
    %cst_190 = arith.constant dense<0.000000e+00> : vector<4x81xf32>
    %320 = tpu.matmul %319, %37, %cst_190 {dimension_numbers = #tpu.dot_dimension_numbers<[1], [0], [0], [1], [0, 0, 1, 1], [], []>} : vector<4x4xbf16>, vector<4x81xbf16>, vector<4x81xf32> -> vector<4x81xf32>
    %c20_191 = arith.constant 20 : index
    %c0_192 = arith.constant 0 : index
    %c0_193 = arith.constant 0 : index
    %321 = vector.load %arg6[%c20_191, %c0_192, %c0_193] : memref<27x4x4xbf16, #tpu.memory_space<vmem>>, vector<1x4x4xbf16>
    %322 = vector.shape_cast %321 : vector<1x4x4xbf16> to vector<4x4xbf16>
    %cst_194 = arith.constant dense<0.000000e+00> : vector<4x81xf32>
    %323 = tpu.matmul %322, %39, %cst_194 {dimension_numbers = #tpu.dot_dimension_numbers<[1], [0], [0], [1], [0, 0, 1, 1], [], []>} : vector<4x4xbf16>, vector<4x81xbf16>, vector<4x81xf32> -> vector<4x81xf32>
    %324 = arith.addf %320, %323 : vector<4x81xf32>
    %c21 = arith.constant 21 : index
    %c0_195 = arith.constant 0 : index
    %c0_196 = arith.constant 0 : index
    %325 = vector.load %arg6[%c21, %c0_195, %c0_196] : memref<27x4x4xbf16, #tpu.memory_space<vmem>>, vector<1x4x4xbf16>
    %326 = vector.shape_cast %325 : vector<1x4x4xbf16> to vector<4x4xbf16>
    %cst_197 = arith.constant dense<0.000000e+00> : vector<4x81xf32>
    %327 = tpu.matmul %326, %41, %cst_197 {dimension_numbers = #tpu.dot_dimension_numbers<[1], [0], [0], [1], [0, 0, 1, 1], [], []>} : vector<4x4xbf16>, vector<4x81xbf16>, vector<4x81xf32> -> vector<4x81xf32>
    %328 = arith.addf %324, %327 : vector<4x81xf32>
    %c22 = arith.constant 22 : index
    %c0_198 = arith.constant 0 : index
    %c0_199 = arith.constant 0 : index
    %329 = vector.load %arg6[%c22, %c0_198, %c0_199] : memref<27x4x4xbf16, #tpu.memory_space<vmem>>, vector<1x4x4xbf16>
    %330 = vector.shape_cast %329 : vector<1x4x4xbf16> to vector<4x4xbf16>
    %cst_200 = arith.constant dense<0.000000e+00> : vector<4x81xf32>
    %331 = tpu.matmul %330, %43, %cst_200 {dimension_numbers = #tpu.dot_dimension_numbers<[1], [0], [0], [1], [0, 0, 1, 1], [], []>} : vector<4x4xbf16>, vector<4x81xbf16>, vector<4x81xf32> -> vector<4x81xf32>
    %332 = arith.addf %328, %331 : vector<4x81xf32>
    %c23 = arith.constant 23 : index
    %c0_201 = arith.constant 0 : index
    %c0_202 = arith.constant 0 : index
    %333 = vector.load %arg6[%c23, %c0_201, %c0_202] : memref<27x4x4xbf16, #tpu.memory_space<vmem>>, vector<1x4x4xbf16>
    %334 = vector.shape_cast %333 : vector<1x4x4xbf16> to vector<4x4xbf16>
    %cst_203 = arith.constant dense<0.000000e+00> : vector<4x81xf32>
    %335 = tpu.matmul %334, %45, %cst_203 {dimension_numbers = #tpu.dot_dimension_numbers<[1], [0], [0], [1], [0, 0, 1, 1], [], []>} : vector<4x4xbf16>, vector<4x81xbf16>, vector<4x81xf32> -> vector<4x81xf32>
    %336 = arith.addf %332, %335 : vector<4x81xf32>
    %c24_204 = arith.constant 24 : index
    %c0_205 = arith.constant 0 : index
    %c0_206 = arith.constant 0 : index
    %337 = vector.load %arg6[%c24_204, %c0_205, %c0_206] : memref<27x4x4xbf16, #tpu.memory_space<vmem>>, vector<1x4x4xbf16>
    %338 = vector.shape_cast %337 : vector<1x4x4xbf16> to vector<4x4xbf16>
    %cst_207 = arith.constant dense<0.000000e+00> : vector<4x81xf32>
    %339 = tpu.matmul %338, %47, %cst_207 {dimension_numbers = #tpu.dot_dimension_numbers<[1], [0], [0], [1], [0, 0, 1, 1], [], []>} : vector<4x4xbf16>, vector<4x81xbf16>, vector<4x81xf32> -> vector<4x81xf32>
    %340 = arith.addf %336, %339 : vector<4x81xf32>
    %c25 = arith.constant 25 : index
    %c0_208 = arith.constant 0 : index
    %c0_209 = arith.constant 0 : index
    %341 = vector.load %arg6[%c25, %c0_208, %c0_209] : memref<27x4x4xbf16, #tpu.memory_space<vmem>>, vector<1x4x4xbf16>
    %342 = vector.shape_cast %341 : vector<1x4x4xbf16> to vector<4x4xbf16>
    %cst_210 = arith.constant dense<0.000000e+00> : vector<4x81xf32>
    %343 = tpu.matmul %342, %49, %cst_210 {dimension_numbers = #tpu.dot_dimension_numbers<[1], [0], [0], [1], [0, 0, 1, 1], [], []>} : vector<4x4xbf16>, vector<4x81xbf16>, vector<4x81xf32> -> vector<4x81xf32>
    %344 = arith.addf %340, %343 : vector<4x81xf32>
    %c26 = arith.constant 26 : index
    %c0_211 = arith.constant 0 : index
    %c0_212 = arith.constant 0 : index
    %345 = vector.load %arg6[%c26, %c0_211, %c0_212] : memref<27x4x4xbf16, #tpu.memory_space<vmem>>, vector<1x4x4xbf16>
    %346 = vector.shape_cast %345 : vector<1x4x4xbf16> to vector<4x4xbf16>
    %cst_213 = arith.constant dense<0.000000e+00> : vector<4x81xf32>
    %347 = tpu.matmul %346, %51, %cst_213 {dimension_numbers = #tpu.dot_dimension_numbers<[1], [0], [0], [1], [0, 0, 1, 1], [], []>} : vector<4x4xbf16>, vector<4x81xbf16>, vector<4x81xf32> -> vector<4x81xf32>
    %348 = arith.addf %344, %347 : vector<4x81xf32>
    %349 = vector.broadcast %52 : vector<4x1xf32> to vector<4x81xf32>
    %350 = arith.addf %348, %349 : vector<4x81xf32>
    %351 = arith.truncf %350 : vector<4x81xf32> to vector<4x81xbf16>
    %cst_214 = arith.constant dense<0.000000e+00> : vector<16x81xf32>
    %352 = tpu.matmul %55, %351, %cst_214 {dimension_numbers = #tpu.dot_dimension_numbers<[1], [0], [0], [1], [0, 0, 1, 1], [], []>} : vector<16x4xbf16>, vector<4x81xbf16>, vector<16x81xf32> -> vector<16x81xf32>
    %353 = vector.broadcast %53 : vector<16x1xf32> to vector<16x81xf32>
    %354 = arith.addf %352, %353 : vector<16x81xf32>
    %355 = arith.truncf %354 : vector<16x81xf32> to vector<16x81xbf16>
    %cst_215 = arith.constant 5.000000e-01 : bf16
    %356 = vector.broadcast %cst_215 : bf16 to vector<16x81xbf16>
    %357 = arith.mulf %356, %355 : vector<16x81xbf16>
    %358 = arith.mulf %355, %355 : vector<16x81xbf16>
    %359 = arith.mulf %358, %355 : vector<16x81xbf16>
    %cst_216 = arith.constant 4.467770e-02 : bf16
    %360 = vector.broadcast %cst_216 : bf16 to vector<16x81xbf16>
    %361 = arith.mulf %360, %359 : vector<16x81xbf16>
    %362 = arith.addf %355, %361 : vector<16x81xbf16>
    %cst_217 = arith.constant 7.968750e-01 : bf16
    %363 = vector.broadcast %cst_217 : bf16 to vector<16x81xbf16>
    %364 = arith.mulf %363, %362 : vector<16x81xbf16>
    %365 = math.tanh %364 : vector<16x81xbf16>
    %cst_218 = arith.constant 1.000000e+00 : bf16
    %366 = vector.broadcast %cst_218 : bf16 to vector<16x81xbf16>
    %367 = arith.addf %366, %365 : vector<16x81xbf16>
    %368 = arith.mulf %357, %367 : vector<16x81xbf16>
    %cst_219 = arith.constant dense<0.000000e+00> : vector<4x81xf32>
    %369 = tpu.matmul %56, %368, %cst_219 {dimension_numbers = #tpu.dot_dimension_numbers<[1], [0], [0], [1], [0, 0, 1, 1], [], []>} : vector<4x16xbf16>, vector<16x81xbf16>, vector<4x81xf32> -> vector<4x81xf32>
    %370 = vector.broadcast %54 : vector<4x1xf32> to vector<4x81xf32>
    %371 = arith.addf %369, %370 : vector<4x81xf32>
    %372 = arith.truncf %371 : vector<4x81xf32> to vector<4x81xbf16>
    %c0_220 = arith.constant 0 : index
    %c0_221 = arith.constant 0 : index
    %c28 = arith.constant 28 : index
    %c0_222 = arith.constant 0 : index
    %373 = vector.load %arg13[%c0_220, %c0_221, %c28, %c0_222] : memref<1x1x32x81xbf16, #tpu.memory_space<vmem>>, vector<1x1x4x81xbf16>
    %374 = vector.shape_cast %373 : vector<1x1x4x81xbf16> to vector<4x81xbf16>
    %375 = vector.shape_cast %372 : vector<4x81xbf16> to vector<1x1x4x81xbf16>
    tpu.vector_store %arg13[%c0_220, %c0_221, %c28, %c0_222], %375 {strides = array<i32>} : memref<1x1x32x81xbf16, #tpu.memory_space<vmem>>, vector<1x1x4x81xbf16>,
    return
  }
  func.func @transform_0(%arg0: i32, %arg1: i32) -> (i32, i32, i32, i32) {
    %c0_i32 = arith.constant 0 : i32
    %0 = arith.addi %arg1, %c0_i32 : i32
    %c0_i32_0 = arith.constant 0 : i32
    %c0_i32_1 = arith.constant 0 : i32
    %c0_i32_2 = arith.constant 0 : i32
    return %arg0, %0, %c0_i32_0, %c0_i32_1 : i32, i32, i32, i32
  }
  func.func @transform_1(%arg0: i32, %arg1: i32) -> (i32, i32, i32, i32) {
    %c1_i32 = arith.constant 1 : i32
    %0 = arith.addi %arg1, %c1_i32 : i32
    %c0_i32 = arith.constant 0 : i32
    %c0_i32_0 = arith.constant 0 : i32
    %c0_i32_1 = arith.constant 0 : i32
    return %arg0, %0, %c0_i32, %c0_i32_0 : i32, i32, i32, i32
  }
  func.func @transform_2(%arg0: i32, %arg1: i32) -> (i32, i32) {
    %c0_i32 = arith.constant 0 : i32
    %c0_i32_0 = arith.constant 0 : i32
    %c0_i32_1 = arith.constant 0 : i32
    return %c0_i32, %c0_i32_0 : i32, i32
  }
  func.func @transform_3(%arg0: i32, %arg1: i32) -> (i32, i32) {
    %c0_i32 = arith.constant 0 : i32
    %c0_i32_0 = arith.constant 0 : i32
    %c0_i32_1 = arith.constant 0 : i32
    return %c0_i32, %c0_i32_0 : i32, i32
  }
  func.func @transform_4(%arg0: i32, %arg1: i32) -> (i32, i32, i32) {
    %c0_i32 = arith.constant 0 : i32
    %c0_i32_0 = arith.constant 0 : i32
    %c0_i32_1 = arith.constant 0 : i32
    %c0_i32_2 = arith.constant 0 : i32
    return %c0_i32, %c0_i32_0, %c0_i32_1 : i32, i32, i32
  }
  func.func @transform_5(%arg0: i32, %arg1: i32) -> (i32, i32) {
    %c0_i32 = arith.constant 0 : i32
    %c0_i32_0 = arith.constant 0 : i32
    %c0_i32_1 = arith.constant 0 : i32
    return %c0_i32, %c0_i32_0 : i32, i32
  }
  func.func @transform_6(%arg0: i32, %arg1: i32) -> (i32, i32) {
    %c0_i32 = arith.constant 0 : i32
    %c0_i32_0 = arith.constant 0 : i32
    %c0_i32_1 = arith.constant 0 : i32
    return %c0_i32, %c0_i32_0 : i32, i32
  }
  func.func @transform_7(%arg0: i32, %arg1: i32) -> (i32, i32) {
    %c0_i32 = arith.constant 0 : i32
    %c0_i32_0 = arith.constant 0 : i32
    %c0_i32_1 = arith.constant 0 : i32
    return %c0_i32, %c0_i32_0 : i32, i32
  }
  func.func @transform_8(%arg0: i32, %arg1: i32) -> (i32, i32) {
    %c0_i32 = arith.constant 0 : i32
    %c0_i32_0 = arith.constant 0 : i32
    %c0_i32_1 = arith.constant 0 : i32
    return %c0_i32, %c0_i32_0 : i32, i32
  }
  func.func @transform_9(%arg0: i32, %arg1: i32) -> (i32, i32) {
    %c0_i32 = arith.constant 0 : i32
    %c0_i32_0 = arith.constant 0 : i32
    %c0_i32_1 = arith.constant 0 : i32
    return %c0_i32, %c0_i32_0 : i32, i32
  }
  func.func @transform_10(%arg0: i32, %arg1: i32) -> (i32, i32) {
    %c0_i32 = arith.constant 0 : i32
    %c0_i32_0 = arith.constant 0 : i32
    %c0_i32_1 = arith.constant 0 : i32
    return %c0_i32, %c0_i32_0 : i32, i32
  }
  func.func @transform_11(%arg0: i32, %arg1: i32) -> (i32, i32, i32, i32) {
    %c0_i32 = arith.constant 0 : i32
    %c0_i32_0 = arith.constant 0 : i32
    %c0_i32_1 = arith.constant 0 : i32
    return %arg0, %arg1, %c0_i32, %c0_i32_0 : i32, i32, i32, i32
  }
}

</mosaic_0001>

<llo_original>
// kernel: _lambda_.1
$region0: #{_lambda_.1}
  #allocation0 [shape = 'u32[]', space=smem, size = 0x4, offset = 0x4, fixed_abs, tag = 'smem constant byte address 0x4 - core index']
  #allocation1 [shape = 'u32[72,128]{1,0:T(1,128)}', space=vmem, size = 0x9000, scoped, tag = 'internal scratch']
  #allocation2 [shape = 'bf16[2,4,91]{2,1,0:T(4,128)(2,1)}', space=vmem, size = 0x800, scoped, tag = 'scratch operand']
  %s0 = inlined_call_operand.vmem [shape: bf16[2,9,4,81], index: 0, kind: input, shape index: {}, may-alias: {0,1}]
  %s1 = inlined_call_operand.vmem [shape: bf16[2,9,4,81], index: 1, kind: input, shape index: {}, may-alias: {0,1}]
  %s2 = inlined_call_operand.hbm [shape: bf16[4,4], index: 2, kind: input, shape index: {}]
  %s3 = inlined_call_operand.hbm [shape: f32[4,1], index: 3, kind: input, shape index: {}]
  %s4 = inlined_call_operand.hbm [shape: bf16[27,4,4], index: 4, kind: input, shape index: {}]
  %s5 = inlined_call_operand.hbm [shape: f32[4,1], index: 5, kind: input, shape index: {}]
  %s6 = inlined_call_operand.hbm [shape: bf16[4,4], index: 6, kind: input, shape index: {}]
  %s7 = inlined_call_operand.hbm [shape: bf16[16,4], index: 7, kind: input, shape index: {}]
  %s8 = inlined_call_operand.hbm [shape: f32[16,1], index: 8, kind: input, shape index: {}]
  %s9 = inlined_call_operand.hbm [shape: bf16[4,16], index: 9, kind: input, shape index: {}]
  %s10 = inlined_call_operand.hbm [shape: f32[4,1], index: 10, kind: input, shape index: {}]
  %s11 = inlined_call_operand.vmem [shape: bf16[2,8,32,81], index: 11, kind: output, shape index: {}]
  %s12 = sld [smem:[#allocation0]]
  $region113: #{_lambda_.1} parent=0
    _
  %s14 = ssub.s32 1, %s12
  %s15 = scalar_select 0, %s14, %s12
  $region1: #{_lambda_.1} parent=0
    #allocation3 [shape = 'u8[1024]{0}', space=vmem, size = 0x400, scoped, tag = 'input window, operand 2, single buffered']
    #allocation4 [shape = 's32[2]{0}', space=sflag, size = 0x8, scoped, tag = 'scoped memory for _lambda_.1']
    #allocation5 [shape = 'u8[2048]{0}', space=vmem, size = 0x800, scoped, tag = 'input window, operand 3, single buffered']
    #allocation6 [shape = 's32[1]{0}', space=sflag, size = 0x4, scoped, tag = 'scoped memory for _lambda_.1']
    #allocation7 [shape = 'u8[27648]{0}', space=vmem, size = 0x6c00, scoped, tag = 'input window, operand 4, single buffered']
    #allocation8 [shape = 'u8[2048]{0}', space=vmem, size = 0x800, scoped, tag = 'input window, operand 5, single buffered']
    #allocation9 [shape = 's32[1]{0}', space=sflag, size = 0x4, scoped, tag = 'scoped memory for _lambda_.1']
    #allocation10 [shape = 'u8[1024]{0}', space=vmem, size = 0x400, scoped, tag = 'input window, operand 6, single buffered']
    #allocation11 [shape = 'u8[4096]{0}', space=vmem, size = 0x1000, scoped, tag = 'input window, operand 7, single buffered']
    #allocation12 [shape = 's32[1]{0}', space=sflag, size = 0x4, scoped, tag = 'scoped memory for _lambda_.1']
    #allocation13 [shape = 'u8[8192]{0}', space=vmem, size = 0x2000, scoped, tag = 'input window, operand 8, single buffered']
    #allocation14 [shape = 'u8[1024]{0}', space=vmem, size = 0x400, scoped, tag = 'input window, operand 9, single buffered']
    #allocation15 [shape = 's32[1]{0}', space=sflag, size = 0x4, scoped, tag = 'scoped memory for _lambda_.1']
    #allocation16 [shape = 'u8[2048]{0}', space=vmem, size = 0x800, scoped, tag = 'input window, operand 10, single buffered']
    %16 = vsyncpa [#allocation4], 0
    %17 = vsyncpa [#allocation6], 0
    %18 = vsyncpa [#allocation9], 0
    %19 = vsyncpa [#allocation12], 0
    %20 = vsyncpa [#allocation15], 0
    loop: start=0, step=1, limit=18
    $region2: #{_lambda_.1} parent=1 // loop_pre_header
      _
    $region3: #{_lambda_.1} parent=1 // loop_header
      %s22 = sphi 0, %s26
      %p23 = scmp.ge.s32.totalorder %s22, 18
      %s29 = sphi 0, %s41
      %s30 = sphi 0, %s37
      %s31 = sphi 0, %s29
      %s32 = sphi 0, %s30
      %s33 = sphi 0, %s31
      %s34 = sphi 0, %s32
      %s46 = sphi 0, %s48
      %s49 = sphi 0, %s46
      %s50 = sphi 0, %s49
      %s66 = sphi 0, %s50
      %s76 = sphi 0, %s78
      %s79 = sphi 0, %s76
      %s80 = sphi 0, %s79
      %s96 = sphi 0, %s80
      %s100 = sphi 0, %s100
      %s102 = sphi 0, %s100
      %s103 = sphi 0, %s102
      %s117 = sphi 0, %s103
      %s121 = sphi 0, %s121
      %s123 = sphi 0, %s121
      %s124 = sphi 0, %s123
      %s138 = sphi 0, %s124
      %s142 = sphi 0, %s142
      %s144 = sphi 0, %s142
      %s145 = sphi 0, %s144
      %s159 = sphi 0, %s145
      %s163 = sphi 0, %s163
      %s165 = sphi 0, %s163
      %s166 = sphi 0, %s165
      %s180 = sphi 0, %s166
      %s184 = sphi 0, %s184
      %s186 = sphi 0, %s184
      %s187 = sphi 0, %s186
      %s201 = sphi 0, %s187
      %s205 = sphi 0, %s205
      %s207 = sphi 0, %s205
      %s208 = sphi 0, %s207
      %s222 = sphi 0, %s208
      %s226 = sphi 0, %s226
      %s228 = sphi 0, %s226
      %s229 = sphi 0, %s228
      %s243 = sphi 0, %s229
      %s247 = sphi 0, %s247
      %s249 = sphi 0, %s247
      %s250 = sphi 0, %s249
      %s264 = sphi 0, %s250
      %s268 = sphi 0, %s268
      %s270 = sphi 0, %s268
      %s271 = sphi 0, %s270
      %s285 = sphi 0, %s271
      %s293 = sphi 0, %s295
      %s296 = sphi 0, %s293
      %s297 = sphi 0, %s296
      %s313 = sphi 0, %s297
    $region4: #{_lambda_.1} parent=1 // loop_header_branch
      %25 = sbr.rel (%p23) target = $region8
    $region5: #{_lambda_.1} parent=1 // loop_body
      %s27 = ssub.s32 %s22, 1
      %s28 = ssub.s32 %s22, 2
      %s35 = sadd.s32 1, %s30
      %p36 = scmp.ge.s32.totalorder %s35, 8
      %s37 = scalar_select %p36, 0, %s35
      %s38 = sadd.s32 1, %s29
      %s39 = scalar_select %p36, %s38, %s29
      %p40 = scmp.ge.s32.totalorder %s39, 2
      %s41 = scalar_select %p40, 0, %s39
      %s42 = ssub.s32 %s29, %s41
      %s43 = ssub.s32 %s30, %s37
      %s44 = sor.u32 %s42, %s43
      %p45 = scmp.eq.s32.totalorder %s44, 0
      %s47 = sadd.s32 %s46, 1
      %s48 = scalar_select %p45, %s46, %s47
      %p51 = pneg %p45
      %p52 = scmp.eq.s32.totalorder %s22, 15
      %p53 = por %p51, %p52
      %p54 = scmp.ne.s32.totalorder %s46, %s49
      %p55 = scmp.eq.s32.totalorder %s22, 0
      %p56 = por %p54, %p55
      %p57 = scmp.ne.s32.totalorder %s46, %s49
      %p58 = scmp.eq.s32.totalorder %s27, 15
      %p59 = por %p57, %p58
      %p60 = scmp.ne.s32.totalorder %s49, %s50
      %p61 = scmp.eq.s32.totalorder %s27, 0
      %p62 = por %p60, %p61
      %p63 = scmp.ne.s32.totalorder %s49, %s50
      %p64 = scmp.eq.s32.totalorder %s28, 15
      %p65 = por %p63, %p64
      %p67 = scmp.ne.s32.totalorder %s50, %s66
      %p68 = scmp.eq.s32.totalorder %s28, 0
      %p69 = por %p67, %p68
      %s70 = sadd.s32 %s30, 1
      %s71 = sadd.s32 %s37, 1
      %s72 = ssub.s32 %s29, %s41
      %s73 = ssub.s32 %s70, %s71
      %s74 = sor.u32 %s72, %s73
      %p75 = scmp.eq.s32.totalorder %s74, 0
      %s77 = sadd.s32 %s76, 1
      %s78 = scalar_select %p75, %s76, %s77
      %p81 = pneg %p75
      %p82 = scmp.eq.s32.totalorder %s22, 15
      %p83 = por %p81, %p82
      %p84 = scmp.ne.s32.totalorder %s76, %s79
      %p85 = scmp.eq.s32.totalorder %s22, 0
      %p86 = por %p84, %p85
      %p87 = scmp.ne.s32.totalorder %s76, %s79
      %p88 = scmp.eq.s32.totalorder %s27, 15
      %p89 = por %p87, %p88
      %p90 = scmp.ne.s32.totalorder %s79, %s80
      %p91 = scmp.eq.s32.totalorder %s27, 0
      %p92 = por %p90, %p91
      %p93 = scmp.ne.s32.totalorder %s79, %s80
      %p94 = scmp.eq.s32.totalorder %s28, 15
      %p95 = por %p93, %p94
      %p97 = scmp.ne.s32.totalorder %s80, %s96
      %p98 = scmp.eq.s32.totalorder %s28, 0
      %p99 = por %p97, %p98
      %s101 = sadd.s32 %s100, 1
      %p104 = scmp.eq.s32.totalorder %s22, 15
      %p105 = scmp.ne.s32.totalorder %s100, %s102
      %p106 = scmp.eq.s32.totalorder %s22, 0
      %p107 = por %p105, %p106
      %p108 = scmp.ne.s32.totalorder %s100, %s102
      %p109 = scmp.eq.s32.totalorder %s27, 15
      %p110 = por %p108, %p109
      %p111 = scmp.ne.s32.totalorder %s102, %s103
      %p112 = scmp.eq.s32.totalorder %s27, 0
      %p113 = por %p111, %p112
      %p114 = scmp.ne.s32.totalorder %s102, %s103
      %p115 = scmp.eq.s32.totalorder %s28, 15
      %p116 = por %p114, %p115
      %p118 = scmp.ne.s32.totalorder %s103, %s117
      %p119 = scmp.eq.s32.totalorder %s28, 0
      %p120 = por %p118, %p119
      %s122 = sadd.s32 %s121, 1
      %p125 = scmp.eq.s32.totalorder %s22, 15
      %p126 = scmp.ne.s32.totalorder %s121, %s123
      %p127 = scmp.eq.s32.totalorder %s22, 0
      %p128 = por %p126, %p127
      %p129 = scmp.ne.s32.totalorder %s121, %s123
      %p130 = scmp.eq.s32.totalorder %s27, 15
      %p131 = por %p129, %p130
      %p132 = scmp.ne.s32.totalorder %s123, %s124
      %p133 = scmp.eq.s32.totalorder %s27, 0
      %p134 = por %p132, %p133
      %p135 = scmp.ne.s32.totalorder %s123, %s124
      %p136 = scmp.eq.s32.totalorder %s28, 15
      %p137 = por %p135, %p136
      %p139 = scmp.ne.s32.totalorder %s124, %s138
      %p140 = scmp.eq.s32.totalorder %s28, 0
      %p141 = por %p139, %p140
      %s143 = sadd.s32 %s142, 1
      %p146 = scmp.eq.s32.totalorder %s22, 15
      %p147 = scmp.ne.s32.totalorder %s142, %s144
      %p148 = scmp.eq.s32.totalorder %s22, 0
      %p149 = por %p147, %p148
      %p150 = scmp.ne.s32.totalorder %s142, %s144
      %p151 = scmp.eq.s32.totalorder %s27, 15
      %p152 = por %p150, %p151
      %p153 = scmp.ne.s32.totalorder %s144, %s145
      %p154 = scmp.eq.s32.totalorder %s27, 0
      %p155 = por %p153, %p154
      %p156 = scmp.ne.s32.totalorder %s144, %s145
      %p157 = scmp.eq.s32.totalorder %s28, 15
      %p158 = por %p156, %p157
      %p160 = scmp.ne.s32.totalorder %s145, %s159
      %p161 = scmp.eq.s32.totalorder %s28, 0
      %p162 = por %p160, %p161
      %s164 = sadd.s32 %s163, 1
      %p167 = scmp.eq.s32.totalorder %s22, 15
      %p168 = scmp.ne.s32.totalorder %s163, %s165
      %p169 = scmp.eq.s32.totalorder %s22, 0
      %p170 = por %p168, %p169
      %p171 = scmp.ne.s32.totalorder %s163, %s165
      %p172 = scmp.eq.s32.totalorder %s27, 15
      %p173 = por %p171, %p172
      %p174 = scmp.ne.s32.totalorder %s165, %s166
      %p175 = scmp.eq.s32.totalorder %s27, 0
      %p176 = por %p174, %p175
      %p177 = scmp.ne.s32.totalorder %s165, %s166
      %p178 = scmp.eq.s32.totalorder %s28, 15
      %p179 = por %p177, %p178
      %p181 = scmp.ne.s32.totalorder %s166, %s180
      %p182 = scmp.eq.s32.totalorder %s28, 0
      %p183 = por %p181, %p182
      %s185 = sadd.s32 %s184, 1
      %p188 = scmp.eq.s32.totalorder %s22, 15
      %p189 = scmp.ne.s32.totalorder %s184, %s186
      %p190 = scmp.eq.s32.totalorder %s22, 0
      %p191 = por %p189, %p190
      %p192 = scmp.ne.s32.totalorder %s184, %s186
      %p193 = scmp.eq.s32.totalorder %s27, 15
      %p194 = por %p192, %p193
      %p195 = scmp.ne.s32.totalorder %s186, %s187
      %p196 = scmp.eq.s32.totalorder %s27, 0
      %p197 = por %p195, %p196
      %p198 = scmp.ne.s32.totalorder %s186, %s187
      %p199 = scmp.eq.s32.totalorder %s28, 15
      %p200 = por %p198, %p199
      %p202 = scmp.ne.s32.totalorder %s187, %s201
      %p203 = scmp.eq.s32.totalorder %s28, 0
      %p204 = por %p202, %p203
      %s206 = sadd.s32 %s205, 1
      %p209 = scmp.eq.s32.totalorder %s22, 15
      %p210 = scmp.ne.s32.totalorder %s205, %s207
      %p211 = scmp.eq.s32.totalorder %s22, 0
      %p212 = por %p210, %p211
      %p213 = scmp.ne.s32.totalorder %s205, %s207
      %p214 = scmp.eq.s32.totalorder %s27, 15
      %p215 = por %p213, %p214
      %p216 = scmp.ne.s32.totalorder %s207, %s208
      %p217 = scmp.eq.s32.totalorder %s27, 0
      %p218 = por %p216, %p217
      %p219 = scmp.ne.s32.totalorder %s207, %s208
      %p220 = scmp.eq.s32.totalorder %s28, 15
      %p221 = por %p219, %p220
      %p223 = scmp.ne.s32.totalorder %s208, %s222
      %p224 = scmp.eq.s32.totalorder %s28, 0
      %p225 = por %p223, %p224
      %s227 = sadd.s32 %s226, 1
      %p230 = scmp.eq.s32.totalorder %s22, 15
      %p231 = scmp.ne.s32.totalorder %s226, %s228
      %p232 = scmp.eq.s32.totalorder %s22, 0
      %p233 = por %p231, %p232
      %p234 = scmp.ne.s32.totalorder %s226, %s228
      %p235 = scmp.eq.s32.totalorder %s27, 15
      %p236 = por %p234, %p235
      %p237 = scmp.ne.s32.totalorder %s228, %s229
      %p238 = scmp.eq.s32.totalorder %s27, 0
      %p239 = por %p237, %p238
      %p240 = scmp.ne.s32.totalorder %s228, %s229
      %p241 = scmp.eq.s32.totalorder %s28, 15
      %p242 = por %p240, %p241
      %p244 = scmp.ne.s32.totalorder %s229, %s243
      %p245 = scmp.eq.s32.totalorder %s28, 0
      %p246 = por %p244, %p245
      %s248 = sadd.s32 %s247, 1
      %p251 = scmp.eq.s32.totalorder %s22, 15
      %p252 = scmp.ne.s32.totalorder %s247, %s249
      %p253 = scmp.eq.s32.totalorder %s22, 0
      %p254 = por %p252, %p253
      %p255 = scmp.ne.s32.totalorder %s247, %s249
      %p256 = scmp.eq.s32.totalorder %s27, 15
      %p257 = por %p255, %p256
      %p258 = scmp.ne.s32.totalorder %s249, %s250
      %p259 = scmp.eq.s32.totalorder %s27, 0
      %p260 = por %p258, %p259
      %p261 = scmp.ne.s32.totalorder %s249, %s250
      %p262 = scmp.eq.s32.totalorder %s28, 15
      %p263 = por %p261, %p262
      %p265 = scmp.ne.s32.totalorder %s250, %s264
      %p266 = scmp.eq.s32.totalorder %s28, 0
      %p267 = por %p265, %p266
      %s269 = sadd.s32 %s268, 1
      %p272 = scmp.eq.s32.totalorder %s22, 15
      %p273 = scmp.ne.s32.totalorder %s268, %s270
      %p274 = scmp.eq.s32.totalorder %s22, 0
      %p275 = por %p273, %p274
      %p276 = scmp.ne.s32.totalorder %s268, %s270
      %p277 = scmp.eq.s32.totalorder %s27, 15
      %p278 = por %p276, %p277
      %p279 = scmp.ne.s32.totalorder %s270, %s271
      %p280 = scmp.eq.s32.totalorder %s27, 0
      %p281 = por %p279, %p280
      %p282 = scmp.ne.s32.totalorder %s270, %s271
      %p283 = scmp.eq.s32.totalorder %s28, 15
      %p284 = por %p282, %p283
      %p286 = scmp.ne.s32.totalorder %s271, %s285
      %p287 = scmp.eq.s32.totalorder %s28, 0
      %p288 = por %p286, %p287
      %s289 = ssub.s32 %s29, %s41
      %s290 = ssub.s32 %s30, %s37
      %s291 = sor.u32 %s289, %s290
      %p292 = scmp.eq.s32.totalorder %s291, 0
      %s294 = sadd.s32 %s293, 1
      %s295 = scalar_select %p292, %s293, %s294
      %p298 = pneg %p292
      %p299 = scmp.eq.s32.totalorder %s22, 15
      %p300 = por %p298, %p299
      %p301 = scmp.ne.s32.totalorder %s293, %s296
      %p302 = scmp.eq.s32.totalorder %s22, 0
      %p303 = por %p301, %p302
      %p304 = scmp.ne.s32.totalorder %s293, %s296
      %p305 = scmp.eq.s32.totalorder %s27, 15
      %p306 = por %p304, %p305
      %p307 = scmp.ne.s32.totalorder %s296, %s297
      %p308 = scmp.eq.s32.totalorder %s27, 0
      %p309 = por %p307, %p308
      %p310 = scmp.ne.s32.totalorder %s296, %s297
      %p311 = scmp.eq.s32.totalorder %s28, 15
      %p312 = por %p310, %p311
      %p314 = scmp.ne.s32.totalorder %s297, %s313
      %p315 = scmp.eq.s32.totalorder %s28, 0
      %p316 = por %p314, %p315
      %p317 = scmp.le.s32.totalorder 1, %s22
      %p318 = scmp.lt.s32.totalorder %s22, 17
      %p319 = pnand %p317, %p318
      %p320 = pneg %p319
      // Predicated region
      $region9: #{_lambda_.1} parent=5 // pred_check
        _
      $region10: #{_lambda_.1} parent=5 // pred_check_branch
        %322 = sbr.rel (%p319) target = $region12
      $region11: #{_lambda_.1} parent=5 // pred_region
        %s323 = ssub.s32 %s22, 1
        // Predicated region
        $region13: #{_lambda_.1} parent=11 // pred_check
          %p324 = pneg %p113
        $region14: #{_lambda_.1} parent=11 // pred_check_branch
          %326 = sbr.rel (%p324) target = $region16
        $region15: #{_lambda_.1} parent=11 // pred_region
          %328 = vsyncadd [#allocation4], 0
          %s330 = sshll.u32 %s2, 4
          %s331 = int_to_ptr.hbm [resolvable:$true] %s330
          %s332 = sshll.u32 [#allocation3], 4
          %s333 = int_to_ptr.vmem [resolvable:$true] %s332
          %335 = dma.hbm_to_vmem [thread:$0]  %s331, 32, %s333, [#allocation4]
        $region16: #{_lambda_.1} parent=11 // pred_fallthru
          _
        // Predicated region
        $region17: #{_lambda_.1} parent=11 // pred_check
          %p336 = pneg %p134
        $region18: #{_lambda_.1} parent=11 // pred_check_branch
          %338 = sbr.rel (%p336) target = $region20
        $region19: #{_lambda_.1} parent=11 // pred_region
          %340 = vsyncadd [#allocation6], 0
          %s342 = sshll.u32 %s3, 4
          %s343 = int_to_ptr.hbm [resolvable:$true] %s342
          %s344 = sshll.u32 [#allocation5], 4
          %s345 = int_to_ptr.vmem [resolvable:$true] %s344
          %347 = dma.hbm_to_vmem [thread:$0]  %s343, 64, %s345, [#allocation6]
        $region20: #{_lambda_.1} parent=11 // pred_fallthru
          _
        // Predicated region
        $region21: #{_lambda_.1} parent=11 // pred_check
          %p348 = pneg %p155
        $region22: #{_lambda_.1} parent=11 // pred_check_branch
          %350 = sbr.rel (%p348) target = $region24
        $region23: #{_lambda_.1} parent=11 // pred_region
          %352 = vsyncadd [#allocation6], 0
          %s353 = sshll.u32 %s4, 4
          %s354 = int_to_ptr.hbm [resolvable:$true] %s353
          %s355 = sshll.u32 [#allocation7], 4
          %s356 = int_to_ptr.vmem [resolvable:$true] %s355
          %361 = dma.hbm_to_vmem [thread:$0]  %s354, 864, %s356, [#allocation6], 32, 32, 2
        $region24: #{_lambda_.1} parent=11 // pred_fallthru
          _
        // Predicated region
        $region25: #{_lambda_.1} parent=11 // pred_check
          %p362 = pneg %p176
        $region26: #{_lambda_.1} parent=11 // pred_check_branch
          %364 = sbr.rel (%p362) target = $region28
        $region27: #{_lambda_.1} parent=11 // pred_region
          %366 = vsyncadd [#allocation9], 0
          %s368 = sshll.u32 %s5, 4
          %s369 = int_to_ptr.hbm [resolvable:$true] %s368
          %s370 = sshll.u32 [#allocation8], 4
          %s371 = int_to_ptr.vmem [resolvable:$true] %s370
          %373 = dma.hbm_to_vmem [thread:$0]  %s369, 64, %s371, [#allocation9]
        $region28: #{_lambda_.1} parent=11 // pred_fallthru
          _
        // Predicated region
        $region29: #{_lambda_.1} parent=11 // pred_check
          %p374 = pneg %p197
        $region30: #{_lambda_.1} parent=11 // pred_check_branch
          %376 = sbr.rel (%p374) target = $region32
        $region31: #{_lambda_.1} parent=11 // pred_region
          %378 = vsyncadd [#allocation9], 0
          %s380 = sshll.u32 %s6, 4
          %s381 = int_to_ptr.hbm [resolvable:$true] %s380
          %s382 = sshll.u32 [#allocation10], 4
          %s383 = int_to_ptr.vmem [resolvable:$true] %s382
          %385 = dma.hbm_to_vmem [thread:$0]  %s381, 32, %s383, [#allocation9]
        $region32: #{_lambda_.1} parent=11 // pred_fallthru
          _
        // Predicated region
        $region33: #{_lambda_.1} parent=11 // pred_check
          %p386 = pneg %p218
        $region34: #{_lambda_.1} parent=11 // pred_check_branch
          %388 = sbr.rel (%p386) target = $region36
        $region35: #{_lambda_.1} parent=11 // pred_region
          %390 = vsyncadd [#allocation12], 0
          %s391 = sshll.u32 %s7, 4
          %s392 = int_to_ptr.hbm [resolvable:$true] %s391
          %s393 = sshll.u32 [#allocation11], 4
          %s394 = int_to_ptr.vmem [resolvable:$true] %s393
          %399 = dma.hbm_to_vmem [thread:$0]  %s392, 128, %s394, [#allocation12], 64, 64, 4
        $region36: #{_lambda_.1} parent=11 // pred_fallthru
          _
        // Predicated region
        $region37: #{_lambda_.1} parent=11 // pred_check
          %p400 = pneg %p239
        $region38: #{_lambda_.1} parent=11 // pred_check_branch
          %402 = sbr.rel (%p400) target = $region40
        $region39: #{_lambda_.1} parent=11 // pred_region
          %404 = vsyncadd [#allocation12], 0
          %s405 = sshll.u32 %s8, 4
          %s406 = int_to_ptr.hbm [resolvable:$true] %s405
          %s407 = sshll.u32 [#allocation13], 4
          %s408 = int_to_ptr.vmem [resolvable:$true] %s407
          %413 = dma.hbm_to_vmem [thread:$0]  %s406, 256, %s408, [#allocation12], 128, 128, 8
        $region40: #{_lambda_.1} parent=11 // pred_fallthru
          _
        // Predicated region
        $region41: #{_lambda_.1} parent=11 // pred_check
          %p414 = pneg %p260
        $region42: #{_lambda_.1} parent=11 // pred_check_branch
          %416 = sbr.rel (%p414) target = $region44
        $region43: #{_lambda_.1} parent=11 // pred_region
          %418 = vsyncadd [#allocation15], 0
          %s420 = sshll.u32 %s9, 4
          %s421 = int_to_ptr.hbm [resolvable:$true] %s420
          %s422 = sshll.u32 [#allocation14], 4
          %s423 = int_to_ptr.vmem [resolvable:$true] %s422
          %425 = dma.hbm_to_vmem [thread:$0]  %s421, 32, %s423, [#allocation15]
        $region44: #{_lambda_.1} parent=11 // pred_fallthru
          _
        // Predicated region
        $region45: #{_lambda_.1} parent=11 // pred_check
          %p426 = pneg %p281
        $region46: #{_lambda_.1} parent=11 // pred_check_branch
          %428 = sbr.rel (%p426) target = $region48
        $region47: #{_lambda_.1} parent=11 // pred_region
          %430 = vsyncadd [#allocation15], 0
          %s432 = sshll.u32 %s10, 4
          %s433 = int_to_ptr.hbm [resolvable:$true] %s432
          %s434 = sshll.u32 [#allocation16], 4
          %s435 = int_to_ptr.vmem [resolvable:$true] %s434
          %437 = dma.hbm_to_vmem [thread:$0]  %s433, 64, %s435, [#allocation15]
        $region48: #{_lambda_.1} parent=11 // pred_fallthru
          _
      $region12: #{_lambda_.1} parent=5 // pred_fallthru
        _
      %p438 = scmp.lt.s32.totalorder %s22, 16
      // Predicated region
      $region49: #{_lambda_.1} parent=5 // pred_check
        %p439 = pneg %p438
      $region50: #{_lambda_.1} parent=5 // pred_check_branch
        %441 = sbr.rel (%p439) target = $region52
      $region51: #{_lambda_.1} parent=5 // pred_region
        // Predicated region
        $region53: #{_lambda_.1} parent=51 // pred_check
          %p442 = pneg %p56
        $region54: #{_lambda_.1} parent=51 // pred_check_branch
          %444 = sbr.rel (%p442) target = $region56
        $region55: #{_lambda_.1} parent=51 // pred_region
          %p445 = scmp.lt.s32.totalorder %s29, 1
          %s446 = scalar_select %p445, %s29, 1
          %p447 = scmp.lt.s32.totalorder %s30, 8
          %s448 = scalar_select %p447, %s30, 8
          %s449 = smul.addr %s446, 9
          %s450 = sadd.s32 %s448, %s449
          %s451 = smul.addr %s450, 2
          %s452 = scalar_lea.vmem %s0, %s451
        $region56: #{_lambda_.1} parent=51 // pred_fallthru
          _
        // Predicated region
        $region57: #{_lambda_.1} parent=51 // pred_check
          %p453 = pneg %p86
        $region58: #{_lambda_.1} parent=51 // pred_check_branch
          %455 = sbr.rel (%p453) target = $region60
        $region59: #{_lambda_.1} parent=51 // pred_region
          %s456 = sadd.s32 %s30, 1
          %p457 = scmp.lt.s32.totalorder %s29, 1
          %s458 = scalar_select %p457, %s29, 1
          %p459 = scmp.lt.s32.totalorder %s456, 8
          %s460 = scalar_select %p459, %s456, 8
          %s461 = smul.addr %s458, 9
          %s462 = sadd.s32 %s460, %s461
          %s463 = smul.addr %s462, 2
          %s464 = scalar_lea.vmem %s1, %s463
          %s465 = sadd.s32 %s30, 1
        $region60: #{_lambda_.1} parent=51 // pred_fallthru
          _
      $region52: #{_lambda_.1} parent=5 // pred_fallthru
        _
      %p466 = scmp.le.s32.totalorder 1, %s22
      %p467 = scmp.lt.s32.totalorder %s22, 17
      %p468 = pnand %p466, %p467
      %p469 = pneg %p468
      // Predicated region
      $region61: #{_lambda_.1} parent=5 // pred_check
        _
      $region62: #{_lambda_.1} parent=5 // pred_check_branch
        %471 = sbr.rel (%p468) target = $region64
      $region63: #{_lambda_.1} parent=5 // pred_region
        %s472 = ssub.s32 %s22, 1
        // Predicated region
        $region65: #{_lambda_.1} parent=63 // pred_check
          %p473 = pneg %p113
        $region66: #{_lambda_.1} parent=63 // pred_check_branch
          %475 = sbr.rel (%p473) target = $region68
        $region67: #{_lambda_.1} parent=63 // pred_region
          %477 = dma.done [#allocation4], 32
        $region68: #{_lambda_.1} parent=63 // pred_fallthru
          _
        // Predicated region
        $region69: #{_lambda_.1} parent=63 // pred_check
          %p478 = pneg %p134
        $region70: #{_lambda_.1} parent=63 // pred_check_branch
          %480 = sbr.rel (%p478) target = $region72
        $region71: #{_lambda_.1} parent=63 // pred_region
          %482 = dma.done [#allocation6], 64
        $region72: #{_lambda_.1} parent=63 // pred_fallthru
          _
        // Predicated region
        $region73: #{_lambda_.1} parent=63 // pred_check
          %p483 = pneg %p155
        $region74: #{_lambda_.1} parent=63 // pred_check_branch
          %485 = sbr.rel (%p483) target = $region76
        $region75: #{_lambda_.1} parent=63 // pred_region
          %487 = dma.done [#allocation6], 864
        $region76: #{_lambda_.1} parent=63 // pred_fallthru
          _
        // Predicated region
        $region77: #{_lambda_.1} parent=63 // pred_check
          %p488 = pneg %p176
        $region78: #{_lambda_.1} parent=63 // pred_check_branch
          %490 = sbr.rel (%p488) target = $region80
        $region79: #{_lambda_.1} parent=63 // pred_region
          %492 = dma.done [#allocation9], 64
        $region80: #{_lambda_.1} parent=63 // pred_fallthru
          _
        // Predicated region
        $region81: #{_lambda_.1} parent=63 // pred_check
          %p493 = pneg %p197
        $region82: #{_lambda_.1} parent=63 // pred_check_branch
          %495 = sbr.rel (%p493) target = $region84
        $region83: #{_lambda_.1} parent=63 // pred_region
          %497 = dma.done [#allocation9], 32
        $region84: #{_lambda_.1} parent=63 // pred_fallthru
          _
        // Predicated region
        $region85: #{_lambda_.1} parent=63 // pred_check
          %p498 = pneg %p218
        $region86: #{_lambda_.1} parent=63 // pred_check_branch
          %500 = sbr.rel (%p498) target = $region88
        $region87: #{_lambda_.1} parent=63 // pred_region
          %502 = dma.done [#allocation12], 128
        $region88: #{_lambda_.1} parent=63 // pred_fallthru
          _
        // Predicated region
        $region89: #{_lambda_.1} parent=63 // pred_check
          %p503 = pneg %p239
        $region90: #{_lambda_.1} parent=63 // pred_check_branch
          %505 = sbr.rel (%p503) target = $region92
        $region91: #{_lambda_.1} parent=63 // pred_region
          %507 = dma.done [#allocation12], 256
        $region92: #{_lambda_.1} parent=63 // pred_fallthru
          _
        // Predicated region
        $region93: #{_lambda_.1} parent=63 // pred_check
          %p508 = pneg %p260
        $region94: #{_lambda_.1} parent=63 // pred_check_branch
          %510 = sbr.rel (%p508) target = $region96
        $region95: #{_lambda_.1} parent=63 // pred_region
          %512 = dma.done [#allocation15], 32
        $region96: #{_lambda_.1} parent=63 // pred_fallthru
          _
        // Predicated region
        $region97: #{_lambda_.1} parent=63 // pred_check
          %p513 = pneg %p281
        $region98: #{_lambda_.1} parent=63 // pred_check_branch
          %515 = sbr.rel (%p513) target = $region100
        $region99: #{_lambda_.1} parent=63 // pred_region
          %517 = dma.done [#allocation15], 64
        $region100: #{_lambda_.1} parent=63 // pred_fallthru
          _
        %p518 = scmp.lt.s32.totalorder %s31, 1
        %s519 = scalar_select %p518, %s31, 1
        %p520 = scmp.lt.s32.totalorder %s32, 8
        %s521 = scalar_select %p520, %s32, 8
        %s522 = smul.addr %s519, 9
        %s523 = sadd.s32 %s521, %s522
        %s524 = smul.addr %s523, 2
        %s525 = scalar_lea.vmem %s0, %s524
        %p526 = pneg %p62
        %p527 = pneg %p59
        %s528 = sadd.s32 %s32, 1
        %p529 = scmp.lt.s32.totalorder %s31, 1
        %s530 = scalar_select %p529, %s31, 1
        %p531 = scmp.lt.s32.totalorder %s528, 8
        %s532 = scalar_select %p531, %s528, 8
        %s533 = smul.addr %s530, 9
        %s534 = sadd.s32 %s532, %s533
        %s535 = smul.addr %s534, 2
        %s536 = scalar_lea.vmem %s1, %s535
        %p537 = pneg %p92
        %p538 = pneg %p89
        %p539 = pneg %p113
        %p540 = pneg %p110
        %p541 = pneg %p134
        %p542 = pneg %p131
        %p543 = pneg %p155
        %p544 = pneg %p152
        %p545 = pneg %p176
        %p546 = pneg %p173
        %p547 = pneg %p197
        %p548 = pneg %p194
        %p549 = pneg %p218
        %p550 = pneg %p215
        %p551 = pneg %p239
        %p552 = pneg %p236
        %p553 = pneg %p260
        %p554 = pneg %p257
        %p555 = pneg %p281
        %p556 = pneg %p278
        %p557 = pneg %p309
        %p558 = pneg %p306
        %p559 = scmp.lt.s32.totalorder %s31, 1
        %s560 = scalar_select %p559, %s31, 1
        %p561 = scmp.lt.s32.totalorder %s32, 7
        %s562 = scalar_select %p561, %s32, 7
        %s563 = smul.addr %s562, 4
        %s564 = smul.addr %s560, 32
        %s565 = sadd.s32 %s563, %s564
        %s566 = smul.addr %s565, 4
        %s567 = scalar_lea.vmem %s11, %s566
        %p568 = scmp.lt.s32.totalorder %s31, 1
        %s569 = scalar_select %p568, %s31, 1
        %p570 = scmp.lt.s32.totalorder %s32, 8
        %s571 = scalar_select %p570, %s32, 8
        %s572 = smul.addr %s569, 9
        %s573 = sadd.s32 %s571, %s572
        %s574 = smul.addr %s573, 2
        %s575 = scalar_lea.vmem %s0, %s574
        %s576 = sadd.s32 %s32, 1
        %p577 = scmp.lt.s32.totalorder %s31, 1
        %s578 = scalar_select %p577, %s31, 1
        %p579 = scmp.lt.s32.totalorder %s576, 8
        %s580 = scalar_select %p579, %s576, 8
        %s581 = smul.addr %s578, 9
        %s582 = sadd.s32 %s580, %s581
        %s583 = smul.addr %s582, 2
        %s584 = scalar_lea.vmem %s1, %s583
        %s585 = sadd.s32 %s32, 1
        %p586 = scmp.lt.s32.totalorder %s31, 1
        %s587 = scalar_select %p586, %s31, 1
        %p588 = scmp.lt.s32.totalorder %s32, 7
        %s589 = scalar_select %p588, %s32, 7
        %s590 = smul.addr %s589, 4
        %s591 = smul.addr %s587, 32
        %s592 = sadd.s32 %s590, %s591
        %s593 = smul.addr %s592, 4
        %s594 = scalar_lea.vmem %s11, %s593
        %v596 = vld [vmem:[#allocation3] sm:$0x3]
        %v597 = vld [vmem:[#allocation5] sm:$0xf]
        %v598 = vld [vmem:[%s575] sm:$0x3]
        %v599 = vunpack.c.l.bf16 %v598
        %v600 = vmul.f32 %v599, %v599
        %v601 = vpack.c.bf16 %v600, %v600
        %603 = vset.pattern.permute.xlu0 0
        %604 = vperm.xlu0 %603, %v597
        %v605 = vpop.permute.xlu0 %604
        %vm607 = vcmask 31744
        %v609 = vsel %vm607, %v596, 0
        %vm611 = vcmask 1041408
        %v613 = vsel %vm611, %v601, 0
        %615 = vmatpush.bf16.msra.mxu0 0
        %616 = vmatpush.bf16.msra.mxu0 0
        %617 = vmatpush.bf16.msra.mxu0 0
        %618 = vmatpush.bf16.msra.mxu0 0
        %619 = vmatpush.bf16.msra.mxu0 0
        %620 = vmatpush.bf16.msra.mxu0 0
        %621 = vmatpush.bf16.msra.mxu0 0
        %622 = vmatpush.bf16.msra.mxu0 %v613
        %623 = vmatmul.bf16.gmra.mxu0 %v609
        %v624 = vpop.f32.mrf.mxu0
        %v625 = vadd.f32 %v605, %v624
        %v626 = vpop.f32.mrf.mxu0
        %627 = vdwg.mxu0
        %v628 = vrsqrt.pop %v625
        %v629 = vmul.f32 %v628, %v625
        %v630 = vmul.f32 %v629, %v628
        %v631 = vmul.f32 0.5, %v630
        %v632 = vsub.f32 1.5, %v631
        %v633 = vmul.f32 %v628, %v632
        %v634 = vmul.f32 %v625, %v633
        %vm635 = vcmp.eq.f32.partialorder %v625, inf
        %v636 = vsel %vm635, %v625, %v634
        %vm637 = vcmp.eq.f32.partialorder %v625, 0.0
        %v638 = vand.u32 %v625, 2147483648
        %v639 = vsel %vm637, %v638, %v636
        %v640 = vmul.f32 %v599, %v639
        %v641 = vpack.c.bf16 %v640, %v640
        %vm642 = vcmask 656384
        %643 = vst.msk [vmem:[#allocation2] sm:$0x3] %vm642, %v641
        %vm644 = vcmask 738952
        %645 = vst.msk [vmem:[#allocation2] sm:$0x3] %vm644, 0
        %v646 = vld [vmem:[%s584] sm:$0x3]
        %v647 = vunpack.c.l.bf16 %v646
        %v648 = vmul.f32 %v647, %v647
        %v649 = vpack.c.bf16 %v648, %v648
        %v651 = vsel %vm611, %v649, 0
        %653 = vmatpush.bf16.msra.mxu0 0
        %654 = vmatpush.bf16.msra.mxu0 0
        %655 = vmatpush.bf16.msra.mxu0 0
        %656 = vmatpush.bf16.msra.mxu0 0
        %657 = vmatpush.bf16.msra.mxu0 0
        %658 = vmatpush.bf16.msra.mxu0 0
        %659 = vmatpush.bf16.msra.mxu0 0
        %660 = vmatpush.bf16.msra.mxu0 %v651
        %661 = vmatmul.bf16.gmra.mxu0 %v609
        %v662 = vpop.f32.mrf.mxu0
        %v663 = vadd.f32 %v605, %v662
        %v664 = vpop.f32.mrf.mxu0
        %665 = vdwg.mxu0
        %v666 = vrsqrt.pop %v663
        %v667 = vmul.f32 %v666, %v663
        %v668 = vmul.f32 %v667, %v666
        %v669 = vmul.f32 0.5, %v668
        %v670 = vsub.f32 1.5, %v669
        %v671 = vmul.f32 %v666, %v670
        %v672 = vmul.f32 %v663, %v671
        %vm673 = vcmp.eq.f32.partialorder %v663, inf
        %v674 = vsel %vm673, %v663, %v672
        %vm675 = vcmp.eq.f32.partialorder %v663, 0.0
        %v676 = vand.u32 %v663, 2147483648
        %v677 = vsel %vm675, %v676, %v674
        %v678 = vmul.f32 %v647, %v677
        %v679 = vpack.c.bf16 %v678, %v678
        %s680 = scalar_lea.vmem [#allocation2], 2
        %681 = vst.msk [vmem:[%s680] sm:$0x3] %vm642, %v679
        %682 = vst.msk [vmem:[%s680] sm:$0x3] %vm644, 0
        %v683 = vld [vmem:[#allocation2] sm:$0x3]
        %v684 = vld [vmem:[%s680] sm:$0x3]
        %v685 = vld [vmem:[#allocation8] sm:$0xf]
        %v686 = vld [vmem:[#allocation13] sm:$0xff]
        %v687 = vld [vmem:[#allocation13 + $0x8] sm:$0xff]
        %v688 = vld [vmem:[#allocation16] sm:$0xf]
        %v689 = vld [vmem:[#allocation11] sm:$0xf]
        %v690 = vld [vmem:[#allocation11 + $0x4] sm:$0xf]
        %v691 = vld [vmem:[#allocation14] sm:$0x3]
        %v692 = vld [vmem:[#allocation7] sm:$0x3]
        %694 = vset.pattern.permute.xlu0 0
        %695 = vperm.xlu0 %694, %v685
        %v696 = vpop.permute.xlu0 %695
        %v699 = vsel %vm607, %v692, 0
        %v702 = vsel %vm611, %v683, 0
        %704 = vmatpush.bf16.msra.mxu0 0
        %705 = vmatpush.bf16.msra.mxu0 0
        %706 = vmatpush.bf16.msra.mxu0 0
        %707 = vmatpush.bf16.msra.mxu0 0
        %708 = vmatpush.bf16.msra.mxu0 0
        %709 = vmatpush.bf16.msra.mxu0 0
        %710 = vmatpush.bf16.msra.mxu0 0
        %711 = vmatpush.bf16.msra.mxu0 %v702
        %712 = vmatmul.bf16.gmra.mxu0 %v699
        %v713 = vpop.f32.mrf.mxu0
        %v714 = vadd.f32 %v696, %v713
        %v715 = vpop.f32.mrf.mxu0
        %716 = vdwg.mxu0
        %v717 = vpack.c.bf16 %v714, %v714
        %719 = vset.pattern.permute.xlu0 0
        %720 = vperm.xlu0 %719, %v686
        %v721 = vpop.permute.xlu0 %720
        %724 = vset.pattern.permute.xlu0 0
        %725 = vperm.xlu0 %724, %v687
        %v726 = vpop.permute.xlu0 %725
        %v730 = vunpack.c.l.b16 %v689
        %v731 = vunpack.c.l.b16 %v690
        %v732 = vpack.c.b16 %v731, %v730
        %v734 = vsel %vm607, %v732, 0
        %v737 = vsel %vm611, %v717, 0
        %739 = vmatpush.bf16.msra.mxu0 0
        %740 = vmatpush.bf16.msra.mxu0 0
        %741 = vmatpush.bf16.msra.mxu0 0
        %742 = vmatpush.bf16.msra.mxu0 0
        %743 = vmatpush.bf16.msra.mxu0 0
        %744 = vmatpush.bf16.msra.mxu0 0
        %745 = vmatpush.bf16.msra.mxu0 0
        %746 = vmatpush.bf16.msra.mxu0 %v737
        %747 = vmatmul.bf16.gmra.mxu0 %v734
        %v748 = vpop.f32.mrf.mxu0
        %v749 = vadd.f32 %v721, %v748
        %v750 = vpop.f32.mrf.mxu0
        %v751 = vadd.f32 %v726, %v750
        %752 = vdwg.mxu0
        %v753 = vpack.c.bf16 %v749, %v749
        %v754 = vpack.c.bf16 %v751, %v751
        %v755 = vunpack.c.l.bf16 %v753
        %v756 = vunpack.c.l.bf16 %v754
        %v757 = vmul.f32 %v755, 0.5
        %v758 = vmul.f32 %v756, 0.5
        %v759 = vpack.c.bf16 %v757, %v757
        %v760 = vpack.c.bf16 %v758, %v758
        %v761 = vmul.f32 %v755, %v755
        %v762 = vmul.f32 %v756, %v756
        %v763 = vpack.c.bf16 %v761, %v761
        %v764 = vpack.c.bf16 %v762, %v762
        %v765 = vunpack.c.l.bf16 %v763
        %v766 = vunpack.c.l.bf16 %v764
        %v767 = vmul.f32 %v765, %v755
        %v768 = vmul.f32 %v766, %v756
        %v769 = vpack.c.bf16 %v767, %v767
        %v770 = vpack.c.bf16 %v768, %v768
        %v771 = vunpack.c.l.bf16 %v769
        %v772 = vunpack.c.l.bf16 %v770
        %v773 = vmul.f32 %v771, 0.044677734
        %v774 = vmul.f32 %v772, 0.044677734
        %v775 = vpack.c.bf16 %v773, %v773
        %v776 = vpack.c.bf16 %v774, %v774
        %v777 = vunpack.c.l.bf16 %v775
        %v778 = vunpack.c.l.bf16 %v776
        %v779 = vadd.f32 %v755, %v777
        %v780 = vadd.f32 %v756, %v778
        %v781 = vpack.c.bf16 %v779, %v779
        %v782 = vpack.c.bf16 %v780, %v780
        %v783 = vunpack.c.l.bf16 %v781
        %v784 = vunpack.c.l.bf16 %v782
        %v785 = vmul.f32 %v783, 0.796875
        %v786 = vmul.f32 %v784, 0.796875
        %v787 = vpack.c.bf16 %v785, %v785
        %v788 = vpack.c.bf16 %v786, %v786
        %v789 = vunpack.c.l.bf16 %v787
        %v790 = vunpack.c.l.bf16 %v788
        %v791 = vtanh.pop %v789
        %v792 = vtanh.pop %v790
        %v793 = vpack.c.bf16 %v791, %v791
        %v794 = vpack.c.bf16 %v792, %v792
        %v795 = vunpack.c.l.bf16 %v793
        %v796 = vunpack.c.l.bf16 %v794
        %v797 = vadd.f32 %v795, 1.0
        %v798 = vadd.f32 %v796, 1.0
        %v799 = vpack.c.bf16 %v797, %v797
        %v800 = vpack.c.bf16 %v798, %v798
        %v801 = vunpack.c.l.bf16 %v759
        %v802 = vunpack.c.l.bf16 %v760
        %v803 = vunpack.c.l.bf16 %v799
        %v804 = vunpack.c.l.bf16 %v800
        %v805 = vmul.f32 %v801, %v803
        %v806 = vmul.f32 %v802, %v804
        %v807 = vpack.c.bf16 %v806, %v805
        %809 = vset.pattern.permute.xlu0 0
        %810 = vperm.xlu0 %809, %v688
        %v811 = vpop.permute.xlu0 %810
        %vm813 = vcmask 130048
        %v815 = vsel %vm813, %v691, 0
        %817 = vmatpush.bf16.msra.mxu0 0
        %818 = vmatpush.bf16.msra.mxu0 0
        %819 = vmatpush.bf16.msra.mxu0 0
        %820 = vmatpush.bf16.msra.mxu0 0
        %821 = vmatpush.bf16.msra.mxu0 0
        %822 = vmatpush.bf16.msra.mxu0 0
        %823 = vmatpush.bf16.msra.mxu0 0
        %824 = vmatpush.bf16.msra.mxu0 %v807
        %825 = vmatmul.bf16.gmra.mxu0 %v815
        %v826 = vpop.f32.mrf.mxu0
        %v827 = vadd.f32 %v811, %v826
        %v828 = vpop.f32.mrf.mxu0
        %829 = vdwg.mxu0
        %v830 = vld [vmem:[#allocation10] sm:$0x3]
        %v832 = vsel %vm607, %v830, 0
        %834 = vmatpush.bf16.msra.mxu0 0
        %835 = vmatpush.bf16.msra.mxu0 0
        %836 = vmatpush.bf16.msra.mxu0 0
        %837 = vmatpush.bf16.msra.mxu0 0
        %838 = vmatpush.bf16.msra.mxu0 0
        %839 = vmatpush.bf16.msra.mxu0 0
        %840 = vmatpush.bf16.msra.mxu0 0
        %841 = vmatpush.bf16.msra.mxu0 %v702
        %842 = vmatmul.bf16.gmra.mxu0 %v832
        %v843 = vpop.f32.mrf.mxu0
        %v844 = vadd.f32 0.0, %v843
        %v845 = vpop.f32.mrf.mxu0
        %846 = vdwg.mxu0
        %v847 = vadd.f32 %v827, %v844
        %v848 = vpack.c.bf16 %v847, %v847
        %849 = vst.msk [vmem:[%s594] sm:$0x3] %vm642, %v848
        %s850 = scalar_lea.vmem [#allocation7], 2
        %v851 = vld [vmem:[%s850] sm:$0x3]
        %s852 = scalar_lea.vmem [#allocation7], 4
        %v853 = vld [vmem:[%s852] sm:$0x3]
        %854 = vst [vmem:[#allocation1] ss:$4 sm:$0xff] %v683
        %v855 = vld.sshfl [vmem:[#allocation1] sm:$0xff pattern:$0x73625140]
        %857 = vrot.lane.b32.xlu0 %v855, 127
        %v858 = vpop.permute.xlu0 %857
        %v860 = vsel %vm607, %v853, 0
        %v863 = vsel %vm611, %v858, 0
        %865 = vmatpush.bf16.msra.mxu0 0
        %866 = vmatpush.bf16.msra.mxu0 0
        %867 = vmatpush.bf16.msra.mxu0 0
        %868 = vmatpush.bf16.msra.mxu0 0
        %869 = vmatpush.bf16.msra.mxu0 0
        %870 = vmatpush.bf16.msra.mxu0 0
        %871 = vmatpush.bf16.msra.mxu0 0
        %872 = vmatpush.bf16.msra.mxu0 %v863
        %873 = vmatmul.bf16.gmra.mxu0 %v860
        %v874 = vpop.f32.mrf.mxu0
        %v875 = vadd.f32 0.0, %v874
        %v876 = vpop.f32.mrf.mxu0
        %877 = vdwg.mxu0
        %v879 = vsel %vm607, %v851, 0
        %881 = vmatpush.bf16.msra.mxu0 0
        %882 = vmatpush.bf16.msra.mxu0 0
        %883 = vmatpush.bf16.msra.mxu0 0
        %884 = vmatpush.bf16.msra.mxu0 0
        %885 = vmatpush.bf16.msra.mxu0 0
        %886 = vmatpush.bf16.msra.mxu0 0
        %887 = vmatpush.bf16.msra.mxu0 0
        %888 = vmatpush.bf16.msra.mxu0 %v702
        %889 = vmatmul.bf16.gmra.mxu0 %v879
        %v890 = vpop.f32.mrf.mxu0
        %v891 = vadd.f32 %v875, %v890
        %v892 = vpop.f32.mrf.mxu0
        %893 = vdwg.mxu0
        %v894 = vadd.f32 %v891, %v696
        %v895 = vpack.c.bf16 %v894, %v894
        %v897 = vsel %vm611, %v895, 0
        %899 = vmatpush.bf16.msra.mxu0 0
        %900 = vmatpush.bf16.msra.mxu0 0
        %901 = vmatpush.bf16.msra.mxu0 0
        %902 = vmatpush.bf16.msra.mxu0 0
        %903 = vmatpush.bf16.msra.mxu0 0
        %904 = vmatpush.bf16.msra.mxu0 0
        %905 = vmatpush.bf16.msra.mxu0 0
        %906 = vmatpush.bf16.msra.mxu0 %v897
        %907 = vmatmul.bf16.gmra.mxu0 %v734
        %v908 = vpop.f32.mrf.mxu0
        %v909 = vadd.f32 %v721, %v908
        %v910 = vpop.f32.mrf.mxu0
        %v911 = vadd.f32 %v726, %v910
        %912 = vdwg.mxu0
        %v913 = vpack.c.bf16 %v909, %v909
        %v914 = vpack.c.bf16 %v911, %v911
        %v915 = vunpack.c.l.bf16 %v913
        %v916 = vunpack.c.l.bf16 %v914
        %v917 = vmul.f32 %v915, 0.5
        %v918 = vmul.f32 %v916, 0.5
        %v919 = vpack.c.bf16 %v917, %v917
        %v920 = vpack.c.bf16 %v918, %v918
        %v921 = vmul.f32 %v915, %v915
        %v922 = vmul.f32 %v916, %v916
        %v923 = vpack.c.bf16 %v921, %v921
        %v924 = vpack.c.bf16 %v922, %v922
        %v925 = vunpack.c.l.bf16 %v923
        %v926 = vunpack.c.l.bf16 %v924
        %v927 = vmul.f32 %v925, %v915
        %v928 = vmul.f32 %v926, %v916
        %v929 = vpack.c.bf16 %v927, %v927
        %v930 = vpack.c.bf16 %v928, %v928
        %v931 = vunpack.c.l.bf16 %v929
        %v932 = vunpack.c.l.bf16 %v930
        %v933 = vmul.f32 %v931, 0.044677734
        %v934 = vmul.f32 %v932, 0.044677734
        %v935 = vpack.c.bf16 %v933, %v933
        %v936 = vpack.c.bf16 %v934, %v934
        %v937 = vunpack.c.l.bf16 %v935
        %v938 = vunpack.c.l.bf16 %v936
        %v939 = vadd.f32 %v915, %v937
        %v940 = vadd.f32 %v916, %v938
        %v941 = vpack.c.bf16 %v939, %v939
        %v942 = vpack.c.bf16 %v940, %v940
        %v943 = vunpack.c.l.bf16 %v941
        %v944 = vunpack.c.l.bf16 %v942
        %v945 = vmul.f32 %v943, 0.796875
        %v946 = vmul.f32 %v944, 0.796875
        %v947 = vpack.c.bf16 %v945, %v945
        %v948 = vpack.c.bf16 %v946, %v946
        %v949 = vunpack.c.l.bf16 %v947
        %v950 = vunpack.c.l.bf16 %v948
        %v951 = vtanh.pop %v949
        %v952 = vtanh.pop %v950
        %v953 = vpack.c.bf16 %v951, %v951
        %v954 = vpack.c.bf16 %v952, %v952
        %v955 = vunpack.c.l.bf16 %v953
        %v956 = vunpack.c.l.bf16 %v954
        %v957 = vadd.f32 %v955, 1.0
        %v958 = vadd.f32 %v956, 1.0
        %v959 = vpack.c.bf16 %v957, %v957
        %v960 = vpack.c.bf16 %v958, %v958
        %v961 = vunpack.c.l.bf16 %v919
        %v962 = vunpack.c.l.bf16 %v920
        %v963 = vunpack.c.l.bf16 %v959
        %v964 = vunpack.c.l.bf16 %v960
        %v965 = vmul.f32 %v961, %v963
        %v966 = vmul.f32 %v962, %v964
        %v967 = vpack.c.bf16 %v966, %v965
        %968 = vmatpush.bf16.msra.mxu0 0
        %969 = vmatpush.bf16.msra.mxu0 0
        %970 = vmatpush.bf16.msra.mxu0 0
        %971 = vmatpush.bf16.msra.mxu0 0
        %972 = vmatpush.bf16.msra.mxu0 0
        %973 = vmatpush.bf16.msra.mxu0 0
        %974 = vmatpush.bf16.msra.mxu0 0
        %975 = vmatpush.bf16.msra.mxu0 %v967
        %976 = vmatmul.bf16.gmra.mxu0 %v815
        %v977 = vpop.f32.mrf.mxu0
        %v978 = vadd.f32 %v811, %v977
        %v979 = vpop.f32.mrf.mxu0
        %980 = vdwg.mxu0
        %v981 = vpack.c.bf16 %v978, %v978
        %v983 = vrot.slane %v981, 6
        %vm985 = vcmask 658434
        %986 = vst.msk [vmem:[%s594] sm:$0xc] %vm985, %v983
        %s987 = scalar_lea.vmem [#allocation7], 6
        %v988 = vld [vmem:[%s987] sm:$0x3]
        %s989 = scalar_lea.vmem [#allocation7], 8
        %v990 = vld [vmem:[%s989] sm:$0x3]
        %991 = vst [vmem:[#allocation1] ss:$4 sm:$0xff] %v683
        %v992 = vld.sshfl [vmem:[#allocation1] sm:$0xff pattern:$0x73625140]
        %994 = vrot.lane.b32.xlu0 %v992, 119
        %v995 = vpop.permute.xlu0 %994
        %v997 = vsel %vm607, %v990, 0
        %v1000 = vsel %vm611, %v995, 0
        %1002 = vmatpush.bf16.msra.mxu0 0
        %1003 = vmatpush.bf16.msra.mxu0 0
        %1004 = vmatpush.bf16.msra.mxu0 0
        %1005 = vmatpush.bf16.msra.mxu0 0
        %1006 = vmatpush.bf16.msra.mxu0 0
        %1007 = vmatpush.bf16.msra.mxu0 0
        %1008 = vmatpush.bf16.msra.mxu0 0
        %1009 = vmatpush.bf16.msra.mxu0 %v1000
        %1010 = vmatmul.bf16.gmra.mxu0 %v997
        %v1011 = vpop.f32.mrf.mxu0
        %v1012 = vadd.f32 0.0, %v1011
        %v1013 = vpop.f32.mrf.mxu0
        %1014 = vdwg.mxu0
        %v1016 = vsel %vm607, %v988, 0
        %1018 = vmatpush.bf16.msra.mxu0 0
        %1019 = vmatpush.bf16.msra.mxu0 0
        %1020 = vmatpush.bf16.msra.mxu0 0
        %1021 = vmatpush.bf16.msra.mxu0 0
        %1022 = vmatpush.bf16.msra.mxu0 0
        %1023 = vmatpush.bf16.msra.mxu0 0
        %1024 = vmatpush.bf16.msra.mxu0 0
        %1025 = vmatpush.bf16.msra.mxu0 %v702
        %1026 = vmatmul.bf16.gmra.mxu0 %v1016
        %v1027 = vpop.f32.mrf.mxu0
        %v1028 = vadd.f32 %v1012, %v1027
        %v1029 = vpop.f32.mrf.mxu0
        %1030 = vdwg.mxu0
        %v1031 = vadd.f32 %v1028, %v696
        %v1032 = vpack.c.bf16 %v1031, %v1031
        %v1034 = vsel %vm611, %v1032, 0
        %1036 = vmatpush.bf16.msra.mxu0 0
        %1037 = vmatpush.bf16.msra.mxu0 0
        %1038 = vmatpush.bf16.msra.mxu0 0
        %1039 = vmatpush.bf16.msra.mxu0 0
        %1040 = vmatpush.bf16.msra.mxu0 0
        %1041 = vmatpush.bf16.msra.mxu0 0
        %1042 = vmatpush.bf16.msra.mxu0 0
        %1043 = vmatpush.bf16.msra.mxu0 %v1034
        %1044 = vmatmul.bf16.gmra.mxu0 %v734
        %v1045 = vpop.f32.mrf.mxu0
        %v1046 = vadd.f32 %v721, %v1045
        %v1047 = vpop.f32.mrf.mxu0
        %v1048 = vadd.f32 %v726, %v1047
        %1049 = vdwg.mxu0
        %v1050 = vpack.c.bf16 %v1046, %v1046
        %v1051 = vpack.c.bf16 %v1048, %v1048
        %v1052 = vunpack.c.l.bf16 %v1050
        %v1053 = vunpack.c.l.bf16 %v1051
        %v1054 = vmul.f32 %v1052, 0.5
        %v1055 = vmul.f32 %v1053, 0.5
        %v1056 = vpack.c.bf16 %v1054, %v1054
        %v1057 = vpack.c.bf16 %v1055, %v1055
        %v1058 = vmul.f32 %v1052, %v1052
        %v1059 = vmul.f32 %v1053, %v1053
        %v1060 = vpack.c.bf16 %v1058, %v1058
        %v1061 = vpack.c.bf16 %v1059, %v1059
        %v1062 = vunpack.c.l.bf16 %v1060
        %v1063 = vunpack.c.l.bf16 %v1061
        %v1064 = vmul.f32 %v1062, %v1052
        %v1065 = vmul.f32 %v1063, %v1053
        %v1066 = vpack.c.bf16 %v1064, %v1064
        %v1067 = vpack.c.bf16 %v1065, %v1065
        %v1068 = vunpack.c.l.bf16 %v1066
        %v1069 = vunpack.c.l.bf16 %v1067
        %v1070 = vmul.f32 %v1068, 0.044677734
        %v1071 = vmul.f32 %v1069, 0.044677734
        %v1072 = vpack.c.bf16 %v1070, %v1070
        %v1073 = vpack.c.bf16 %v1071, %v1071
        %v1074 = vunpack.c.l.bf16 %v1072
        %v1075 = vunpack.c.l.bf16 %v1073
        %v1076 = vadd.f32 %v1052, %v1074
        %v1077 = vadd.f32 %v1053, %v1075
        %v1078 = vpack.c.bf16 %v1076, %v1076
        %v1079 = vpack.c.bf16 %v1077, %v1077
        %v1080 = vunpack.c.l.bf16 %v1078
        %v1081 = vunpack.c.l.bf16 %v1079
        %v1082 = vmul.f32 %v1080, 0.796875
        %v1083 = vmul.f32 %v1081, 0.796875
        %v1084 = vpack.c.bf16 %v1082, %v1082
        %v1085 = vpack.c.bf16 %v1083, %v1083
        %v1086 = vunpack.c.l.bf16 %v1084
        %v1087 = vunpack.c.l.bf16 %v1085
        %v1088 = vtanh.pop %v1086
        %v1089 = vtanh.pop %v1087
        %v1090 = vpack.c.bf16 %v1088, %v1088
        %v1091 = vpack.c.bf16 %v1089, %v1089
        %v1092 = vunpack.c.l.bf16 %v1090
        %v1093 = vunpack.c.l.bf16 %v1091
        %v1094 = vadd.f32 %v1092, 1.0
        %v1095 = vadd.f32 %v1093, 1.0
        %v1096 = vpack.c.bf16 %v1094, %v1094
        %v1097 = vpack.c.bf16 %v1095, %v1095
        %v1098 = vunpack.c.l.bf16 %v1056
        %v1099 = vunpack.c.l.bf16 %v1057
        %v1100 = vunpack.c.l.bf16 %v1096
        %v1101 = vunpack.c.l.bf16 %v1097
        %v1102 = vmul.f32 %v1098, %v1100
        %v1103 = vmul.f32 %v1099, %v1101
        %v1104 = vpack.c.bf16 %v1103, %v1102
        %1105 = vmatpush.bf16.msra.mxu0 0
        %1106 = vmatpush.bf16.msra.mxu0 0
        %1107 = vmatpush.bf16.msra.mxu0 0
        %1108 = vmatpush.bf16.msra.mxu0 0
        %1109 = vmatpush.bf16.msra.mxu0 0
        %1110 = vmatpush.bf16.msra.mxu0 0
        %1111 = vmatpush.bf16.msra.mxu0 0
        %1112 = vmatpush.bf16.msra.mxu0 %v1104
        %1113 = vmatmul.bf16.gmra.mxu0 %v815
        %v1114 = vpop.f32.mrf.mxu0
        %v1115 = vadd.f32 %v811, %v1114
        %v1116 = vpop.f32.mrf.mxu0
        %1117 = vdwg.mxu0
        %v1118 = vpack.c.bf16 %v1115, %v1115
        %1119 = vst.msk [vmem:[%s594 + $0x4] sm:$0x3] %vm642, %v1118
        %s1120 = scalar_lea.vmem [#allocation7], 10
        %v1121 = vld [vmem:[%s1120] sm:$0x3]
        %s1122 = scalar_lea.vmem [#allocation7], 12
        %v1123 = vld [vmem:[%s1122] sm:$0x3]
        %1124 = vst [vmem:[#allocation1] ss:$4 sm:$0xff] %v683
        %v1125 = vld.sshfl [vmem:[#allocation1] sm:$0xff pattern:$0x73625140]
        %1127 = vrot.lane.b32.xlu0 %v1125, 127
        %v1128 = vpop.permute.xlu0 %1127
        %v1130 = vsel %vm607, %v1123, 0
        %v1133 = vsel %vm611, %v1128, 0
        %1135 = vmatpush.bf16.msra.mxu0 0
        %1136 = vmatpush.bf16.msra.mxu0 0
        %1137 = vmatpush.bf16.msra.mxu0 0
        %1138 = vmatpush.bf16.msra.mxu0 0
        %1139 = vmatpush.bf16.msra.mxu0 0
        %1140 = vmatpush.bf16.msra.mxu0 0
        %1141 = vmatpush.bf16.msra.mxu0 0
        %1142 = vmatpush.bf16.msra.mxu0 %v1133
        %1143 = vmatmul.bf16.gmra.mxu0 %v1130
        %v1144 = vpop.f32.mrf.mxu0
        %v1145 = vadd.f32 0.0, %v1144
        %v1146 = vpop.f32.mrf.mxu0
        %1147 = vdwg.mxu0
        %v1149 = vsel %vm607, %v1121, 0
        %1151 = vmatpush.bf16.msra.mxu0 0
        %1152 = vmatpush.bf16.msra.mxu0 0
        %1153 = vmatpush.bf16.msra.mxu0 0
        %1154 = vmatpush.bf16.msra.mxu0 0
        %1155 = vmatpush.bf16.msra.mxu0 0
        %1156 = vmatpush.bf16.msra.mxu0 0
        %1157 = vmatpush.bf16.msra.mxu0 0
        %1158 = vmatpush.bf16.msra.mxu0 %v702
        %1159 = vmatmul.bf16.gmra.mxu0 %v1149
        %v1160 = vpop.f32.mrf.mxu0
        %v1161 = vadd.f32 %v1145, %v1160
        %v1162 = vpop.f32.mrf.mxu0
        %1163 = vdwg.mxu0
        %s1164 = scalar_lea.vmem [#allocation7], 14
        %v1165 = vld [vmem:[%s1164] sm:$0x3]
        %1166 = vst [vmem:[#allocation1] ss:$4 sm:$0xff] %v683
        %v1167 = vld.sshfl [vmem:[#allocation1] sm:$0xff pattern:$0x73625140]
        %1169 = vrot.lane.b32.xlu0 %v1167, 119
        %v1170 = vpop.permute.xlu0 %1169
        %v1172 = vsel %vm607, %v1165, 0
        %v1175 = vsel %vm611, %v1170, 0
        %1177 = vmatpush.bf16.msra.mxu0 0
        %1178 = vmatpush.bf16.msra.mxu0 0
        %1179 = vmatpush.bf16.msra.mxu0 0
        %1180 = vmatpush.bf16.msra.mxu0 0
        %1181 = vmatpush.bf16.msra.mxu0 0
        %1182 = vmatpush.bf16.msra.mxu0 0
        %1183 = vmatpush.bf16.msra.mxu0 0
        %1184 = vmatpush.bf16.msra.mxu0 %v1175
        %1185 = vmatmul.bf16.gmra.mxu0 %v1172
        %v1186 = vpop.f32.mrf.mxu0
        %v1187 = vadd.f32 0.0, %v1186
        %v1188 = vpop.f32.mrf.mxu0
        %1189 = vdwg.mxu0
        %v1190 = vadd.f32 %v1161, %v1187
        %s1191 = scalar_lea.vmem [#allocation7], 16
        %v1192 = vld [vmem:[%s1191] sm:$0x3]
        %1193 = vst [vmem:[#allocation1] ss:$4 sm:$0xff] %v683
        %v1194 = vld.sshfl [vmem:[#allocation1] sm:$0xff pattern:$0x73625140]
        %1196 = vrot.lane.b32.xlu0 %v1194, 118
        %v1197 = vpop.permute.xlu0 %1196
        %v1199 = vsel %vm607, %v1192, 0
        %v1202 = vsel %vm611, %v1197, 0
        %1204 = vmatpush.bf16.msra.mxu0 0
        %1205 = vmatpush.bf16.msra.mxu0 0
        %1206 = vmatpush.bf16.msra.mxu0 0
        %1207 = vmatpush.bf16.msra.mxu0 0
        %1208 = vmatpush.bf16.msra.mxu0 0
        %1209 = vmatpush.bf16.msra.mxu0 0
        %1210 = vmatpush.bf16.msra.mxu0 0
        %1211 = vmatpush.bf16.msra.mxu0 %v1202
        %1212 = vmatmul.bf16.gmra.mxu0 %v1199
        %v1213 = vpop.f32.mrf.mxu0
        %v1214 = vadd.f32 0.0, %v1213
        %v1215 = vpop.f32.mrf.mxu0
        %1216 = vdwg.mxu0
        %v1217 = vadd.f32 %v1190, %v1214
        %v1218 = vadd.f32 %v1217, %v696
        %v1219 = vpack.c.bf16 %v1218, %v1218
        %v1221 = vsel %vm611, %v1219, 0
        %1223 = vmatpush.bf16.msra.mxu0 0
        %1224 = vmatpush.bf16.msra.mxu0 0
        %1225 = vmatpush.bf16.msra.mxu0 0
        %1226 = vmatpush.bf16.msra.mxu0 0
        %1227 = vmatpush.bf16.msra.mxu0 0
        %1228 = vmatpush.bf16.msra.mxu0 0
        %1229 = vmatpush.bf16.msra.mxu0 0
        %1230 = vmatpush.bf16.msra.mxu0 %v1221
        %1231 = vmatmul.bf16.gmra.mxu0 %v734
        %v1232 = vpop.f32.mrf.mxu0
        %v1233 = vadd.f32 %v721, %v1232
        %v1234 = vpop.f32.mrf.mxu0
        %v1235 = vadd.f32 %v726, %v1234
        %1236 = vdwg.mxu0
        %v1237 = vpack.c.bf16 %v1233, %v1233
        %v1238 = vpack.c.bf16 %v1235, %v1235
        %v1239 = vunpack.c.l.bf16 %v1237
        %v1240 = vunpack.c.l.bf16 %v1238
        %v1241 = vmul.f32 %v1239, 0.5
        %v1242 = vmul.f32 %v1240, 0.5
        %v1243 = vpack.c.bf16 %v1241, %v1241
        %v1244 = vpack.c.bf16 %v1242, %v1242
        %v1245 = vmul.f32 %v1239, %v1239
        %v1246 = vmul.f32 %v1240, %v1240
        %v1247 = vpack.c.bf16 %v1245, %v1245
        %v1248 = vpack.c.bf16 %v1246, %v1246
        %v1249 = vunpack.c.l.bf16 %v1247
        %v1250 = vunpack.c.l.bf16 %v1248
        %v1251 = vmul.f32 %v1249, %v1239
        %v1252 = vmul.f32 %v1250, %v1240
        %v1253 = vpack.c.bf16 %v1251, %v1251
        %v1254 = vpack.c.bf16 %v1252, %v1252
        %v1255 = vunpack.c.l.bf16 %v1253
        %v1256 = vunpack.c.l.bf16 %v1254
        %v1257 = vmul.f32 %v1255, 0.044677734
        %v1258 = vmul.f32 %v1256, 0.044677734
        %v1259 = vpack.c.bf16 %v1257, %v1257
        %v1260 = vpack.c.bf16 %v1258, %v1258
        %v1261 = vunpack.c.l.bf16 %v1259
        %v1262 = vunpack.c.l.bf16 %v1260
        %v1263 = vadd.f32 %v1239, %v1261
        %v1264 = vadd.f32 %v1240, %v1262
        %v1265 = vpack.c.bf16 %v1263, %v1263
        %v1266 = vpack.c.bf16 %v1264, %v1264
        %v1267 = vunpack.c.l.bf16 %v1265
        %v1268 = vunpack.c.l.bf16 %v1266
        %v1269 = vmul.f32 %v1267, 0.796875
        %v1270 = vmul.f32 %v1268, 0.796875
        %v1271 = vpack.c.bf16 %v1269, %v1269
        %v1272 = vpack.c.bf16 %v1270, %v1270
        %v1273 = vunpack.c.l.bf16 %v1271
        %v1274 = vunpack.c.l.bf16 %v1272
        %v1275 = vtanh.pop %v1273
        %v1276 = vtanh.pop %v1274
        %v1277 = vpack.c.bf16 %v1275, %v1275
        %v1278 = vpack.c.bf16 %v1276, %v1276
        %v1279 = vunpack.c.l.bf16 %v1277
        %v1280 = vunpack.c.l.bf16 %v1278
        %v1281 = vadd.f32 %v1279, 1.0
        %v1282 = vadd.f32 %v1280, 1.0
        %v1283 = vpack.c.bf16 %v1281, %v1281
        %v1284 = vpack.c.bf16 %v1282, %v1282
        %v1285 = vunpack.c.l.bf16 %v1243
        %v1286 = vunpack.c.l.bf16 %v1244
        %v1287 = vunpack.c.l.bf16 %v1283
        %v1288 = vunpack.c.l.bf16 %v1284
        %v1289 = vmul.f32 %v1285, %v1287
        %v1290 = vmul.f32 %v1286, %v1288
        %v1291 = vpack.c.bf16 %v1290, %v1289
        %1292 = vmatpush.bf16.msra.mxu0 0
        %1293 = vmatpush.bf16.msra.mxu0 0
        %1294 = vmatpush.bf16.msra.mxu0 0
        %1295 = vmatpush.bf16.msra.mxu0 0
        %1296 = vmatpush.bf16.msra.mxu0 0
        %1297 = vmatpush.bf16.msra.mxu0 0
        %1298 = vmatpush.bf16.msra.mxu0 0
        %1299 = vmatpush.bf16.msra.mxu0 %v1291
        %1300 = vmatmul.bf16.gmra.mxu0 %v815
        %v1301 = vpop.f32.mrf.mxu0
        %v1302 = vadd.f32 %v811, %v1301
        %v1303 = vpop.f32.mrf.mxu0
        %1304 = vdwg.mxu0
        %v1305 = vpack.c.bf16 %v1302, %v1302
        %v1307 = vrot.slane %v1305, 6
        %1309 = vst.msk [vmem:[%s594 + $0x4] sm:$0xc] %vm985, %v1307
        %s1310 = scalar_lea.vmem [#allocation7], 18
        %v1311 = vld [vmem:[%s1310] sm:$0x3]
        %s1312 = scalar_lea.vmem [#allocation7], 20
        %v1313 = vld [vmem:[%s1312] sm:$0x3]
        %v1315 = vsel %vm607, %v1313, 0
        %v1318 = vsel %vm611, %v684, 0
        %1320 = vmatpush.bf16.msra.mxu0 0
        %1321 = vmatpush.bf16.msra.mxu0 0
        %1322 = vmatpush.bf16.msra.mxu0 0
        %1323 = vmatpush.bf16.msra.mxu0 0
        %1324 = vmatpush.bf16.msra.mxu0 0
        %1325 = vmatpush.bf16.msra.mxu0 0
        %1326 = vmatpush.bf16.msra.mxu0 0
        %1327 = vmatpush.bf16.msra.mxu0 %v1318
        %1328 = vmatmul.bf16.gmra.mxu0 %v1315
        %v1329 = vpop.f32.mrf.mxu0
        %v1330 = vadd.f32 0.0, %v1329
        %v1331 = vpop.f32.mrf.mxu0
        %1332 = vdwg.mxu0
        %v1334 = vsel %vm607, %v1311, 0
        %1336 = vmatpush.bf16.msra.mxu0 0
        %1337 = vmatpush.bf16.msra.mxu0 0
        %1338 = vmatpush.bf16.msra.mxu0 0
        %1339 = vmatpush.bf16.msra.mxu0 0
        %1340 = vmatpush.bf16.msra.mxu0 0
        %1341 = vmatpush.bf16.msra.mxu0 0
        %1342 = vmatpush.bf16.msra.mxu0 0
        %1343 = vmatpush.bf16.msra.mxu0 %v702
        %1344 = vmatmul.bf16.gmra.mxu0 %v1334
        %v1345 = vpop.f32.mrf.mxu0
        %v1346 = vadd.f32 %v1330, %v1345
        %v1347 = vpop.f32.mrf.mxu0
        %1348 = vdwg.mxu0
        %v1349 = vadd.f32 %v1346, %v696
        %v1350 = vpack.c.bf16 %v1349, %v1349
        %v1352 = vsel %vm611, %v1350, 0
        %1354 = vmatpush.bf16.msra.mxu0 0
        %1355 = vmatpush.bf16.msra.mxu0 0
        %1356 = vmatpush.bf16.msra.mxu0 0
        %1357 = vmatpush.bf16.msra.mxu0 0
        %1358 = vmatpush.bf16.msra.mxu0 0
        %1359 = vmatpush.bf16.msra.mxu0 0
        %1360 = vmatpush.bf16.msra.mxu0 0
        %1361 = vmatpush.bf16.msra.mxu0 %v1352
        %1362 = vmatmul.bf16.gmra.mxu0 %v734
        %v1363 = vpop.f32.mrf.mxu0
        %v1364 = vadd.f32 %v721, %v1363
        %v1365 = vpop.f32.mrf.mxu0
        %v1366 = vadd.f32 %v726, %v1365
        %1367 = vdwg.mxu0
        %v1368 = vpack.c.bf16 %v1364, %v1364
        %v1369 = vpack.c.bf16 %v1366, %v1366
        %v1370 = vunpack.c.l.bf16 %v1368
        %v1371 = vunpack.c.l.bf16 %v1369
        %v1372 = vmul.f32 %v1370, 0.5
        %v1373 = vmul.f32 %v1371, 0.5
        %v1374 = vpack.c.bf16 %v1372, %v1372
        %v1375 = vpack.c.bf16 %v1373, %v1373
        %v1376 = vmul.f32 %v1370, %v1370
        %v1377 = vmul.f32 %v1371, %v1371
        %v1378 = vpack.c.bf16 %v1376, %v1376
        %v1379 = vpack.c.bf16 %v1377, %v1377
        %v1380 = vunpack.c.l.bf16 %v1378
        %v1381 = vunpack.c.l.bf16 %v1379
        %v1382 = vmul.f32 %v1380, %v1370
        %v1383 = vmul.f32 %v1381, %v1371
        %v1384 = vpack.c.bf16 %v1382, %v1382
        %v1385 = vpack.c.bf16 %v1383, %v1383
        %v1386 = vunpack.c.l.bf16 %v1384
        %v1387 = vunpack.c.l.bf16 %v1385
        %v1388 = vmul.f32 %v1386, 0.044677734
        %v1389 = vmul.f32 %v1387, 0.044677734
        %v1390 = vpack.c.bf16 %v1388, %v1388
        %v1391 = vpack.c.bf16 %v1389, %v1389
        %v1392 = vunpack.c.l.bf16 %v1390
        %v1393 = vunpack.c.l.bf16 %v1391
        %v1394 = vadd.f32 %v1370, %v1392
        %v1395 = vadd.f32 %v1371, %v1393
        %v1396 = vpack.c.bf16 %v1394, %v1394
        %v1397 = vpack.c.bf16 %v1395, %v1395
        %v1398 = vunpack.c.l.bf16 %v1396
        %v1399 = vunpack.c.l.bf16 %v1397
        %v1400 = vmul.f32 %v1398, 0.796875
        %v1401 = vmul.f32 %v1399, 0.796875
        %v1402 = vpack.c.bf16 %v1400, %v1400
        %v1403 = vpack.c.bf16 %v1401, %v1401
        %v1404 = vunpack.c.l.bf16 %v1402
        %v1405 = vunpack.c.l.bf16 %v1403
        %v1406 = vtanh.pop %v1404
        %v1407 = vtanh.pop %v1405
        %v1408 = vpack.c.bf16 %v1406, %v1406
        %v1409 = vpack.c.bf16 %v1407, %v1407
        %v1410 = vunpack.c.l.bf16 %v1408
        %v1411 = vunpack.c.l.bf16 %v1409
        %v1412 = vadd.f32 %v1410, 1.0
        %v1413 = vadd.f32 %v1411, 1.0
        %v1414 = vpack.c.bf16 %v1412, %v1412
        %v1415 = vpack.c.bf16 %v1413, %v1413
        %v1416 = vunpack.c.l.bf16 %v1374
        %v1417 = vunpack.c.l.bf16 %v1375
        %v1418 = vunpack.c.l.bf16 %v1414
        %v1419 = vunpack.c.l.bf16 %v1415
        %v1420 = vmul.f32 %v1416, %v1418
        %v1421 = vmul.f32 %v1417, %v1419
        %v1422 = vpack.c.bf16 %v1421, %v1420
        %1423 = vmatpush.bf16.msra.mxu0 0
        %1424 = vmatpush.bf16.msra.mxu0 0
        %1425 = vmatpush.bf16.msra.mxu0 0
        %1426 = vmatpush.bf16.msra.mxu0 0
        %1427 = vmatpush.bf16.msra.mxu0 0
        %1428 = vmatpush.bf16.msra.mxu0 0
        %1429 = vmatpush.bf16.msra.mxu0 0
        %1430 = vmatpush.bf16.msra.mxu0 %v1422
        %1431 = vmatmul.bf16.gmra.mxu0 %v815
        %v1432 = vpop.f32.mrf.mxu0
        %v1433 = vadd.f32 %v811, %v1432
        %v1434 = vpop.f32.mrf.mxu0
        %1435 = vdwg.mxu0
        %v1436 = vpack.c.bf16 %v1433, %v1433
        %1437 = vst.msk [vmem:[%s594 + $0x8] sm:$0x3] %vm642, %v1436
        %s1438 = scalar_lea.vmem [#allocation7], 22
        %v1439 = vld [vmem:[%s1438] sm:$0x3]
        %s1440 = scalar_lea.vmem [#allocation7], 24
        %v1441 = vld [vmem:[%s1440] sm:$0x3]
        %1442 = vst [vmem:[#allocation1] ss:$4 sm:$0xff] %v683
        %v1443 = vld.sshfl [vmem:[#allocation1] sm:$0xff pattern:$0x73625140]
        %1445 = vrot.lane.b32.xlu0 %v1443, 127
        %v1446 = vpop.permute.xlu0 %1445
        %v1448 = vsel %vm607, %v1441, 0
        %v1451 = vsel %vm611, %v1446, 0
        %1453 = vmatpush.bf16.msra.mxu0 0
        %1454 = vmatpush.bf16.msra.mxu0 0
        %1455 = vmatpush.bf16.msra.mxu0 0
        %1456 = vmatpush.bf16.msra.mxu0 0
        %1457 = vmatpush.bf16.msra.mxu0 0
        %1458 = vmatpush.bf16.msra.mxu0 0
        %1459 = vmatpush.bf16.msra.mxu0 0
        %1460 = vmatpush.bf16.msra.mxu0 %v1451
        %1461 = vmatmul.bf16.gmra.mxu0 %v1448
        %v1462 = vpop.f32.mrf.mxu0
        %v1463 = vadd.f32 0.0, %v1462
        %v1464 = vpop.f32.mrf.mxu0
        %1465 = vdwg.mxu0
        %v1467 = vsel %vm607, %v1439, 0
        %1469 = vmatpush.bf16.msra.mxu0 0
        %1470 = vmatpush.bf16.msra.mxu0 0
        %1471 = vmatpush.bf16.msra.mxu0 0
        %1472 = vmatpush.bf16.msra.mxu0 0
        %1473 = vmatpush.bf16.msra.mxu0 0
        %1474 = vmatpush.bf16.msra.mxu0 0
        %1475 = vmatpush.bf16.msra.mxu0 0
        %1476 = vmatpush.bf16.msra.mxu0 %v702
        %1477 = vmatmul.bf16.gmra.mxu0 %v1467
        %v1478 = vpop.f32.mrf.mxu0
        %v1479 = vadd.f32 %v1463, %v1478
        %v1480 = vpop.f32.mrf.mxu0
        %1481 = vdwg.mxu0
        %s1482 = scalar_lea.vmem [#allocation7], 26
        %v1483 = vld [vmem:[%s1482] sm:$0x3]
        %v1485 = vsel %vm607, %v1483, 0
        %1487 = vmatpush.bf16.msra.mxu0 0
        %1488 = vmatpush.bf16.msra.mxu0 0
        %1489 = vmatpush.bf16.msra.mxu0 0
        %1490 = vmatpush.bf16.msra.mxu0 0
        %1491 = vmatpush.bf16.msra.mxu0 0
        %1492 = vmatpush.bf16.msra.mxu0 0
        %1493 = vmatpush.bf16.msra.mxu0 0
        %1494 = vmatpush.bf16.msra.mxu0 %v1318
        %1495 = vmatmul.bf16.gmra.mxu0 %v1485
        %v1496 = vpop.f32.mrf.mxu0
        %v1497 = vadd.f32 0.0, %v1496
        %v1498 = vpop.f32.mrf.mxu0
        %1499 = vdwg.mxu0
        %v1500 = vadd.f32 %v1479, %v1497
        %s1501 = scalar_lea.vmem [#allocation7], 28
        %v1502 = vld [vmem:[%s1501] sm:$0x3]
        %1503 = vst [vmem:[#allocation1] ss:$4 sm:$0xff] %v684
        %v1504 = vld.sshfl [vmem:[#allocation1] sm:$0xff pattern:$0x73625140]
        %1506 = vrot.lane.b32.xlu0 %v1504, 127
        %v1507 = vpop.permute.xlu0 %1506
        %v1509 = vsel %vm607, %v1502, 0
        %v1512 = vsel %vm611, %v1507, 0
        %1514 = vmatpush.bf16.msra.mxu0 0
        %1515 = vmatpush.bf16.msra.mxu0 0
        %1516 = vmatpush.bf16.msra.mxu0 0
        %1517 = vmatpush.bf16.msra.mxu0 0
        %1518 = vmatpush.bf16.msra.mxu0 0
        %1519 = vmatpush.bf16.msra.mxu0 0
        %1520 = vmatpush.bf16.msra.mxu0 0
        %1521 = vmatpush.bf16.msra.mxu0 %v1512
        %1522 = vmatmul.bf16.gmra.mxu0 %v1509
        %v1523 = vpop.f32.mrf.mxu0
        %v1524 = vadd.f32 0.0, %v1523
        %v1525 = vpop.f32.mrf.mxu0
        %1526 = vdwg.mxu0
        %v1527 = vadd.f32 %v1500, %v1524
        %v1528 = vadd.f32 %v1527, %v696
        %v1529 = vpack.c.bf16 %v1528, %v1528
        %v1531 = vsel %vm611, %v1529, 0
        %1533 = vmatpush.bf16.msra.mxu0 0
        %1534 = vmatpush.bf16.msra.mxu0 0
        %1535 = vmatpush.bf16.msra.mxu0 0
        %1536 = vmatpush.bf16.msra.mxu0 0
        %1537 = vmatpush.bf16.msra.mxu0 0
        %1538 = vmatpush.bf16.msra.mxu0 0
        %1539 = vmatpush.bf16.msra.mxu0 0
        %1540 = vmatpush.bf16.msra.mxu0 %v1531
        %1541 = vmatmul.bf16.gmra.mxu0 %v734
        %v1542 = vpop.f32.mrf.mxu0
        %v1543 = vadd.f32 %v721, %v1542
        %v1544 = vpop.f32.mrf.mxu0
        %v1545 = vadd.f32 %v726, %v1544
        %1546 = vdwg.mxu0
        %v1547 = vpack.c.bf16 %v1543, %v1543
        %v1548 = vpack.c.bf16 %v1545, %v1545
        %v1549 = vunpack.c.l.bf16 %v1547
        %v1550 = vunpack.c.l.bf16 %v1548
        %v1551 = vmul.f32 %v1549, 0.5
        %v1552 = vmul.f32 %v1550, 0.5
        %v1553 = vpack.c.bf16 %v1551, %v1551
        %v1554 = vpack.c.bf16 %v1552, %v1552
        %v1555 = vmul.f32 %v1549, %v1549
        %v1556 = vmul.f32 %v1550, %v1550
        %v1557 = vpack.c.bf16 %v1555, %v1555
        %v1558 = vpack.c.bf16 %v1556, %v1556
        %v1559 = vunpack.c.l.bf16 %v1557
        %v1560 = vunpack.c.l.bf16 %v1558
        %v1561 = vmul.f32 %v1559, %v1549
        %v1562 = vmul.f32 %v1560, %v1550
        %v1563 = vpack.c.bf16 %v1561, %v1561
        %v1564 = vpack.c.bf16 %v1562, %v1562
        %v1565 = vunpack.c.l.bf16 %v1563
        %v1566 = vunpack.c.l.bf16 %v1564
        %v1567 = vmul.f32 %v1565, 0.044677734
        %v1568 = vmul.f32 %v1566, 0.044677734
        %v1569 = vpack.c.bf16 %v1567, %v1567
        %v1570 = vpack.c.bf16 %v1568, %v1568
        %v1571 = vunpack.c.l.bf16 %v1569
        %v1572 = vunpack.c.l.bf16 %v1570
        %v1573 = vadd.f32 %v1549, %v1571
        %v1574 = vadd.f32 %v1550, %v1572
        %v1575 = vpack.c.bf16 %v1573, %v1573
        %v1576 = vpack.c.bf16 %v1574, %v1574
        %v1577 = vunpack.c.l.bf16 %v1575
        %v1578 = vunpack.c.l.bf16 %v1576
        %v1579 = vmul.f32 %v1577, 0.796875
        %v1580 = vmul.f32 %v1578, 0.796875
        %v1581 = vpack.c.bf16 %v1579, %v1579
        %v1582 = vpack.c.bf16 %v1580, %v1580
        %v1583 = vunpack.c.l.bf16 %v1581
        %v1584 = vunpack.c.l.bf16 %v1582
        %v1585 = vtanh.pop %v1583
        %v1586 = vtanh.pop %v1584
        %v1587 = vpack.c.bf16 %v1585, %v1585
        %v1588 = vpack.c.bf16 %v1586, %v1586
        %v1589 = vunpack.c.l.bf16 %v1587
        %v1590 = vunpack.c.l.bf16 %v1588
        %v1591 = vadd.f32 %v1589, 1.0
        %v1592 = vadd.f32 %v1590, 1.0
        %v1593 = vpack.c.bf16 %v1591, %v1591
        %v1594 = vpack.c.bf16 %v1592, %v1592
        %v1595 = vunpack.c.l.bf16 %v1553
        %v1596 = vunpack.c.l.bf16 %v1554
        %v1597 = vunpack.c.l.bf16 %v1593
        %v1598 = vunpack.c.l.bf16 %v1594
        %v1599 = vmul.f32 %v1595, %v1597
        %v1600 = vmul.f32 %v1596, %v1598
        %v1601 = vpack.c.bf16 %v1600, %v1599
        %1602 = vmatpush.bf16.msra.mxu0 0
        %1603 = vmatpush.bf16.msra.mxu0 0
        %1604 = vmatpush.bf16.msra.mxu0 0
        %1605 = vmatpush.bf16.msra.mxu0 0
        %1606 = vmatpush.bf16.msra.mxu0 0
        %1607 = vmatpush.bf16.msra.mxu0 0
        %1608 = vmatpush.bf16.msra.mxu0 0
        %1609 = vmatpush.bf16.msra.mxu0 %v1601
        %1610 = vmatmul.bf16.gmra.mxu0 %v815
        %v1611 = vpop.f32.mrf.mxu0
        %v1612 = vadd.f32 %v811, %v1611
        %v1613 = vpop.f32.mrf.mxu0
        %1614 = vdwg.mxu0
        %v1615 = vpack.c.bf16 %v1612, %v1612
        %v1617 = vrot.slane %v1615, 6
        %1619 = vst.msk [vmem:[%s594 + $0x8] sm:$0xc] %vm985, %v1617
        %s1620 = scalar_lea.vmem [#allocation7], 30
        %v1621 = vld [vmem:[%s1620] sm:$0x3]
        %s1622 = scalar_lea.vmem [#allocation7], 32
        %v1623 = vld [vmem:[%s1622] sm:$0x3]
        %1624 = vst [vmem:[#allocation1] ss:$4 sm:$0xff] %v683
        %v1625 = vld.sshfl [vmem:[#allocation1] sm:$0xff pattern:$0x73625140]
        %1627 = vrot.lane.b32.xlu0 %v1625, 119
        %v1628 = vpop.permute.xlu0 %1627
        %v1630 = vsel %vm607, %v1623, 0
        %v1633 = vsel %vm611, %v1628, 0
        %1635 = vmatpush.bf16.msra.mxu0 0
        %1636 = vmatpush.bf16.msra.mxu0 0
        %1637 = vmatpush.bf16.msra.mxu0 0
        %1638 = vmatpush.bf16.msra.mxu0 0
        %1639 = vmatpush.bf16.msra.mxu0 0
        %1640 = vmatpush.bf16.msra.mxu0 0
        %1641 = vmatpush.bf16.msra.mxu0 0
        %1642 = vmatpush.bf16.msra.mxu0 %v1633
        %1643 = vmatmul.bf16.gmra.mxu0 %v1630
        %v1644 = vpop.f32.mrf.mxu0
        %v1645 = vadd.f32 0.0, %v1644
        %v1646 = vpop.f32.mrf.mxu0
        %1647 = vdwg.mxu0
        %v1649 = vsel %vm607, %v1621, 0
        %1651 = vmatpush.bf16.msra.mxu0 0
        %1652 = vmatpush.bf16.msra.mxu0 0
        %1653 = vmatpush.bf16.msra.mxu0 0
        %1654 = vmatpush.bf16.msra.mxu0 0
        %1655 = vmatpush.bf16.msra.mxu0 0
        %1656 = vmatpush.bf16.msra.mxu0 0
        %1657 = vmatpush.bf16.msra.mxu0 0
        %1658 = vmatpush.bf16.msra.mxu0 %v702
        %1659 = vmatmul.bf16.gmra.mxu0 %v1649
        %v1660 = vpop.f32.mrf.mxu0
        %v1661 = vadd.f32 %v1645, %v1660
        %v1662 = vpop.f32.mrf.mxu0
        %1663 = vdwg.mxu0
        %s1664 = scalar_lea.vmem [#allocation7], 34
        %v1665 = vld [vmem:[%s1664] sm:$0x3]
        %v1667 = vsel %vm607, %v1665, 0
        %1669 = vmatpush.bf16.msra.mxu0 0
        %1670 = vmatpush.bf16.msra.mxu0 0
        %1671 = vmatpush.bf16.msra.mxu0 0
        %1672 = vmatpush.bf16.msra.mxu0 0
        %1673 = vmatpush.bf16.msra.mxu0 0
        %1674 = vmatpush.bf16.msra.mxu0 0
        %1675 = vmatpush.bf16.msra.mxu0 0
        %1676 = vmatpush.bf16.msra.mxu0 %v1318
        %1677 = vmatmul.bf16.gmra.mxu0 %v1667
        %v1678 = vpop.f32.mrf.mxu0
        %v1679 = vadd.f32 0.0, %v1678
        %v1680 = vpop.f32.mrf.mxu0
        %1681 = vdwg.mxu0
        %v1682 = vadd.f32 %v1661, %v1679
        %s1683 = scalar_lea.vmem [#allocation7], 36
        %v1684 = vld [vmem:[%s1683] sm:$0x3]
        %1685 = vst [vmem:[#allocation1] ss:$4 sm:$0xff] %v684
        %v1686 = vld.sshfl [vmem:[#allocation1] sm:$0xff pattern:$0x73625140]
        %1688 = vrot.lane.b32.xlu0 %v1686, 119
        %v1689 = vpop.permute.xlu0 %1688
        %v1691 = vsel %vm607, %v1684, 0
        %v1694 = vsel %vm611, %v1689, 0
        %1696 = vmatpush.bf16.msra.mxu0 0
        %1697 = vmatpush.bf16.msra.mxu0 0
        %1698 = vmatpush.bf16.msra.mxu0 0
        %1699 = vmatpush.bf16.msra.mxu0 0
        %1700 = vmatpush.bf16.msra.mxu0 0
        %1701 = vmatpush.bf16.msra.mxu0 0
        %1702 = vmatpush.bf16.msra.mxu0 0
        %1703 = vmatpush.bf16.msra.mxu0 %v1694
        %1704 = vmatmul.bf16.gmra.mxu0 %v1691
        %v1705 = vpop.f32.mrf.mxu0
        %v1706 = vadd.f32 0.0, %v1705
        %v1707 = vpop.f32.mrf.mxu0
        %1708 = vdwg.mxu0
        %v1709 = vadd.f32 %v1682, %v1706
        %v1710 = vadd.f32 %v1709, %v696
        %v1711 = vpack.c.bf16 %v1710, %v1710
        %v1713 = vsel %vm611, %v1711, 0
        %1715 = vmatpush.bf16.msra.mxu0 0
        %1716 = vmatpush.bf16.msra.mxu0 0
        %1717 = vmatpush.bf16.msra.mxu0 0
        %1718 = vmatpush.bf16.msra.mxu0 0
        %1719 = vmatpush.bf16.msra.mxu0 0
        %1720 = vmatpush.bf16.msra.mxu0 0
        %1721 = vmatpush.bf16.msra.mxu0 0
        %1722 = vmatpush.bf16.msra.mxu0 %v1713
        %1723 = vmatmul.bf16.gmra.mxu0 %v734
        %v1724 = vpop.f32.mrf.mxu0
        %v1725 = vadd.f32 %v721, %v1724
        %v1726 = vpop.f32.mrf.mxu0
        %v1727 = vadd.f32 %v726, %v1726
        %1728 = vdwg.mxu0
        %v1729 = vpack.c.bf16 %v1725, %v1725
        %v1730 = vpack.c.bf16 %v1727, %v1727
        %v1731 = vunpack.c.l.bf16 %v1729
        %v1732 = vunpack.c.l.bf16 %v1730
        %v1733 = vmul.f32 %v1731, 0.5
        %v1734 = vmul.f32 %v1732, 0.5
        %v1735 = vpack.c.bf16 %v1733, %v1733
        %v1736 = vpack.c.bf16 %v1734, %v1734
        %v1737 = vmul.f32 %v1731, %v1731
        %v1738 = vmul.f32 %v1732, %v1732
        %v1739 = vpack.c.bf16 %v1737, %v1737
        %v1740 = vpack.c.bf16 %v1738, %v1738
        %v1741 = vunpack.c.l.bf16 %v1739
        %v1742 = vunpack.c.l.bf16 %v1740
        %v1743 = vmul.f32 %v1741, %v1731
        %v1744 = vmul.f32 %v1742, %v1732
        %v1745 = vpack.c.bf16 %v1743, %v1743
        %v1746 = vpack.c.bf16 %v1744, %v1744
        %v1747 = vunpack.c.l.bf16 %v1745
        %v1748 = vunpack.c.l.bf16 %v1746
        %v1749 = vmul.f32 %v1747, 0.044677734
        %v1750 = vmul.f32 %v1748, 0.044677734
        %v1751 = vpack.c.bf16 %v1749, %v1749
        %v1752 = vpack.c.bf16 %v1750, %v1750
        %v1753 = vunpack.c.l.bf16 %v1751
        %v1754 = vunpack.c.l.bf16 %v1752
        %v1755 = vadd.f32 %v1731, %v1753
        %v1756 = vadd.f32 %v1732, %v1754
        %v1757 = vpack.c.bf16 %v1755, %v1755
        %v1758 = vpack.c.bf16 %v1756, %v1756
        %v1759 = vunpack.c.l.bf16 %v1757
        %v1760 = vunpack.c.l.bf16 %v1758
        %v1761 = vmul.f32 %v1759, 0.796875
        %v1762 = vmul.f32 %v1760, 0.796875
        %v1763 = vpack.c.bf16 %v1761, %v1761
        %v1764 = vpack.c.bf16 %v1762, %v1762
        %v1765 = vunpack.c.l.bf16 %v1763
        %v1766 = vunpack.c.l.bf16 %v1764
        %v1767 = vtanh.pop %v1765
        %v1768 = vtanh.pop %v1766
        %v1769 = vpack.c.bf16 %v1767, %v1767
        %v1770 = vpack.c.bf16 %v1768, %v1768
        %v1771 = vunpack.c.l.bf16 %v1769
        %v1772 = vunpack.c.l.bf16 %v1770
        %v1773 = vadd.f32 %v1771, 1.0
        %v1774 = vadd.f32 %v1772, 1.0
        %v1775 = vpack.c.bf16 %v1773, %v1773
        %v1776 = vpack.c.bf16 %v1774, %v1774
        %v1777 = vunpack.c.l.bf16 %v1735
        %v1778 = vunpack.c.l.bf16 %v1736
        %v1779 = vunpack.c.l.bf16 %v1775
        %v1780 = vunpack.c.l.bf16 %v1776
        %v1781 = vmul.f32 %v1777, %v1779
        %v1782 = vmul.f32 %v1778, %v1780
        %v1783 = vpack.c.bf16 %v1782, %v1781
        %1784 = vmatpush.bf16.msra.mxu0 0
        %1785 = vmatpush.bf16.msra.mxu0 0
        %1786 = vmatpush.bf16.msra.mxu0 0
        %1787 = vmatpush.bf16.msra.mxu0 0
        %1788 = vmatpush.bf16.msra.mxu0 0
        %1789 = vmatpush.bf16.msra.mxu0 0
        %1790 = vmatpush.bf16.msra.mxu0 0
        %1791 = vmatpush.bf16.msra.mxu0 %v1783
        %1792 = vmatmul.bf16.gmra.mxu0 %v815
        %v1793 = vpop.f32.mrf.mxu0
        %v1794 = vadd.f32 %v811, %v1793
        %v1795 = vpop.f32.mrf.mxu0
        %1796 = vdwg.mxu0
        %v1797 = vpack.c.bf16 %v1794, %v1794
        %1798 = vst.msk [vmem:[%s594 + $0xc] sm:$0x3] %vm642, %v1797
        %s1799 = scalar_lea.vmem [#allocation7], 38
        %v1800 = vld [vmem:[%s1799] sm:$0x3]
        %s1801 = scalar_lea.vmem [#allocation7], 40
        %v1802 = vld [vmem:[%s1801] sm:$0x3]
        %1803 = vst [vmem:[#allocation1] ss:$4 sm:$0xff] %v683
        %v1804 = vld.sshfl [vmem:[#allocation1] sm:$0xff pattern:$0x73625140]
        %1806 = vrot.lane.b32.xlu0 %v1804, 127
        %v1807 = vpop.permute.xlu0 %1806
        %v1809 = vsel %vm607, %v1802, 0
        %v1812 = vsel %vm611, %v1807, 0
        %1814 = vmatpush.bf16.msra.mxu0 0
        %1815 = vmatpush.bf16.msra.mxu0 0
        %1816 = vmatpush.bf16.msra.mxu0 0
        %1817 = vmatpush.bf16.msra.mxu0 0
        %1818 = vmatpush.bf16.msra.mxu0 0
        %1819 = vmatpush.bf16.msra.mxu0 0
        %1820 = vmatpush.bf16.msra.mxu0 0
        %1821 = vmatpush.bf16.msra.mxu0 %v1812
        %1822 = vmatmul.bf16.gmra.mxu0 %v1809
        %v1823 = vpop.f32.mrf.mxu0
        %v1824 = vadd.f32 0.0, %v1823
        %v1825 = vpop.f32.mrf.mxu0
        %1826 = vdwg.mxu0
        %v1828 = vsel %vm607, %v1800, 0
        %1830 = vmatpush.bf16.msra.mxu0 0
        %1831 = vmatpush.bf16.msra.mxu0 0
        %1832 = vmatpush.bf16.msra.mxu0 0
        %1833 = vmatpush.bf16.msra.mxu0 0
        %1834 = vmatpush.bf16.msra.mxu0 0
        %1835 = vmatpush.bf16.msra.mxu0 0
        %1836 = vmatpush.bf16.msra.mxu0 0
        %1837 = vmatpush.bf16.msra.mxu0 %v702
        %1838 = vmatmul.bf16.gmra.mxu0 %v1828
        %v1839 = vpop.f32.mrf.mxu0
        %v1840 = vadd.f32 %v1824, %v1839
        %v1841 = vpop.f32.mrf.mxu0
        %1842 = vdwg.mxu0
        %s1843 = scalar_lea.vmem [#allocation7], 42
        %v1844 = vld [vmem:[%s1843] sm:$0x3]
        %1845 = vst [vmem:[#allocation1] ss:$4 sm:$0xff] %v683
        %v1846 = vld.sshfl [vmem:[#allocation1] sm:$0xff pattern:$0x73625140]
        %1848 = vrot.lane.b32.xlu0 %v1846, 119
        %v1849 = vpop.permute.xlu0 %1848
        %v1851 = vsel %vm607, %v1844, 0
        %v1854 = vsel %vm611, %v1849, 0
        %1856 = vmatpush.bf16.msra.mxu0 0
        %1857 = vmatpush.bf16.msra.mxu0 0
        %1858 = vmatpush.bf16.msra.mxu0 0
        %1859 = vmatpush.bf16.msra.mxu0 0
        %1860 = vmatpush.bf16.msra.mxu0 0
        %1861 = vmatpush.bf16.msra.mxu0 0
        %1862 = vmatpush.bf16.msra.mxu0 0
        %1863 = vmatpush.bf16.msra.mxu0 %v1854
        %1864 = vmatmul.bf16.gmra.mxu0 %v1851
        %v1865 = vpop.f32.mrf.mxu0
        %v1866 = vadd.f32 0.0, %v1865
        %v1867 = vpop.f32.mrf.mxu0
        %1868 = vdwg.mxu0
        %v1869 = vadd.f32 %v1840, %v1866
        %s1870 = scalar_lea.vmem [#allocation7], 44
        %v1871 = vld [vmem:[%s1870] sm:$0x3]
        %1872 = vst [vmem:[#allocation1] ss:$4 sm:$0xff] %v683
        %v1873 = vld.sshfl [vmem:[#allocation1] sm:$0xff pattern:$0x73625140]
        %1875 = vrot.lane.b32.xlu0 %v1873, 118
        %v1876 = vpop.permute.xlu0 %1875
        %v1878 = vsel %vm607, %v1871, 0
        %v1881 = vsel %vm611, %v1876, 0
        %1883 = vmatpush.bf16.msra.mxu0 0
        %1884 = vmatpush.bf16.msra.mxu0 0
        %1885 = vmatpush.bf16.msra.mxu0 0
        %1886 = vmatpush.bf16.msra.mxu0 0
        %1887 = vmatpush.bf16.msra.mxu0 0
        %1888 = vmatpush.bf16.msra.mxu0 0
        %1889 = vmatpush.bf16.msra.mxu0 0
        %1890 = vmatpush.bf16.msra.mxu0 %v1881
        %1891 = vmatmul.bf16.gmra.mxu0 %v1878
        %v1892 = vpop.f32.mrf.mxu0
        %v1893 = vadd.f32 0.0, %v1892
        %v1894 = vpop.f32.mrf.mxu0
        %1895 = vdwg.mxu0
        %v1896 = vadd.f32 %v1869, %v1893
        %s1897 = scalar_lea.vmem [#allocation7], 46
        %v1898 = vld [vmem:[%s1897] sm:$0x3]
        %v1900 = vsel %vm607, %v1898, 0
        %1902 = vmatpush.bf16.msra.mxu0 0
        %1903 = vmatpush.bf16.msra.mxu0 0
        %1904 = vmatpush.bf16.msra.mxu0 0
        %1905 = vmatpush.bf16.msra.mxu0 0
        %1906 = vmatpush.bf16.msra.mxu0 0
        %1907 = vmatpush.bf16.msra.mxu0 0
        %1908 = vmatpush.bf16.msra.mxu0 0
        %1909 = vmatpush.bf16.msra.mxu0 %v1318
        %1910 = vmatmul.bf16.gmra.mxu0 %v1900
        %v1911 = vpop.f32.mrf.mxu0
        %v1912 = vadd.f32 0.0, %v1911
        %v1913 = vpop.f32.mrf.mxu0
        %1914 = vdwg.mxu0
        %v1915 = vadd.f32 %v1896, %v1912
        %s1916 = scalar_lea.vmem [#allocation7], 48
        %v1917 = vld [vmem:[%s1916] sm:$0x3]
        %1918 = vst [vmem:[#allocation1] ss:$4 sm:$0xff] %v684
        %v1919 = vld.sshfl [vmem:[#allocation1] sm:$0xff pattern:$0x73625140]
        %1921 = vrot.lane.b32.xlu0 %v1919, 127
        %v1922 = vpop.permute.xlu0 %1921
        %v1924 = vsel %vm607, %v1917, 0
        %v1927 = vsel %vm611, %v1922, 0
        %1929 = vmatpush.bf16.msra.mxu0 0
        %1930 = vmatpush.bf16.msra.mxu0 0
        %1931 = vmatpush.bf16.msra.mxu0 0
        %1932 = vmatpush.bf16.msra.mxu0 0
        %1933 = vmatpush.bf16.msra.mxu0 0
        %1934 = vmatpush.bf16.msra.mxu0 0
        %1935 = vmatpush.bf16.msra.mxu0 0
        %1936 = vmatpush.bf16.msra.mxu0 %v1927
        %1937 = vmatmul.bf16.gmra.mxu0 %v1924
        %v1938 = vpop.f32.mrf.mxu0
        %v1939 = vadd.f32 0.0, %v1938
        %v1940 = vpop.f32.mrf.mxu0
        %1941 = vdwg.mxu0
        %v1942 = vadd.f32 %v1915, %v1939
        %s1943 = scalar_lea.vmem [#allocation7], 50
        %v1944 = vld [vmem:[%s1943] sm:$0x3]
        %1945 = vst [vmem:[#allocation1] ss:$4 sm:$0xff] %v684
        %v1946 = vld.sshfl [vmem:[#allocation1] sm:$0xff pattern:$0x73625140]
        %1948 = vrot.lane.b32.xlu0 %v1946, 119
        %v1949 = vpop.permute.xlu0 %1948
        %v1951 = vsel %vm607, %v1944, 0
        %v1954 = vsel %vm611, %v1949, 0
        %1956 = vmatpush.bf16.msra.mxu0 0
        %1957 = vmatpush.bf16.msra.mxu0 0
        %1958 = vmatpush.bf16.msra.mxu0 0
        %1959 = vmatpush.bf16.msra.mxu0 0
        %1960 = vmatpush.bf16.msra.mxu0 0
        %1961 = vmatpush.bf16.msra.mxu0 0
        %1962 = vmatpush.bf16.msra.mxu0 0
        %1963 = vmatpush.bf16.msra.mxu0 %v1954
        %1964 = vmatmul.bf16.gmra.mxu0 %v1951
        %v1965 = vpop.f32.mrf.mxu0
        %v1966 = vadd.f32 0.0, %v1965
        %v1967 = vpop.f32.mrf.mxu0
        %1968 = vdwg.mxu0
        %v1969 = vadd.f32 %v1942, %v1966
        %s1970 = scalar_lea.vmem [#allocation7], 52
        %v1971 = vld [vmem:[%s1970] sm:$0x3]
        %1972 = vst [vmem:[#allocation1] ss:$4 sm:$0xff] %v684
        %v1973 = vld.sshfl [vmem:[#allocation1] sm:$0xff pattern:$0x73625140]
        %1975 = vrot.lane.b32.xlu0 %v1973, 118
        %v1976 = vpop.permute.xlu0 %1975
        %v1978 = vsel %vm607, %v1971, 0
        %v1981 = vsel %vm611, %v1976, 0
        %1983 = vmatpush.bf16.msra.mxu0 0
        %1984 = vmatpush.bf16.msra.mxu0 0
        %1985 = vmatpush.bf16.msra.mxu0 0
        %1986 = vmatpush.bf16.msra.mxu0 0
        %1987 = vmatpush.bf16.msra.mxu0 0
        %1988 = vmatpush.bf16.msra.mxu0 0
        %1989 = vmatpush.bf16.msra.mxu0 0
        %1990 = vmatpush.bf16.msra.mxu0 %v1981
        %1991 = vmatmul.bf16.gmra.mxu0 %v1978
        %v1992 = vpop.f32.mrf.mxu0
        %v1993 = vadd.f32 0.0, %v1992
        %v1994 = vpop.f32.mrf.mxu0
        %1995 = vdwg.mxu0
        %v1996 = vadd.f32 %v1969, %v1993
        %v1997 = vadd.f32 %v1996, %v696
        %v1998 = vpack.c.bf16 %v1997, %v1997
        %v2000 = vsel %vm611, %v1998, 0
        %2002 = vmatpush.bf16.msra.mxu0 0
        %2003 = vmatpush.bf16.msra.mxu0 0
        %2004 = vmatpush.bf16.msra.mxu0 0
        %2005 = vmatpush.bf16.msra.mxu0 0
        %2006 = vmatpush.bf16.msra.mxu0 0
        %2007 = vmatpush.bf16.msra.mxu0 0
        %2008 = vmatpush.bf16.msra.mxu0 0
        %2009 = vmatpush.bf16.msra.mxu0 %v2000
        %2010 = vmatmul.bf16.gmra.mxu0 %v734
        %v2011 = vpop.f32.mrf.mxu0
        %v2012 = vadd.f32 %v721, %v2011
        %v2013 = vpop.f32.mrf.mxu0
        %v2014 = vadd.f32 %v726, %v2013
        %2015 = vdwg.mxu0
        %v2016 = vpack.c.bf16 %v2012, %v2012
        %v2017 = vpack.c.bf16 %v2014, %v2014
        %v2018 = vunpack.c.l.bf16 %v2016
        %v2019 = vunpack.c.l.bf16 %v2017
        %v2020 = vmul.f32 %v2018, 0.5
        %v2021 = vmul.f32 %v2019, 0.5
        %v2022 = vpack.c.bf16 %v2020, %v2020
        %v2023 = vpack.c.bf16 %v2021, %v2021
        %v2024 = vmul.f32 %v2018, %v2018
        %v2025 = vmul.f32 %v2019, %v2019
        %v2026 = vpack.c.bf16 %v2024, %v2024
        %v2027 = vpack.c.bf16 %v2025, %v2025
        %v2028 = vunpack.c.l.bf16 %v2026
        %v2029 = vunpack.c.l.bf16 %v2027
        %v2030 = vmul.f32 %v2028, %v2018
        %v2031 = vmul.f32 %v2029, %v2019
        %v2032 = vpack.c.bf16 %v2030, %v2030
        %v2033 = vpack.c.bf16 %v2031, %v2031
        %v2034 = vunpack.c.l.bf16 %v2032
        %v2035 = vunpack.c.l.bf16 %v2033
        %v2036 = vmul.f32 %v2034, 0.044677734
        %v2037 = vmul.f32 %v2035, 0.044677734
        %v2038 = vpack.c.bf16 %v2036, %v2036
        %v2039 = vpack.c.bf16 %v2037, %v2037
        %v2040 = vunpack.c.l.bf16 %v2038
        %v2041 = vunpack.c.l.bf16 %v2039
        %v2042 = vadd.f32 %v2018, %v2040
        %v2043 = vadd.f32 %v2019, %v2041
        %v2044 = vpack.c.bf16 %v2042, %v2042
        %v2045 = vpack.c.bf16 %v2043, %v2043
        %v2046 = vunpack.c.l.bf16 %v2044
        %v2047 = vunpack.c.l.bf16 %v2045
        %v2048 = vmul.f32 %v2046, 0.796875
        %v2049 = vmul.f32 %v2047, 0.796875
        %v2050 = vpack.c.bf16 %v2048, %v2048
        %v2051 = vpack.c.bf16 %v2049, %v2049
        %v2052 = vunpack.c.l.bf16 %v2050
        %v2053 = vunpack.c.l.bf16 %v2051
        %v2054 = vtanh.pop %v2052
        %v2055 = vtanh.pop %v2053
        %v2056 = vpack.c.bf16 %v2054, %v2054
        %v2057 = vpack.c.bf16 %v2055, %v2055
        %v2058 = vunpack.c.l.bf16 %v2056
        %v2059 = vunpack.c.l.bf16 %v2057
        %v2060 = vadd.f32 %v2058, 1.0
        %v2061 = vadd.f32 %v2059, 1.0
        %v2062 = vpack.c.bf16 %v2060, %v2060
        %v2063 = vpack.c.bf16 %v2061, %v2061
        %v2064 = vunpack.c.l.bf16 %v2022
        %v2065 = vunpack.c.l.bf16 %v2023
        %v2066 = vunpack.c.l.bf16 %v2062
        %v2067 = vunpack.c.l.bf16 %v2063
        %v2068 = vmul.f32 %v2064, %v2066
        %v2069 = vmul.f32 %v2065, %v2067
        %v2070 = vpack.c.bf16 %v2069, %v2068
        %2071 = vmatpush.bf16.msra.mxu0 0
        %2072 = vmatpush.bf16.msra.mxu0 0
        %2073 = vmatpush.bf16.msra.mxu0 0
        %2074 = vmatpush.bf16.msra.mxu0 0
        %2075 = vmatpush.bf16.msra.mxu0 0
        %2076 = vmatpush.bf16.msra.mxu0 0
        %2077 = vmatpush.bf16.msra.mxu0 0
        %2078 = vmatpush.bf16.msra.mxu0 %v2070
        %2079 = vmatmul.bf16.gmra.mxu0 %v815
        %v2080 = vpop.f32.mrf.mxu0
        %v2081 = vadd.f32 %v811, %v2080
        %v2082 = vpop.f32.mrf.mxu0
        %2083 = vdwg.mxu0
        %v2084 = vpack.c.bf16 %v2081, %v2081
        %v2086 = vrot.slane %v2084, 6
        %2088 = vst.msk [vmem:[%s594 + $0xc] sm:$0xc] %vm985, %v2086
        %p2089 = scmp.lt.s32.totalorder %s31, 1
        %s2090 = scalar_select %p2089, %s31, 1
        %p2091 = scmp.lt.s32.totalorder %s32, 7
        %s2092 = scalar_select %p2091, %s32, 7
        %s2093 = smul.addr %s2092, 4
        %s2094 = smul.addr %s2090, 32
        %s2095 = sadd.s32 %s2093, %s2094
        %s2096 = smul.addr %s2095, 4
        %s2097 = scalar_lea.vmem %s11, %s2096
        // Predicated region
        $region101: #{_lambda_.1} parent=63 // pred_check
          %p2098 = pneg %p306
        $region102: #{_lambda_.1} parent=63 // pred_check_branch
          %2100 = sbr.rel (%p2098) target = $region104
        $region103: #{_lambda_.1} parent=63 // pred_region
          _
        $region104: #{_lambda_.1} parent=63 // pred_fallthru
          _
      $region64: #{_lambda_.1} parent=5 // pred_fallthru
        _
      %p2101 = scmp.le.s32.totalorder 2, %s22
      // Predicated region
      $region105: #{_lambda_.1} parent=5 // pred_check
        %p2102 = pneg %p2101
      $region106: #{_lambda_.1} parent=5 // pred_check_branch
        %2104 = sbr.rel (%p2102) target = $region108
      $region107: #{_lambda_.1} parent=5 // pred_region
        %s2105 = ssub.s32 %s22, 2
        // Predicated region
        $region109: #{_lambda_.1} parent=107 // pred_check
          %p2106 = pneg %p312
        $region110: #{_lambda_.1} parent=107 // pred_check_branch
          %2108 = sbr.rel (%p2106) target = $region112
        $region111: #{_lambda_.1} parent=107 // pred_region
          %p2109 = scmp.lt.s32.totalorder %s33, 1
          %s2110 = scalar_select %p2109, %s33, 1
          %p2111 = scmp.lt.s32.totalorder %s34, 7
          %s2112 = scalar_select %p2111, %s34, 7
          %s2113 = smul.addr %s2112, 4
          %s2114 = smul.addr %s2110, 32
          %s2115 = sadd.s32 %s2113, %s2114
          %s2116 = smul.addr %s2115, 4
          %s2117 = scalar_lea.vmem %s11, %s2116
        $region112: #{_lambda_.1} parent=107 // pred_fallthru
          _
      $region108: #{_lambda_.1} parent=5 // pred_fallthru
        _
    $region6: #{_lambda_.1} parent=1 // loop_footer
      %s26 = sadd.s32 1, %s22
    $region7: #{_lambda_.1} parent=1 // loop_footer_branch
      %21 = sbr.rel target = $region3
    $region8: #{_lambda_.1} parent=1 // loop_exit
      _
    %2118 = vsyncpa [#allocation4], 1
    %s2119 = scalar_lea.sflag [#allocation4], 1
    %2120 = vsyncpa %s2119, 1
    %2121 = vsyncpa [#allocation6], 1
    %2122 = vsyncpa [#allocation9], 1
    %2123 = vsyncpa [#allocation12], 1
    %2124 = vsyncpa [#allocation15], 1

</llo_original>
